<compile_context>
chip_gen: v5e
topology: v5e:2x2
jax: 0.10.0
libtpu: 0.0.40
codegen_flags: <defaults>
</compile_context>

<pallas_src>
import functools

import jax
import jax.numpy as jnp
from jax.experimental import pallas as pl
from jax.experimental.pallas import tpu as pltpu


# ----------------------------- in-kernel helpers -----------------------------

def _layernorm(x, w, b, eps=1e-5):
    # PyTorch nn.LayerNorm: biased variance, eps inside rsqrt.
    mean = jnp.mean(x, axis=-1, keepdims=True)
    var = jnp.mean((x - mean) ** 2, axis=-1, keepdims=True)
    return (x - mean) * jax.lax.rsqrt(var + eps) * w + b


def _gelu_exact(x):
    # PyTorch nn.GELU() default (exact, erf-based).
    return 0.5 * x * (1.0 + jax.lax.erf(x * 0.7071067811865475))


# ------------------------------- fused layer kernel ---------------------------

def transformer_layer_kernel(x_ref, ln1w_ref, ln1b_ref, wqkv_ref, wout_ref, bout_ref,
                             ln2w_ref, ln2b_ref, w1_ref, b1_ref, w2_ref, b2_ref,
                             o_ref, *, heads, dim_head, scale, transpose_layout):
    f32, bf16 = jnp.float32, jnp.bfloat16
    x = x_ref[0]                                   # (N, D) f32
    N = x.shape[0]
    d = dim_head
    inner = heads * d

    # ------------- attention (PreNorm + Attention + residual) -------------
    h = _layernorm(x, ln1w_ref[0], ln1b_ref[0])                        # f32
    # Single lane-dense QKV projection on the MXU: bf16 operands, f32 accumulate.
    qkv = jnp.dot(h.astype(bf16), wqkv_ref[...],
                  preferred_element_type=f32)                          # (N, 3*inner) f32

    if transpose_layout:
        # One relayout: (N, 3*H*d) -> (N, 3H, d) -> (3H, N, d); heads sliced on the
        # leading (major) dim.  Replaces 3*H sub-lane slice+stack copies.
        t = jnp.transpose(qkv.reshape(N, 3 * heads, d), (1, 0, 2))
    else:
        # Known-good fallback layout: per-head lane slices stacked head-major.
        t = jnp.stack([qkv[:, i * d:(i + 1) * d] for i in range(3 * heads)], axis=0)
    t = t.astype(bf16)
    q = t[0:heads] * scale            # softmax scale folded into q (H*N*d multiplies)
    k = t[heads:2 * heads]
    v = t[2 * heads:3 * heads]

    # Batched attention, batch dim = heads (leading); contraction over dim_head.
    scores = jnp.einsum("hqd,hkd->hqk", q, k, preferred_element_type=f32)   # (H,N,N) f32
    scores = scores - jnp.max(scores, axis=-1, keepdims=True)               # stable softmax
    e = jnp.exp(scores)
    probs = e * pl.reciprocal(jnp.sum(e, axis=-1, keepdims=True), approx=True)
    ctx = jnp.einsum("hqk,hkd->hqd", probs.astype(bf16), v,
                     preferred_element_type=f32)                            # (H, N, d) f32

    if transpose_layout:
        ctx2d = jnp.transpose(ctx, (1, 0, 2)).reshape(N, inner)             # 'h n d -> n (h d)'
    else:
        ctx2d = jnp.concatenate([ctx[i] for i in range(heads)], axis=-1)

    attn_out = jnp.dot(ctx2d.astype(bf16), wout_ref[...],
                       preferred_element_type=f32) + bout_ref[0]
    y = attn_out + x                                                        # residual add

    # ------------- feed-forward (PreNorm + MLP + residual) -------------
    h2 = _layernorm(y, ln2w_ref[0], ln2b_ref[0])
    a1 = jnp.dot(h2.astype(bf16), w1_ref[...], preferred_element_type=f32) + b1_ref[0]
    g = _gelu_exact(a1)
    a2 = jnp.dot(g.astype(bf16), w2_ref[...], preferred_element_type=f32) + b2_ref[0]
    o_ref[0] = (a2 + y).astype(o_ref.dtype)                                 # residual add


# --------------------------------- wrapper ------------------------------------

_VMEM_LIMIT = None


def _vmem_limit_bytes():
    """75% of physical per-core VMEM (falls back to v7x's 64 MiB), clamped."""
    global _VMEM_LIMIT
    if _VMEM_LIMIT is None:
        try:
            cap = pltpu.get_tpu_info().vmem_capacity_bytes
        except Exception:
            cap = 64 * 2**20          # v7x per-TensorCore capacity (the smallest)
        _VMEM_LIMIT = max(32 * 2**20, min(int(cap * 3 // 4), 96 * 2**20))
    return _VMEM_LIMIT


def _build_layer_call(B, N, D, inner, mlp_dim, heads, dim_head, out_dtype,
                      transpose_layout, single_buffer):
    def wspec(shape):
        # Whole-array block, constant index map -> VMEM-resident across grid steps.
        idx = lambda b, _s=shape: (0,) * len(_s)
        if single_buffer:
            # Weights never change block index: don't double-buffer them.
            return pl.BlockSpec(shape, idx, pipeline_mode=pl.Buffered(1))
        return pl.BlockSpec(shape, idx)

    kernel = functools.partial(transformer_layer_kernel, heads=heads,
                               dim_head=dim_head, scale=dim_head ** -0.5,
                               transpose_layout=transpose_layout)
    return pl.pallas_call(
        kernel,
        out_shape=jax.ShapeDtypeStruct((B, N, D), out_dtype),
        grid=(B,),
        in_specs=[
            pl.BlockSpec((1, N, D), lambda b: (b, 0, 0)),     # x
            wspec((1, D)), wspec((1, D)),                     # ln1 weight / bias (f32)
            wspec((D, 3 * inner)),                            # W_qkv (bf16, no bias)
            wspec((inner, D)),                                # W_out (bf16)
            wspec((1, D)),                                    # b_out (f32)
            wspec((1, D)), wspec((1, D)),                     # ln2 weight / bias (f32)
            wspec((D, mlp_dim)), wspec((1, mlp_dim)),         # W1 (bf16), b1 (f32)
            wspec((mlp_dim, D)), wspec((1, D)),               # W2 (bf16), b2 (f32)
        ],
        out_specs=pl.BlockSpec((1, N, D), lambda b: (b, 0, 0)),
        compiler_params=pltpu.CompilerParams(
            dimension_semantics=("parallel",),
            vmem_limit_bytes=_vmem_limit_bytes()),
    )


# Chosen once at first call: (transpose_layout, single_buffer_weights).
_CONFIG = None


def transformer_layer(x, p, *, heads, dim_head):
    global _CONFIG
    B, N, D = x.shape
    inner = heads * dim_head
    mlp_dim = p["w1"].shape[1]
    bf16 = jnp.bfloat16

    args = (x,
            p["ln1_w"], p["ln1_b"],
            p["w_qkv"].astype(bf16), p["w_out"].astype(bf16), p["b_out"],
            p["ln2_w"], p["ln2_b"],
            p["w1"].astype(bf16), p["b1"],
            p["w2"].astype(bf16), p["b2"])

    # Preference order: transposed head layout + single-buffered weights; fall back
    # to known-good variants if a feature is unavailable on the installed stack.
    if _CONFIG is not None:
        configs = [_CONFIG]
    else:
        configs = [(True, True), (True, False), (False, True), (False, False)]

    last_err = None
    for cfg in configs:
        try:
            call = _build_layer_call(B, N, D, inner, mlp_dim, heads, dim_head,
                                     x.dtype, *cfg)
            out = jax.block_until_ready(call(*args))
            if _CONFIG is None:
                # Validate the freshly selected config once against a 1-layer reference.
                ref = reference_forward(x, [p], heads=heads, dim_head=dim_head)
                if not bool(jnp.allclose(out, ref, atol=1e-2, rtol=1e-2)):
                    raise FloatingPointError("kernel config produced inaccurate results")
            _CONFIG = cfg
            return out
        except Exception as e:      # noqa: BLE001 - fall back to a safer config
            last_err = e
    raise last_err


def transformer_forward(x, params, *, heads, dim_head):
    # for attn, ff in layers: x = attn(x) + x ; x = ff(x) + x   (fused per layer)
    for layer in params:
        x = transformer_layer(x, layer, heads=heads, dim_head=dim_head)
    return x


# ------------------------------ parameter init --------------------------------

def init_params(key, *, dim, depth, heads, dim_head, mlp_dim, dtype=jnp.float32):
    inner = heads * dim_head
    params = []
    for _ in range(depth):
        keys = jax.random.split(key, 6)
        key = keys[0]
        params.append({
            "ln1_w": jnp.ones((1, dim), dtype),
            "ln1_b": jnp.zeros((1, dim), dtype),
            "w_qkv": jax.random.normal(keys[1], (dim, 3 * inner), dtype) * 0.02,
            "w_out": jax.random.normal(keys[2], (inner, dim), dtype) * 0.02,
            "b_out": jnp.zeros((1, dim), dtype),
            "ln2_w": jnp.ones((1, dim), dtype),
            "ln2_b": jnp.zeros((1, dim), dtype),
            "w1": jax.random.normal(keys[3], (dim, mlp_dim), dtype) * 0.02,
            "b1": jax.random.normal(keys[4], (1, mlp_dim), dtype) * 0.02,
            "w2": jax.random.normal(keys[5], (mlp_dim, dim), dtype) * 0.02,
            "b2": jnp.zeros((1, dim), dtype),
        })
    return params


# --------------------------- pure-JAX reference check --------------------------

def reference_forward(x, params, *, heads, dim_head):
    def ln(v, w, b):
        m = jnp.mean(v, axis=-1, keepdims=True)
        var = jnp.mean((v - m) ** 2, axis=-1, keepdims=True)
        return (v - m) * jax.lax.rsqrt(var + 1e-5) * w[0] + b[0]

    B, N, _ = x.shape
    inner = heads * dim_head
    for p in params:
        h = ln(x, p["ln1_w"], p["ln1_b"])
        qkv = h @ p["w_qkv"]
        q, k, v = jnp.split(qkv, 3, axis=-1)
        split = lambda t: t.reshape(B, N, heads, dim_head).transpose(0, 2, 1, 3)
        q, k, v = split(q), split(k), split(v)
        dots = jnp.einsum("bhqd,bhkd->bhqk", q, k) * (dim_head ** -0.5)
        attn = jax.nn.softmax(dots, axis=-1)
        out = jnp.einsum("bhqk,bhkd->bhqd", attn, v)
        out = out.transpose(0, 2, 1, 3).reshape(B, N, inner)
        x = out @ p["w_out"] + p["b_out"][0] + x
        h2 = ln(x, p["ln2_w"], p["ln2_b"])
        a1 = h2 @ p["w1"] + p["b1"][0]
        g = 0.5 * a1 * (1.0 + jax.lax.erf(a1 * 0.7071067811865475))
        x = g @ p["w2"] + p["b2"][0] + x
    return x


# ----------------------------------- main --------------------------------------

if __name__ == "__main__":
    B, N = 2, 8
    dim, depth, heads, dim_head, mlp_dim = 32, 2, 4, 8, 64

    key = jax.random.PRNGKey(0)
    kx, kp = jax.random.split(key)
    x = jax.random.normal(kx, (B, N, dim), jnp.float32)
    params = init_params(kp, dim=dim, depth=depth, heads=heads,
                         dim_head=dim_head, mlp_dim=mlp_dim)

    out = transformer_forward(x, params, heads=heads, dim_head=dim_head)
    out = jax.block_until_ready(out)
    assert out.shape == (B, N, dim)

    ref = reference_forward(x, params, heads=heads, dim_head=dim_head)
    # bf16 MXU operands + approx reciprocal -> compare at 1e-2 (per review guidance).
    assert jnp.allclose(out, ref, atol=1e-2, rtol=1e-2), \
        float(jnp.max(jnp.abs(out - ref)))
    print("KERNEL_OK")
</pallas_src>

<mosaic_0001>
module attributes {stable_mosaic.version = 11 : i64} {
  func.func @transformer_layer_kernel(%arg0: i32, %arg1: memref<1x8x32xf32, #tpu.memory_space<vmem>>, %arg2: memref<1x32xf32, #tpu.memory_space<vmem>>, %arg3: memref<1x32xf32, #tpu.memory_space<vmem>>, %arg4: memref<32x96xbf16, #tpu.memory_space<vmem>>, %arg5: memref<32x32xbf16, #tpu.memory_space<vmem>>, %arg6: memref<1x32xf32, #tpu.memory_space<vmem>>, %arg7: memref<1x32xf32, #tpu.memory_space<vmem>>, %arg8: memref<1x32xf32, #tpu.memory_space<vmem>>, %arg9: memref<32x64xbf16, #tpu.memory_space<vmem>>, %arg10: memref<1x64xf32, #tpu.memory_space<vmem>>, %arg11: memref<64x32xbf16, #tpu.memory_space<vmem>>, %arg12: memref<1x32xf32, #tpu.memory_space<vmem>>, %arg13: memref<1x8x32xf32, #tpu.memory_space<vmem>>) attributes {dimension_semantics = [#tpu.dimension_semantics<parallel>], iteration_bounds = array<i64: 2>, scalar_prefetch = 0 : i64, scratch_operands = 0 : i64, tpu.core_type = #tpu.core_type<tc>, window_params = [{transform_indices = @transform_0, window_bounds = array<i64: 1, 8, 32>}, {pipeline_mode = #tpu.pipeline_mode<synchronous>, transform_indices = @transform_1, window_bounds = array<i64: 1, 32>}, {pipeline_mode = #tpu.pipeline_mode<synchronous>, transform_indices = @transform_2, window_bounds = array<i64: 1, 32>}, {pipeline_mode = #tpu.pipeline_mode<synchronous>, transform_indices = @transform_3, window_bounds = array<i64: 32, 96>}, {pipeline_mode = #tpu.pipeline_mode<synchronous>, transform_indices = @transform_4, window_bounds = array<i64: 32, 32>}, {pipeline_mode = #tpu.pipeline_mode<synchronous>, transform_indices = @transform_5, window_bounds = array<i64: 1, 32>}, {pipeline_mode = #tpu.pipeline_mode<synchronous>, transform_indices = @transform_6, window_bounds = array<i64: 1, 32>}, {pipeline_mode = #tpu.pipeline_mode<synchronous>, transform_indices = @transform_7, window_bounds = array<i64: 1, 32>}, {pipeline_mode = #tpu.pipeline_mode<synchronous>, transform_indices = @transform_8, window_bounds = array<i64: 32, 64>}, {pipeline_mode = #tpu.pipeline_mode<synchronous>, transform_indices = @transform_9, window_bounds = array<i64: 1, 64>}, {pipeline_mode = #tpu.pipeline_mode<synchronous>, transform_indices = @transform_10, window_bounds = array<i64: 64, 32>}, {pipeline_mode = #tpu.pipeline_mode<synchronous>, transform_indices = @transform_11, window_bounds = array<i64: 1, 32>}, {transform_indices = @transform_12, window_bounds = array<i64: 1, 8, 32>}]} {
    %c0 = arith.constant 0 : index
    %c0_0 = arith.constant 0 : index
    %c0_1 = arith.constant 0 : index
    %0 = vector.load %arg1[%c0, %c0_0, %c0_1] : memref<1x8x32xf32, #tpu.memory_space<vmem>>, vector<1x8x32xf32>
    %1 = vector.shape_cast %0 : vector<1x8x32xf32> to vector<8x32xf32>
    %c0_2 = arith.constant 0 : index
    %c0_3 = arith.constant 0 : index
    %2 = vector.load %arg2[%c0_2, %c0_3] : memref<1x32xf32, #tpu.memory_space<vmem>>, vector<1x32xf32>
    %3 = vector.shape_cast %2 : vector<1x32xf32> to vector<32xf32>
    %c0_4 = arith.constant 0 : index
    %c0_5 = arith.constant 0 : index
    %4 = vector.load %arg3[%c0_4, %c0_5] : memref<1x32xf32, #tpu.memory_space<vmem>>, vector<1x32xf32>
    %5 = vector.shape_cast %4 : vector<1x32xf32> to vector<32xf32>
    %cst = arith.constant dense<0.000000e+00> : vector<8xf32>
    %6 = vector.multi_reduction <add>, %1, %cst [1] : vector<8x32xf32> to vector<8xf32>
    %7 = vector.shape_cast %6 : vector<8xf32> to vector<8x1xf32>
    %cst_6 = arith.constant 3.200000e+01 : f32
    %8 = vector.broadcast %cst_6 : f32 to vector<8x1xf32>
    %9 = arith.divf %7, %8 : vector<8x1xf32>
    %10 = vector.broadcast %9 : vector<8x1xf32> to vector<8x32xf32>
    %11 = arith.subf %1, %10 : vector<8x32xf32>
    %12 = arith.mulf %11, %11 : vector<8x32xf32>
    %cst_7 = arith.constant dense<0.000000e+00> : vector<8xf32>
    %13 = vector.multi_reduction <add>, %12, %cst_7 [1] : vector<8x32xf32> to vector<8xf32>
    %14 = vector.shape_cast %13 : vector<8xf32> to vector<8x1xf32>
    %cst_8 = arith.constant 3.200000e+01 : f32
    %15 = vector.broadcast %cst_8 : f32 to vector<8x1xf32>
    %16 = arith.divf %14, %15 : vector<8x1xf32>
    %17 = vector.broadcast %9 : vector<8x1xf32> to vector<8x32xf32>
    %18 = arith.subf %1, %17 : vector<8x32xf32>
    %cst_9 = arith.constant 9.99999974E-6 : f32
    %19 = vector.broadcast %cst_9 : f32 to vector<8x1xf32>
    %20 = arith.addf %16, %19 : vector<8x1xf32>
    %21 = math.rsqrt %20 : vector<8x1xf32>
    %22 = vector.broadcast %21 : vector<8x1xf32> to vector<8x32xf32>
    %23 = arith.mulf %18, %22 : vector<8x32xf32>
    %24 = vector.shape_cast %3 : vector<32xf32> to vector<1x32xf32>
    %25 = vector.broadcast %24 : vector<1x32xf32> to vector<8x32xf32>
    %26 = arith.mulf %23, %25 : vector<8x32xf32>
    %27 = vector.shape_cast %5 : vector<32xf32> to vector<1x32xf32>
    %28 = vector.broadcast %27 : vector<1x32xf32> to vector<8x32xf32>
    %29 = arith.addf %26, %28 : vector<8x32xf32>
    %30 = arith.truncf %29 : vector<8x32xf32> to vector<8x32xbf16>
    %c0_10 = arith.constant 0 : index
    %c0_11 = arith.constant 0 : index
    %31 = vector.load %arg4[%c0_10, %c0_11] : memref<32x96xbf16, #tpu.memory_space<vmem>>, vector<32x96xbf16>
    %cst_12 = arith.constant dense<0.000000e+00> : vector<8x96xf32>
    %32 = tpu.matmul %30, %31, %cst_12 {dimension_numbers = #tpu.dot_dimension_numbers<[1], [0], [0], [1], [0, 0, 1, 1], [], []>} : vector<8x32xbf16>, vector<32x96xbf16>, vector<8x96xf32> -> vector<8x96xf32>
    %33 = vector.shape_cast %32 : vector<8x96xf32> to vector<8x12x8xf32>
    %34 = tpu.transpose %33, [1, 0, 2] : vector<8x12x8xf32> -> vector<12x8x8xf32>
    %35 = arith.truncf %34 : vector<12x8x8xf32> to vector<12x8x8xbf16>
    %36 = vector.extract_strided_slice %35 {offsets = [0, 0, 0], sizes = [4, 8, 8], strides = [1, 1, 1]} : vector<12x8x8xbf16> to vector<4x8x8xbf16>
    %cst_13 = arith.constant 3.535160e-01 : bf16
    %37 = vector.broadcast %cst_13 : bf16 to vector<4x8x8xbf16>
    %38 = arith.mulf %36, %37 : vector<4x8x8xbf16>
    %39 = vector.extract_strided_slice %35 {offsets = [4, 0, 0], sizes = [4, 8, 8], strides = [1, 1, 1]} : vector<12x8x8xbf16> to vector<4x8x8xbf16>
    %40 = vector.extract_strided_slice %35 {offsets = [8, 0, 0], sizes = [4, 8, 8], strides = [1, 1, 1]} : vector<12x8x8xbf16> to vector<4x8x8xbf16>
    "tpu.trace_start"() <{level = 10 : i32, message = "hqd,hkd->hqk"}> : () -> ()
    %cst_14 = arith.constant dense<0.000000e+00> : vector<4x8x8xf32>
    %41 = tpu.matmul %38, %39, %cst_14 {dimension_numbers = #tpu.dot_dimension_numbers<[2], [2], [1], [1], [0, 0, 0, 1, 1, 1], [0], [0]>} : vector<4x8x8xbf16>, vector<4x8x8xbf16>, vector<4x8x8xf32> -> vector<4x8x8xf32>
    "tpu.trace_stop"() : () -> ()
    %cst_15 = arith.constant dense<0xFF800000> : vector<4x8xf32>
    %42 = vector.multi_reduction <maximumf>, %41, %cst_15 [2] : vector<4x8x8xf32> to vector<4x8xf32>
    %43 = vector.shape_cast %42 : vector<4x8xf32> to vector<4x8x1xf32>
    %44 = vector.broadcast %43 : vector<4x8x1xf32> to vector<4x8x8xf32>
    %45 = arith.subf %41, %44 : vector<4x8x8xf32>
    %46 = math.exp %45 : vector<4x8x8xf32>
    %cst_16 = arith.constant dense<0.000000e+00> : vector<4x8xf32>
    %47 = vector.multi_reduction <add>, %46, %cst_16 [2] : vector<4x8x8xf32> to vector<4x8xf32>
    %48 = vector.shape_cast %47 : vector<4x8xf32> to vector<4x8x1xf32>
    %49 = tpu.reciprocal %48 {approx = true} : vector<4x8x1xf32> -> vector<4x8x1xf32>
    %50 = vector.broadcast %49 : vector<4x8x1xf32> to vector<4x8x8xf32>
    %51 = arith.mulf %46, %50 : vector<4x8x8xf32>
    %52 = arith.truncf %51 : vector<4x8x8xf32> to vector<4x8x8xbf16>
    "tpu.trace_start"() <{level = 10 : i32, message = "hqk,hkd->hqd"}> : () -> ()
    %cst_17 = arith.constant dense<0.000000e+00> : vector<4x8x8xf32>
    %53 = tpu.matmul %52, %40, %cst_17 {dimension_numbers = #tpu.dot_dimension_numbers<[2], [1], [1], [2], [0, 0, 0, 1, 1, 2], [0], [0]>} : vector<4x8x8xbf16>, vector<4x8x8xbf16>, vector<4x8x8xf32> -> vector<4x8x8xf32>
    "tpu.trace_stop"() : () -> ()
    %54 = tpu.transpose %53, [1, 0, 2] : vector<4x8x8xf32> -> vector<8x4x8xf32>
    %55 = vector.shape_cast %54 : vector<8x4x8xf32> to vector<8x32xf32>
    %56 = arith.truncf %55 : vector<8x32xf32> to vector<8x32xbf16>
    %c0_18 = arith.constant 0 : index
    %c0_19 = arith.constant 0 : index
    %57 = vector.load %arg5[%c0_18, %c0_19] : memref<32x32xbf16, #tpu.memory_space<vmem>>, vector<32x32xbf16>
    %cst_20 = arith.constant dense<0.000000e+00> : vector<8x32xf32>
    %58 = tpu.matmul %56, %57, %cst_20 {dimension_numbers = #tpu.dot_dimension_numbers<[1], [0], [0], [1], [0, 0, 1, 1], [], []>} : vector<8x32xbf16>, vector<32x32xbf16>, vector<8x32xf32> -> vector<8x32xf32>
    %c0_21 = arith.constant 0 : index
    %c0_22 = arith.constant 0 : index
    %59 = vector.load %arg6[%c0_21, %c0_22] : memref<1x32xf32, #tpu.memory_space<vmem>>, vector<1x32xf32>
    %60 = vector.shape_cast %59 : vector<1x32xf32> to vector<32xf32>
    %61 = vector.shape_cast %60 : vector<32xf32> to vector<1x32xf32>
    %62 = vector.broadcast %61 : vector<1x32xf32> to vector<8x32xf32>
    %63 = arith.addf %58, %62 : vector<8x32xf32>
    %64 = arith.addf %63, %1 : vector<8x32xf32>
    %c0_23 = arith.constant 0 : index
    %c0_24 = arith.constant 0 : index
    %65 = vector.load %arg7[%c0_23, %c0_24] : memref<1x32xf32, #tpu.memory_space<vmem>>, vector<1x32xf32>
    %66 = vector.shape_cast %65 : vector<1x32xf32> to vector<32xf32>
    %c0_25 = arith.constant 0 : index
    %c0_26 = arith.constant 0 : index
    %67 = vector.load %arg8[%c0_25, %c0_26] : memref<1x32xf32, #tpu.memory_space<vmem>>, vector<1x32xf32>
    %68 = vector.shape_cast %67 : vector<1x32xf32> to vector<32xf32>
    %cst_27 = arith.constant dense<0.000000e+00> : vector<8xf32>
    %69 = vector.multi_reduction <add>, %64, %cst_27 [1] : vector<8x32xf32> to vector<8xf32>
    %70 = vector.shape_cast %69 : vector<8xf32> to vector<8x1xf32>
    %cst_28 = arith.constant 3.200000e+01 : f32
    %71 = vector.broadcast %cst_28 : f32 to vector<8x1xf32>
    %72 = arith.divf %70, %71 : vector<8x1xf32>
    %73 = vector.broadcast %72 : vector<8x1xf32> to vector<8x32xf32>
    %74 = arith.subf %64, %73 : vector<8x32xf32>
    %75 = arith.mulf %74, %74 : vector<8x32xf32>
    %cst_29 = arith.constant dense<0.000000e+00> : vector<8xf32>
    %76 = vector.multi_reduction <add>, %75, %cst_29 [1] : vector<8x32xf32> to vector<8xf32>
    %77 = vector.shape_cast %76 : vector<8xf32> to vector<8x1xf32>
    %cst_30 = arith.constant 3.200000e+01 : f32
    %78 = vector.broadcast %cst_30 : f32 to vector<8x1xf32>
    %79 = arith.divf %77, %78 : vector<8x1xf32>
    %80 = vector.broadcast %72 : vector<8x1xf32> to vector<8x32xf32>
    %81 = arith.subf %64, %80 : vector<8x32xf32>
    %cst_31 = arith.constant 9.99999974E-6 : f32
    %82 = vector.broadcast %cst_31 : f32 to vector<8x1xf32>
    %83 = arith.addf %79, %82 : vector<8x1xf32>
    %84 = math.rsqrt %83 : vector<8x1xf32>
    %85 = vector.broadcast %84 : vector<8x1xf32> to vector<8x32xf32>
    %86 = arith.mulf %81, %85 : vector<8x32xf32>
    %87 = vector.shape_cast %66 : vector<32xf32> to vector<1x32xf32>
    %88 = vector.broadcast %87 : vector<1x32xf32> to vector<8x32xf32>
    %89 = arith.mulf %86, %88 : vector<8x32xf32>
    %90 = vector.shape_cast %68 : vector<32xf32> to vector<1x32xf32>
    %91 = vector.broadcast %90 : vector<1x32xf32> to vector<8x32xf32>
    %92 = arith.addf %89, %91 : vector<8x32xf32>
    %93 = arith.truncf %92 : vector<8x32xf32> to vector<8x32xbf16>
    %c0_32 = arith.constant 0 : index
    %c0_33 = arith.constant 0 : index
    %94 = vector.load %arg9[%c0_32, %c0_33] : memref<32x64xbf16, #tpu.memory_space<vmem>>, vector<32x64xbf16>
    %cst_34 = arith.constant dense<0.000000e+00> : vector<8x64xf32>
    %95 = tpu.matmul %93, %94, %cst_34 {dimension_numbers = #tpu.dot_dimension_numbers<[1], [0], [0], [1], [0, 0, 1, 1], [], []>} : vector<8x32xbf16>, vector<32x64xbf16>, vector<8x64xf32> -> vector<8x64xf32>
    %c0_35 = arith.constant 0 : index
    %c0_36 = arith.constant 0 : index
    %96 = vector.load %arg10[%c0_35, %c0_36] : memref<1x64xf32, #tpu.memory_space<vmem>>, vector<1x64xf32>
    %97 = vector.shape_cast %96 : vector<1x64xf32> to vector<64xf32>
    %98 = vector.shape_cast %97 : vector<64xf32> to vector<1x64xf32>
    %99 = vector.broadcast %98 : vector<1x64xf32> to vector<8x64xf32>
    %100 = arith.addf %95, %99 : vector<8x64xf32>
    %cst_37 = arith.constant 5.000000e-01 : f32
    %101 = vector.broadcast %cst_37 : f32 to vector<8x64xf32>
    %102 = arith.mulf %101, %100 : vector<8x64xf32>
    %cst_38 = arith.constant 0.707106769 : f32
    %103 = vector.broadcast %cst_38 : f32 to vector<8x64xf32>
    %104 = arith.mulf %100, %103 : vector<8x64xf32>
    %105 = math.erf %104 : vector<8x64xf32>
    %cst_39 = arith.constant 1.000000e+00 : f32
    %106 = vector.broadcast %cst_39 : f32 to vector<8x64xf32>
    %107 = arith.addf %106, %105 : vector<8x64xf32>
    %108 = arith.mulf %102, %107 : vector<8x64xf32>
    %109 = arith.truncf %108 : vector<8x64xf32> to vector<8x64xbf16>
    %c0_40 = arith.constant 0 : index
    %c0_41 = arith.constant 0 : index
    %110 = vector.load %arg11[%c0_40, %c0_41] : memref<64x32xbf16, #tpu.memory_space<vmem>>, vector<64x32xbf16>
    %cst_42 = arith.constant dense<0.000000e+00> : vector<8x32xf32>
    %111 = tpu.matmul %109, %110, %cst_42 {dimension_numbers = #tpu.dot_dimension_numbers<[1], [0], [0], [1], [0, 0, 1, 1], [], []>} : vector<8x64xbf16>, vector<64x32xbf16>, vector<8x32xf32> -> vector<8x32xf32>
    %c0_43 = arith.constant 0 : index
    %c0_44 = arith.constant 0 : index
    %112 = vector.load %arg12[%c0_43, %c0_44] : memref<1x32xf32, #tpu.memory_space<vmem>>, vector<1x32xf32>
    %113 = vector.shape_cast %112 : vector<1x32xf32> to vector<32xf32>
    %114 = vector.shape_cast %113 : vector<32xf32> to vector<1x32xf32>
    %115 = vector.broadcast %114 : vector<1x32xf32> to vector<8x32xf32>
    %116 = arith.addf %111, %115 : vector<8x32xf32>
    %117 = arith.addf %116, %64 : vector<8x32xf32>
    %c0_45 = arith.constant 0 : index
    %c0_46 = arith.constant 0 : index
    %c0_47 = arith.constant 0 : index
    %118 = vector.load %arg13[%c0_45, %c0_46, %c0_47] : memref<1x8x32xf32, #tpu.memory_space<vmem>>, vector<1x8x32xf32>
    %119 = vector.shape_cast %118 : vector<1x8x32xf32> to vector<8x32xf32>
    %120 = vector.shape_cast %117 : vector<8x32xf32> to vector<1x8x32xf32>
    tpu.vector_store %arg13[%c0_45, %c0_46, %c0_47], %120 {strides = array<i32>} : memref<1x8x32xf32, #tpu.memory_space<vmem>>, vector<1x8x32xf32>,
    return
  }
  func.func @transform_0(%arg0: i32) -> (i32, i32, i32) {
    %c0_i32 = arith.constant 0 : i32
    %c0_i32_0 = arith.constant 0 : i32
    %c0_i32_1 = arith.constant 0 : i32
    return %arg0, %c0_i32, %c0_i32_0 : i32, i32, i32
  }
  func.func @transform_1(%arg0: i32) -> (i32, i32) {
    %c0_i32 = arith.constant 0 : i32
    %c0_i32_0 = arith.constant 0 : i32
    %c0_i32_1 = arith.constant 0 : i32
    return %c0_i32, %c0_i32_0 : i32, i32
  }
  func.func @transform_2(%arg0: i32) -> (i32, i32) {
    %c0_i32 = arith.constant 0 : i32
    %c0_i32_0 = arith.constant 0 : i32
    %c0_i32_1 = arith.constant 0 : i32
    return %c0_i32, %c0_i32_0 : i32, i32
  }
  func.func @transform_3(%arg0: i32) -> (i32, i32) {
    %c0_i32 = arith.constant 0 : i32
    %c0_i32_0 = arith.constant 0 : i32
    %c0_i32_1 = arith.constant 0 : i32
    return %c0_i32, %c0_i32_0 : i32, i32
  }
  func.func @transform_4(%arg0: i32) -> (i32, i32) {
    %c0_i32 = arith.constant 0 : i32
    %c0_i32_0 = arith.constant 0 : i32
    %c0_i32_1 = arith.constant 0 : i32
    return %c0_i32, %c0_i32_0 : i32, i32
  }
  func.func @transform_5(%arg0: i32) -> (i32, i32) {
    %c0_i32 = arith.constant 0 : i32
    %c0_i32_0 = arith.constant 0 : i32
    %c0_i32_1 = arith.constant 0 : i32
    return %c0_i32, %c0_i32_0 : i32, i32
  }
  func.func @transform_6(%arg0: i32) -> (i32, i32) {
    %c0_i32 = arith.constant 0 : i32
    %c0_i32_0 = arith.constant 0 : i32
    %c0_i32_1 = arith.constant 0 : i32
    return %c0_i32, %c0_i32_0 : i32, i32
  }
  func.func @transform_7(%arg0: i32) -> (i32, i32) {
    %c0_i32 = arith.constant 0 : i32
    %c0_i32_0 = arith.constant 0 : i32
    %c0_i32_1 = arith.constant 0 : i32
    return %c0_i32, %c0_i32_0 : i32, i32
  }
  func.func @transform_8(%arg0: i32) -> (i32, i32) {
    %c0_i32 = arith.constant 0 : i32
    %c0_i32_0 = arith.constant 0 : i32
    %c0_i32_1 = arith.constant 0 : i32
    return %c0_i32, %c0_i32_0 : i32, i32
  }
  func.func @transform_9(%arg0: i32) -> (i32, i32) {
    %c0_i32 = arith.constant 0 : i32
    %c0_i32_0 = arith.constant 0 : i32
    %c0_i32_1 = arith.constant 0 : i32
    return %c0_i32, %c0_i32_0 : i32, i32
  }
  func.func @transform_10(%arg0: i32) -> (i32, i32) {
    %c0_i32 = arith.constant 0 : i32
    %c0_i32_0 = arith.constant 0 : i32
    %c0_i32_1 = arith.constant 0 : i32
    return %c0_i32, %c0_i32_0 : i32, i32
  }
  func.func @transform_11(%arg0: i32) -> (i32, i32) {
    %c0_i32 = arith.constant 0 : i32
    %c0_i32_0 = arith.constant 0 : i32
    %c0_i32_1 = arith.constant 0 : i32
    return %c0_i32, %c0_i32_0 : i32, i32
  }
  func.func @transform_12(%arg0: i32) -> (i32, i32, i32) {
    %c0_i32 = arith.constant 0 : i32
    %c0_i32_0 = arith.constant 0 : i32
    %c0_i32_1 = arith.constant 0 : i32
    return %arg0, %c0_i32, %c0_i32_0 : i32, i32, i32
  }
}

module attributes {stable_mosaic.version = 11 : i64} {
  func.func @transformer_layer_kernel(%arg0: i32, %arg1: memref<1x8x32xf32, #tpu.memory_space<vmem>>, %arg2: memref<1x32xf32, #tpu.memory_space<vmem>>, %arg3: memref<1x32xf32, #tpu.memory_space<vmem>>, %arg4: memref<32x96xbf16, #tpu.memory_space<vmem>>, %arg5: memref<32x32xbf16, #tpu.memory_space<vmem>>, %arg6: memref<1x32xf32, #tpu.memory_space<vmem>>, %arg7: memref<1x32xf32, #tpu.memory_space<vmem>>, %arg8: memref<1x32xf32, #tpu.memory_space<vmem>>, %arg9: memref<32x64xbf16, #tpu.memory_space<vmem>>, %arg10: memref<1x64xf32, #tpu.memory_space<vmem>>, %arg11: memref<64x32xbf16, #tpu.memory_space<vmem>>, %arg12: memref<1x32xf32, #tpu.memory_space<vmem>>, %arg13: memref<1x8x32xf32, #tpu.memory_space<vmem>>) attributes {dimension_semantics = [#tpu.dimension_semantics<parallel>], iteration_bounds = array<i64: 2>, scalar_prefetch = 0 : i64, scratch_operands = 0 : i64, tpu.core_type = #tpu.core_type<tc>, window_params = [{transform_indices = @transform_0, window_bounds = array<i64: 1, 8, 32>}, {pipeline_mode = #tpu.pipeline_mode<synchronous>, transform_indices = @transform_1, window_bounds = array<i64: 1, 32>}, {pipeline_mode = #tpu.pipeline_mode<synchronous>, transform_indices = @transform_2, window_bounds = array<i64: 1, 32>}, {pipeline_mode = #tpu.pipeline_mode<synchronous>, transform_indices = @transform_3, window_bounds = array<i64: 32, 96>}, {pipeline_mode = #tpu.pipeline_mode<synchronous>, transform_indices = @transform_4, window_bounds = array<i64: 32, 32>}, {pipeline_mode = #tpu.pipeline_mode<synchronous>, transform_indices = @transform_5, window_bounds = array<i64: 1, 32>}, {pipeline_mode = #tpu.pipeline_mode<synchronous>, transform_indices = @transform_6, window_bounds = array<i64: 1, 32>}, {pipeline_mode = #tpu.pipeline_mode<synchronous>, transform_indices = @transform_7, window_bounds = array<i64: 1, 32>}, {pipeline_mode = #tpu.pipeline_mode<synchronous>, transform_indices = @transform_8, window_bounds = array<i64: 32, 64>}, {pipeline_mode = #tpu.pipeline_mode<synchronous>, transform_indices = @transform_9, window_bounds = array<i64: 1, 64>}, {pipeline_mode = #tpu.pipeline_mode<synchronous>, transform_indices = @transform_10, window_bounds = array<i64: 64, 32>}, {pipeline_mode = #tpu.pipeline_mode<synchronous>, transform_indices = @transform_11, window_bounds = array<i64: 1, 32>}, {transform_indices = @transform_12, window_bounds = array<i64: 1, 8, 32>}]} {
    %c0 = arith.constant 0 : index
    %c0_0 = arith.constant 0 : index
    %c0_1 = arith.constant 0 : index
    %0 = vector.load %arg1[%c0, %c0_0, %c0_1] : memref<1x8x32xf32, #tpu.memory_space<vmem>>, vector<1x8x32xf32>
    %1 = vector.shape_cast %0 : vector<1x8x32xf32> to vector<8x32xf32>
    %c0_2 = arith.constant 0 : index
    %c0_3 = arith.constant 0 : index
    %2 = vector.load %arg2[%c0_2, %c0_3] : memref<1x32xf32, #tpu.memory_space<vmem>>, vector<1x32xf32>
    %3 = vector.shape_cast %2 : vector<1x32xf32> to vector<32xf32>
    %c0_4 = arith.constant 0 : index
    %c0_5 = arith.constant 0 : index
    %4 = vector.load %arg3[%c0_4, %c0_5] : memref<1x32xf32, #tpu.memory_space<vmem>>, vector<1x32xf32>
    %5 = vector.shape_cast %4 : vector<1x32xf32> to vector<32xf32>
    %cst = arith.constant dense<0.000000e+00> : vector<8xf32>
    %6 = vector.multi_reduction <add>, %1, %cst [1] : vector<8x32xf32> to vector<8xf32>
    %7 = vector.shape_cast %6 : vector<8xf32> to vector<8x1xf32>
    %cst_6 = arith.constant 3.200000e+01 : f32
    %8 = vector.broadcast %cst_6 : f32 to vector<8x1xf32>
    %9 = arith.divf %7, %8 : vector<8x1xf32>
    %10 = vector.broadcast %9 : vector<8x1xf32> to vector<8x32xf32>
    %11 = arith.subf %1, %10 : vector<8x32xf32>
    %12 = arith.mulf %11, %11 : vector<8x32xf32>
    %cst_7 = arith.constant dense<0.000000e+00> : vector<8xf32>
    %13 = vector.multi_reduction <add>, %12, %cst_7 [1] : vector<8x32xf32> to vector<8xf32>
    %14 = vector.shape_cast %13 : vector<8xf32> to vector<8x1xf32>
    %cst_8 = arith.constant 3.200000e+01 : f32
    %15 = vector.broadcast %cst_8 : f32 to vector<8x1xf32>
    %16 = arith.divf %14, %15 : vector<8x1xf32>
    %17 = vector.broadcast %9 : vector<8x1xf32> to vector<8x32xf32>
    %18 = arith.subf %1, %17 : vector<8x32xf32>
    %cst_9 = arith.constant 9.99999974E-6 : f32
    %19 = vector.broadcast %cst_9 : f32 to vector<8x1xf32>
    %20 = arith.addf %16, %19 : vector<8x1xf32>
    %21 = math.rsqrt %20 : vector<8x1xf32>
    %22 = vector.broadcast %21 : vector<8x1xf32> to vector<8x32xf32>
    %23 = arith.mulf %18, %22 : vector<8x32xf32>
    %24 = vector.shape_cast %3 : vector<32xf32> to vector<1x32xf32>
    %25 = vector.broadcast %24 : vector<1x32xf32> to vector<8x32xf32>
    %26 = arith.mulf %23, %25 : vector<8x32xf32>
    %27 = vector.shape_cast %5 : vector<32xf32> to vector<1x32xf32>
    %28 = vector.broadcast %27 : vector<1x32xf32> to vector<8x32xf32>
    %29 = arith.addf %26, %28 : vector<8x32xf32>
    %30 = arith.truncf %29 : vector<8x32xf32> to vector<8x32xbf16>
    %c0_10 = arith.constant 0 : index
    %c0_11 = arith.constant 0 : index
    %31 = vector.load %arg4[%c0_10, %c0_11] : memref<32x96xbf16, #tpu.memory_space<vmem>>, vector<32x96xbf16>
    %cst_12 = arith.constant dense<0.000000e+00> : vector<8x96xf32>
    %32 = tpu.matmul %30, %31, %cst_12 {dimension_numbers = #tpu.dot_dimension_numbers<[1], [0], [0], [1], [0, 0, 1, 1], [], []>} : vector<8x32xbf16>, vector<32x96xbf16>, vector<8x96xf32> -> vector<8x96xf32>
    %33 = vector.shape_cast %32 : vector<8x96xf32> to vector<8x12x8xf32>
    %34 = tpu.transpose %33, [1, 0, 2] : vector<8x12x8xf32> -> vector<12x8x8xf32>
    %35 = arith.truncf %34 : vector<12x8x8xf32> to vector<12x8x8xbf16>
    %36 = vector.extract_strided_slice %35 {offsets = [0, 0, 0], sizes = [4, 8, 8], strides = [1, 1, 1]} : vector<12x8x8xbf16> to vector<4x8x8xbf16>
    %cst_13 = arith.constant 3.535160e-01 : bf16
    %37 = vector.broadcast %cst_13 : bf16 to vector<4x8x8xbf16>
    %38 = arith.mulf %36, %37 : vector<4x8x8xbf16>
    %39 = vector.extract_strided_slice %35 {offsets = [4, 0, 0], sizes = [4, 8, 8], strides = [1, 1, 1]} : vector<12x8x8xbf16> to vector<4x8x8xbf16>
    %40 = vector.extract_strided_slice %35 {offsets = [8, 0, 0], sizes = [4, 8, 8], strides = [1, 1, 1]} : vector<12x8x8xbf16> to vector<4x8x8xbf16>
    "tpu.trace_start"() <{level = 10 : i32, message = "hqd,hkd->hqk"}> : () -> ()
    %cst_14 = arith.constant dense<0.000000e+00> : vector<4x8x8xf32>
    %41 = tpu.matmul %38, %39, %cst_14 {dimension_numbers = #tpu.dot_dimension_numbers<[2], [2], [1], [1], [0, 0, 0, 1, 1, 1], [0], [0]>} : vector<4x8x8xbf16>, vector<4x8x8xbf16>, vector<4x8x8xf32> -> vector<4x8x8xf32>
    "tpu.trace_stop"() : () -> ()
    %cst_15 = arith.constant dense<0xFF800000> : vector<4x8xf32>
    %42 = vector.multi_reduction <maximumf>, %41, %cst_15 [2] : vector<4x8x8xf32> to vector<4x8xf32>
    %43 = vector.shape_cast %42 : vector<4x8xf32> to vector<4x8x1xf32>
    %44 = vector.broadcast %43 : vector<4x8x1xf32> to vector<4x8x8xf32>
    %45 = arith.subf %41, %44 : vector<4x8x8xf32>
    %46 = math.exp %45 : vector<4x8x8xf32>
    %cst_16 = arith.constant dense<0.000000e+00> : vector<4x8xf32>
    %47 = vector.multi_reduction <add>, %46, %cst_16 [2] : vector<4x8x8xf32> to vector<4x8xf32>
    %48 = vector.shape_cast %47 : vector<4x8xf32> to vector<4x8x1xf32>
    %49 = tpu.reciprocal %48 {approx = true} : vector<4x8x1xf32> -> vector<4x8x1xf32>
    %50 = vector.broadcast %49 : vector<4x8x1xf32> to vector<4x8x8xf32>
    %51 = arith.mulf %46, %50 : vector<4x8x8xf32>
    %52 = arith.truncf %51 : vector<4x8x8xf32> to vector<4x8x8xbf16>
    "tpu.trace_start"() <{level = 10 : i32, message = "hqk,hkd->hqd"}> : () -> ()
    %cst_17 = arith.constant dense<0.000000e+00> : vector<4x8x8xf32>
    %53 = tpu.matmul %52, %40, %cst_17 {dimension_numbers = #tpu.dot_dimension_numbers<[2], [1], [1], [2], [0, 0, 0, 1, 1, 2], [0], [0]>} : vector<4x8x8xbf16>, vector<4x8x8xbf16>, vector<4x8x8xf32> -> vector<4x8x8xf32>
    "tpu.trace_stop"() : () -> ()
    %54 = tpu.transpose %53, [1, 0, 2] : vector<4x8x8xf32> -> vector<8x4x8xf32>
    %55 = vector.shape_cast %54 : vector<8x4x8xf32> to vector<8x32xf32>
    %56 = arith.truncf %55 : vector<8x32xf32> to vector<8x32xbf16>
    %c0_18 = arith.constant 0 : index
    %c0_19 = arith.constant 0 : index
    %57 = vector.load %arg5[%c0_18, %c0_19] : memref<32x32xbf16, #tpu.memory_space<vmem>>, vector<32x32xbf16>
    %cst_20 = arith.constant dense<0.000000e+00> : vector<8x32xf32>
    %58 = tpu.matmul %56, %57, %cst_20 {dimension_numbers = #tpu.dot_dimension_numbers<[1], [0], [0], [1], [0, 0, 1, 1], [], []>} : vector<8x32xbf16>, vector<32x32xbf16>, vector<8x32xf32> -> vector<8x32xf32>
    %c0_21 = arith.constant 0 : index
    %c0_22 = arith.constant 0 : index
    %59 = vector.load %arg6[%c0_21, %c0_22] : memref<1x32xf32, #tpu.memory_space<vmem>>, vector<1x32xf32>
    %60 = vector.shape_cast %59 : vector<1x32xf32> to vector<32xf32>
    %61 = vector.shape_cast %60 : vector<32xf32> to vector<1x32xf32>
    %62 = vector.broadcast %61 : vector<1x32xf32> to vector<8x32xf32>
    %63 = arith.addf %58, %62 : vector<8x32xf32>
    %64 = arith.addf %63, %1 : vector<8x32xf32>
    %c0_23 = arith.constant 0 : index
    %c0_24 = arith.constant 0 : index
    %65 = vector.load %arg7[%c0_23, %c0_24] : memref<1x32xf32, #tpu.memory_space<vmem>>, vector<1x32xf32>
    %66 = vector.shape_cast %65 : vector<1x32xf32> to vector<32xf32>
    %c0_25 = arith.constant 0 : index
    %c0_26 = arith.constant 0 : index
    %67 = vector.load %arg8[%c0_25, %c0_26] : memref<1x32xf32, #tpu.memory_space<vmem>>, vector<1x32xf32>
    %68 = vector.shape_cast %67 : vector<1x32xf32> to vector<32xf32>
    %cst_27 = arith.constant dense<0.000000e+00> : vector<8xf32>
    %69 = vector.multi_reduction <add>, %64, %cst_27 [1] : vector<8x32xf32> to vector<8xf32>
    %70 = vector.shape_cast %69 : vector<8xf32> to vector<8x1xf32>
    %cst_28 = arith.constant 3.200000e+01 : f32
    %71 = vector.broadcast %cst_28 : f32 to vector<8x1xf32>
    %72 = arith.divf %70, %71 : vector<8x1xf32>
    %73 = vector.broadcast %72 : vector<8x1xf32> to vector<8x32xf32>
    %74 = arith.subf %64, %73 : vector<8x32xf32>
    %75 = arith.mulf %74, %74 : vector<8x32xf32>
    %cst_29 = arith.constant dense<0.000000e+00> : vector<8xf32>
    %76 = vector.multi_reduction <add>, %75, %cst_29 [1] : vector<8x32xf32> to vector<8xf32>
    %77 = vector.shape_cast %76 : vector<8xf32> to vector<8x1xf32>
    %cst_30 = arith.constant 3.200000e+01 : f32
    %78 = vector.broadcast %cst_30 : f32 to vector<8x1xf32>
    %79 = arith.divf %77, %78 : vector<8x1xf32>
    %80 = vector.broadcast %72 : vector<8x1xf32> to vector<8x32xf32>
    %81 = arith.subf %64, %80 : vector<8x32xf32>
    %cst_31 = arith.constant 9.99999974E-6 : f32
    %82 = vector.broadcast %cst_31 : f32 to vector<8x1xf32>
    %83 = arith.addf %79, %82 : vector<8x1xf32>
    %84 = math.rsqrt %83 : vector<8x1xf32>
    %85 = vector.broadcast %84 : vector<8x1xf32> to vector<8x32xf32>
    %86 = arith.mulf %81, %85 : vector<8x32xf32>
    %87 = vector.shape_cast %66 : vector<32xf32> to vector<1x32xf32>
    %88 = vector.broadcast %87 : vector<1x32xf32> to vector<8x32xf32>
    %89 = arith.mulf %86, %88 : vector<8x32xf32>
    %90 = vector.shape_cast %68 : vector<32xf32> to vector<1x32xf32>
    %91 = vector.broadcast %90 : vector<1x32xf32> to vector<8x32xf32>
    %92 = arith.addf %89, %91 : vector<8x32xf32>
    %93 = arith.truncf %92 : vector<8x32xf32> to vector<8x32xbf16>
    %c0_32 = arith.constant 0 : index
    %c0_33 = arith.constant 0 : index
    %94 = vector.load %arg9[%c0_32, %c0_33] : memref<32x64xbf16, #tpu.memory_space<vmem>>, vector<32x64xbf16>
    %cst_34 = arith.constant dense<0.000000e+00> : vector<8x64xf32>
    %95 = tpu.matmul %93, %94, %cst_34 {dimension_numbers = #tpu.dot_dimension_numbers<[1], [0], [0], [1], [0, 0, 1, 1], [], []>} : vector<8x32xbf16>, vector<32x64xbf16>, vector<8x64xf32> -> vector<8x64xf32>
    %c0_35 = arith.constant 0 : index
    %c0_36 = arith.constant 0 : index
    %96 = vector.load %arg10[%c0_35, %c0_36] : memref<1x64xf32, #tpu.memory_space<vmem>>, vector<1x64xf32>
    %97 = vector.shape_cast %96 : vector<1x64xf32> to vector<64xf32>
    %98 = vector.shape_cast %97 : vector<64xf32> to vector<1x64xf32>
    %99 = vector.broadcast %98 : vector<1x64xf32> to vector<8x64xf32>
    %100 = arith.addf %95, %99 : vector<8x64xf32>
    %cst_37 = arith.constant 5.000000e-01 : f32
    %101 = vector.broadcast %cst_37 : f32 to vector<8x64xf32>
    %102 = arith.mulf %101, %100 : vector<8x64xf32>
    %cst_38 = arith.constant 0.707106769 : f32
    %103 = vector.broadcast %cst_38 : f32 to vector<8x64xf32>
    %104 = arith.mulf %100, %103 : vector<8x64xf32>
    %105 = math.erf %104 : vector<8x64xf32>
    %cst_39 = arith.constant 1.000000e+00 : f32
    %106 = vector.broadcast %cst_39 : f32 to vector<8x64xf32>
    %107 = arith.addf %106, %105 : vector<8x64xf32>
    %108 = arith.mulf %102, %107 : vector<8x64xf32>
    %109 = arith.truncf %108 : vector<8x64xf32> to vector<8x64xbf16>
    %c0_40 = arith.constant 0 : index
    %c0_41 = arith.constant 0 : index
    %110 = vector.load %arg11[%c0_40, %c0_41] : memref<64x32xbf16, #tpu.memory_space<vmem>>, vector<64x32xbf16>
    %cst_42 = arith.constant dense<0.000000e+00> : vector<8x32xf32>
    %111 = tpu.matmul %109, %110, %cst_42 {dimension_numbers = #tpu.dot_dimension_numbers<[1], [0], [0], [1], [0, 0, 1, 1], [], []>} : vector<8x64xbf16>, vector<64x32xbf16>, vector<8x32xf32> -> vector<8x32xf32>
    %c0_43 = arith.constant 0 : index
    %c0_44 = arith.constant 0 : index
    %112 = vector.load %arg12[%c0_43, %c0_44] : memref<1x32xf32, #tpu.memory_space<vmem>>, vector<1x32xf32>
    %113 = vector.shape_cast %112 : vector<1x32xf32> to vector<32xf32>
    %114 = vector.shape_cast %113 : vector<32xf32> to vector<1x32xf32>
    %115 = vector.broadcast %114 : vector<1x32xf32> to vector<8x32xf32>
    %116 = arith.addf %111, %115 : vector<8x32xf32>
    %117 = arith.addf %116, %64 : vector<8x32xf32>
    %c0_45 = arith.constant 0 : index
    %c0_46 = arith.constant 0 : index
    %c0_47 = arith.constant 0 : index
    %118 = vector.load %arg13[%c0_45, %c0_46, %c0_47] : memref<1x8x32xf32, #tpu.memory_space<vmem>>, vector<1x8x32xf32>
    %119 = vector.shape_cast %118 : vector<1x8x32xf32> to vector<8x32xf32>
    %120 = vector.shape_cast %117 : vector<8x32xf32> to vector<1x8x32xf32>
    tpu.vector_store %arg13[%c0_45, %c0_46, %c0_47], %120 {strides = array<i32>} : memref<1x8x32xf32, #tpu.memory_space<vmem>>, vector<1x8x32xf32>,
    return
  }
  func.func @transform_0(%arg0: i32) -> (i32, i32, i32) {
    %c0_i32 = arith.constant 0 : i32
    %c0_i32_0 = arith.constant 0 : i32
    %c0_i32_1 = arith.constant 0 : i32
    return %arg0, %c0_i32, %c0_i32_0 : i32, i32, i32
  }
  func.func @transform_1(%arg0: i32) -> (i32, i32) {
    %c0_i32 = arith.constant 0 : i32
    %c0_i32_0 = arith.constant 0 : i32
    %c0_i32_1 = arith.constant 0 : i32
    return %c0_i32, %c0_i32_0 : i32, i32
  }
  func.func @transform_2(%arg0: i32) -> (i32, i32) {
    %c0_i32 = arith.constant 0 : i32
    %c0_i32_0 = arith.constant 0 : i32
    %c0_i32_1 = arith.constant 0 : i32
    return %c0_i32, %c0_i32_0 : i32, i32
  }
  func.func @transform_3(%arg0: i32) -> (i32, i32) {
    %c0_i32 = arith.constant 0 : i32
    %c0_i32_0 = arith.constant 0 : i32
    %c0_i32_1 = arith.constant 0 : i32
    return %c0_i32, %c0_i32_0 : i32, i32
  }
  func.func @transform_4(%arg0: i32) -> (i32, i32) {
    %c0_i32 = arith.constant 0 : i32
    %c0_i32_0 = arith.constant 0 : i32
    %c0_i32_1 = arith.constant 0 : i32
    return %c0_i32, %c0_i32_0 : i32, i32
  }
  func.func @transform_5(%arg0: i32) -> (i32, i32) {
    %c0_i32 = arith.constant 0 : i32
    %c0_i32_0 = arith.constant 0 : i32
    %c0_i32_1 = arith.constant 0 : i32
    return %c0_i32, %c0_i32_0 : i32, i32
  }
  func.func @transform_6(%arg0: i32) -> (i32, i32) {
    %c0_i32 = arith.constant 0 : i32
    %c0_i32_0 = arith.constant 0 : i32
    %c0_i32_1 = arith.constant 0 : i32
    return %c0_i32, %c0_i32_0 : i32, i32
  }
  func.func @transform_7(%arg0: i32) -> (i32, i32) {
    %c0_i32 = arith.constant 0 : i32
    %c0_i32_0 = arith.constant 0 : i32
    %c0_i32_1 = arith.constant 0 : i32
    return %c0_i32, %c0_i32_0 : i32, i32
  }
  func.func @transform_8(%arg0: i32) -> (i32, i32) {
    %c0_i32 = arith.constant 0 : i32
    %c0_i32_0 = arith.constant 0 : i32
    %c0_i32_1 = arith.constant 0 : i32
    return %c0_i32, %c0_i32_0 : i32, i32
  }
  func.func @transform_9(%arg0: i32) -> (i32, i32) {
    %c0_i32 = arith.constant 0 : i32
    %c0_i32_0 = arith.constant 0 : i32
    %c0_i32_1 = arith.constant 0 : i32
    return %c0_i32, %c0_i32_0 : i32, i32
  }
  func.func @transform_10(%arg0: i32) -> (i32, i32) {
    %c0_i32 = arith.constant 0 : i32
    %c0_i32_0 = arith.constant 0 : i32
    %c0_i32_1 = arith.constant 0 : i32
    return %c0_i32, %c0_i32_0 : i32, i32
  }
  func.func @transform_11(%arg0: i32) -> (i32, i32) {
    %c0_i32 = arith.constant 0 : i32
    %c0_i32_0 = arith.constant 0 : i32
    %c0_i32_1 = arith.constant 0 : i32
    return %c0_i32, %c0_i32_0 : i32, i32
  }
  func.func @transform_12(%arg0: i32) -> (i32, i32, i32) {
    %c0_i32 = arith.constant 0 : i32
    %c0_i32_0 = arith.constant 0 : i32
    %c0_i32_1 = arith.constant 0 : i32
    return %arg0, %c0_i32, %c0_i32_0 : i32, i32, i32
  }
}

module attributes {stable_mosaic.version = 11 : i64} {
  func.func @transformer_layer_kernel(%arg0: i32, %arg1: memref<1x8x32xf32, #tpu.memory_space<vmem>>, %arg2: memref<1x32xf32, #tpu.memory_space<vmem>>, %arg3: memref<1x32xf32, #tpu.memory_space<vmem>>, %arg4: memref<32x96xbf16, #tpu.memory_space<vmem>>, %arg5: memref<32x32xbf16, #tpu.memory_space<vmem>>, %arg6: memref<1x32xf32, #tpu.memory_space<vmem>>, %arg7: memref<1x32xf32, #tpu.memory_space<vmem>>, %arg8: memref<1x32xf32, #tpu.memory_space<vmem>>, %arg9: memref<32x64xbf16, #tpu.memory_space<vmem>>, %arg10: memref<1x64xf32, #tpu.memory_space<vmem>>, %arg11: memref<64x32xbf16, #tpu.memory_space<vmem>>, %arg12: memref<1x32xf32, #tpu.memory_space<vmem>>, %arg13: memref<1x8x32xf32, #tpu.memory_space<vmem>>) attributes {dimension_semantics = [#tpu.dimension_semantics<parallel>], iteration_bounds = array<i64: 2>, scalar_prefetch = 0 : i64, scratch_operands = 0 : i64, tpu.core_type = #tpu.core_type<tc>, window_params = [{transform_indices = @transform_0, window_bounds = array<i64: 1, 8, 32>}, {pipeline_mode = #tpu.pipeline_mode<synchronous>, transform_indices = @transform_1, window_bounds = array<i64: 1, 32>}, {pipeline_mode = #tpu.pipeline_mode<synchronous>, transform_indices = @transform_2, window_bounds = array<i64: 1, 32>}, {pipeline_mode = #tpu.pipeline_mode<synchronous>, transform_indices = @transform_3, window_bounds = array<i64: 32, 96>}, {pipeline_mode = #tpu.pipeline_mode<synchronous>, transform_indices = @transform_4, window_bounds = array<i64: 32, 32>}, {pipeline_mode = #tpu.pipeline_mode<synchronous>, transform_indices = @transform_5, window_bounds = array<i64: 1, 32>}, {pipeline_mode = #tpu.pipeline_mode<synchronous>, transform_indices = @transform_6, window_bounds = array<i64: 1, 32>}, {pipeline_mode = #tpu.pipeline_mode<synchronous>, transform_indices = @transform_7, window_bounds = array<i64: 1, 32>}, {pipeline_mode = #tpu.pipeline_mode<synchronous>, transform_indices = @transform_8, window_bounds = array<i64: 32, 64>}, {pipeline_mode = #tpu.pipeline_mode<synchronous>, transform_indices = @transform_9, window_bounds = array<i64: 1, 64>}, {pipeline_mode = #tpu.pipeline_mode<synchronous>, transform_indices = @transform_10, window_bounds = array<i64: 64, 32>}, {pipeline_mode = #tpu.pipeline_mode<synchronous>, transform_indices = @transform_11, window_bounds = array<i64: 1, 32>}, {transform_indices = @transform_12, window_bounds = array<i64: 1, 8, 32>}]} {
    %c0 = arith.constant 0 : index
    %c0_0 = arith.constant 0 : index
    %c0_1 = arith.constant 0 : index
    %0 = vector.load %arg1[%c0, %c0_0, %c0_1] : memref<1x8x32xf32, #tpu.memory_space<vmem>>, vector<1x8x32xf32>
    %1 = vector.shape_cast %0 : vector<1x8x32xf32> to vector<8x32xf32>
    %c0_2 = arith.constant 0 : index
    %c0_3 = arith.constant 0 : index
    %2 = vector.load %arg2[%c0_2, %c0_3] : memref<1x32xf32, #tpu.memory_space<vmem>>, vector<1x32xf32>
    %3 = vector.shape_cast %2 : vector<1x32xf32> to vector<32xf32>
    %c0_4 = arith.constant 0 : index
    %c0_5 = arith.constant 0 : index
    %4 = vector.load %arg3[%c0_4, %c0_5] : memref<1x32xf32, #tpu.memory_space<vmem>>, vector<1x32xf32>
    %5 = vector.shape_cast %4 : vector<1x32xf32> to vector<32xf32>
    %cst = arith.constant dense<0.000000e+00> : vector<8xf32>
    %6 = vector.multi_reduction <add>, %1, %cst [1] : vector<8x32xf32> to vector<8xf32>
    %7 = vector.shape_cast %6 : vector<8xf32> to vector<8x1xf32>
    %cst_6 = arith.constant 3.200000e+01 : f32
    %8 = vector.broadcast %cst_6 : f32 to vector<8x1xf32>
    %9 = arith.divf %7, %8 : vector<8x1xf32>
    %10 = vector.broadcast %9 : vector<8x1xf32> to vector<8x32xf32>
    %11 = arith.subf %1, %10 : vector<8x32xf32>
    %12 = arith.mulf %11, %11 : vector<8x32xf32>
    %cst_7 = arith.constant dense<0.000000e+00> : vector<8xf32>
    %13 = vector.multi_reduction <add>, %12, %cst_7 [1] : vector<8x32xf32> to vector<8xf32>
    %14 = vector.shape_cast %13 : vector<8xf32> to vector<8x1xf32>
    %cst_8 = arith.constant 3.200000e+01 : f32
    %15 = vector.broadcast %cst_8 : f32 to vector<8x1xf32>
    %16 = arith.divf %14, %15 : vector<8x1xf32>
    %17 = vector.broadcast %9 : vector<8x1xf32> to vector<8x32xf32>
    %18 = arith.subf %1, %17 : vector<8x32xf32>
    %cst_9 = arith.constant 9.99999974E-6 : f32
    %19 = vector.broadcast %cst_9 : f32 to vector<8x1xf32>
    %20 = arith.addf %16, %19 : vector<8x1xf32>
    %21 = math.rsqrt %20 : vector<8x1xf32>
    %22 = vector.broadcast %21 : vector<8x1xf32> to vector<8x32xf32>
    %23 = arith.mulf %18, %22 : vector<8x32xf32>
    %24 = vector.shape_cast %3 : vector<32xf32> to vector<1x32xf32>
    %25 = vector.broadcast %24 : vector<1x32xf32> to vector<8x32xf32>
    %26 = arith.mulf %23, %25 : vector<8x32xf32>
    %27 = vector.shape_cast %5 : vector<32xf32> to vector<1x32xf32>
    %28 = vector.broadcast %27 : vector<1x32xf32> to vector<8x32xf32>
    %29 = arith.addf %26, %28 : vector<8x32xf32>
    %30 = arith.truncf %29 : vector<8x32xf32> to vector<8x32xbf16>
    %c0_10 = arith.constant 0 : index
    %c0_11 = arith.constant 0 : index
    %31 = vector.load %arg4[%c0_10, %c0_11] : memref<32x96xbf16, #tpu.memory_space<vmem>>, vector<32x96xbf16>
    %cst_12 = arith.constant dense<0.000000e+00> : vector<8x96xf32>
    %32 = tpu.matmul %30, %31, %cst_12 {dimension_numbers = #tpu.dot_dimension_numbers<[1], [0], [0], [1], [0, 0, 1, 1], [], []>} : vector<8x32xbf16>, vector<32x96xbf16>, vector<8x96xf32> -> vector<8x96xf32>
    %33 = vector.extract_strided_slice %32 {offsets = [0, 0], sizes = [8, 8], strides = [1, 1]} : vector<8x96xf32> to vector<8x8xf32>
    %34 = vector.extract_strided_slice %32 {offsets = [0, 8], sizes = [8, 8], strides = [1, 1]} : vector<8x96xf32> to vector<8x8xf32>
    %35 = vector.extract_strided_slice %32 {offsets = [0, 16], sizes = [8, 8], strides = [1, 1]} : vector<8x96xf32> to vector<8x8xf32>
    %36 = vector.extract_strided_slice %32 {offsets = [0, 24], sizes = [8, 8], strides = [1, 1]} : vector<8x96xf32> to vector<8x8xf32>
    %37 = vector.extract_strided_slice %32 {offsets = [0, 32], sizes = [8, 8], strides = [1, 1]} : vector<8x96xf32> to vector<8x8xf32>
    %38 = vector.extract_strided_slice %32 {offsets = [0, 40], sizes = [8, 8], strides = [1, 1]} : vector<8x96xf32> to vector<8x8xf32>
    %39 = vector.extract_strided_slice %32 {offsets = [0, 48], sizes = [8, 8], strides = [1, 1]} : vector<8x96xf32> to vector<8x8xf32>
    %40 = vector.extract_strided_slice %32 {offsets = [0, 56], sizes = [8, 8], strides = [1, 1]} : vector<8x96xf32> to vector<8x8xf32>
    %41 = vector.extract_strided_slice %32 {offsets = [0, 64], sizes = [8, 8], strides = [1, 1]} : vector<8x96xf32> to vector<8x8xf32>
    %42 = vector.extract_strided_slice %32 {offsets = [0, 72], sizes = [8, 8], strides = [1, 1]} : vector<8x96xf32> to vector<8x8xf32>
    %43 = vector.extract_strided_slice %32 {offsets = [0, 80], sizes = [8, 8], strides = [1, 1]} : vector<8x96xf32> to vector<8x8xf32>
    %44 = vector.extract_strided_slice %32 {offsets = [0, 88], sizes = [8, 8], strides = [1, 1]} : vector<8x96xf32> to vector<8x8xf32>
    %45 = vector.shape_cast %33 : vector<8x8xf32> to vector<1x8x8xf32>
    %46 = vector.shape_cast %34 : vector<8x8xf32> to vector<1x8x8xf32>
    %47 = vector.shape_cast %35 : vector<8x8xf32> to vector<1x8x8xf32>
    %48 = vector.shape_cast %36 : vector<8x8xf32> to vector<1x8x8xf32>
    %49 = vector.shape_cast %37 : vector<8x8xf32> to vector<1x8x8xf32>
    %50 = vector.shape_cast %38 : vector<8x8xf32> to vector<1x8x8xf32>
    %51 = vector.shape_cast %39 : vector<8x8xf32> to vector<1x8x8xf32>
    %52 = vector.shape_cast %40 : vector<8x8xf32> to vector<1x8x8xf32>
    %53 = vector.shape_cast %41 : vector<8x8xf32> to vector<1x8x8xf32>
    %54 = vector.shape_cast %42 : vector<8x8xf32> to vector<1x8x8xf32>
    %55 = vector.shape_cast %43 : vector<8x8xf32> to vector<1x8x8xf32>
    %56 = vector.shape_cast %44 : vector<8x8xf32> to vector<1x8x8xf32>
    %57 = tpu.concatenate %45, %46, %47, %48, %49, %50, %51, %52, %53, %54, %55, %56 in 0 : vector<1x8x8xf32>, vector<1x8x8xf32>, vector<1x8x8xf32>, vector<1x8x8xf32>, vector<1x8x8xf32>, vector<1x8x8xf32>, vector<1x8x8xf32>, vector<1x8x8xf32>, vector<1x8x8xf32>, vector<1x8x8xf32>, vector<1x8x8xf32>, vector<1x8x8xf32> -> vector<12x8x8xf32>
    %58 = arith.truncf %57 : vector<12x8x8xf32> to vector<12x8x8xbf16>
    %59 = vector.extract_strided_slice %58 {offsets = [0, 0, 0], sizes = [4, 8, 8], strides = [1, 1, 1]} : vector<12x8x8xbf16> to vector<4x8x8xbf16>
    %cst_13 = arith.constant 3.535160e-01 : bf16
    %60 = vector.broadcast %cst_13 : bf16 to vector<4x8x8xbf16>
    %61 = arith.mulf %59, %60 : vector<4x8x8xbf16>
    %62 = vector.extract_strided_slice %58 {offsets = [4, 0, 0], sizes = [4, 8, 8], strides = [1, 1, 1]} : vector<12x8x8xbf16> to vector<4x8x8xbf16>
    %63 = vector.extract_strided_slice %58 {offsets = [8, 0, 0], sizes = [4, 8, 8], strides = [1, 1, 1]} : vector<12x8x8xbf16> to vector<4x8x8xbf16>
    "tpu.trace_start"() <{level = 10 : i32, message = "hqd,hkd->hqk"}> : () -> ()
    %cst_14 = arith.constant dense<0.000000e+00> : vector<4x8x8xf32>
    %64 = tpu.matmul %61, %62, %cst_14 {dimension_numbers = #tpu.dot_dimension_numbers<[2], [2], [1], [1], [0, 0, 0, 1, 1, 1], [0], [0]>} : vector<4x8x8xbf16>, vector<4x8x8xbf16>, vector<4x8x8xf32> -> vector<4x8x8xf32>
    "tpu.trace_stop"() : () -> ()
    %cst_15 = arith.constant dense<0xFF800000> : vector<4x8xf32>
    %65 = vector.multi_reduction <maximumf>, %64, %cst_15 [2] : vector<4x8x8xf32> to vector<4x8xf32>
    %66 = vector.shape_cast %65 : vector<4x8xf32> to vector<4x8x1xf32>
    %67 = vector.broadcast %66 : vector<4x8x1xf32> to vector<4x8x8xf32>
    %68 = arith.subf %64, %67 : vector<4x8x8xf32>
    %69 = math.exp %68 : vector<4x8x8xf32>
    %cst_16 = arith.constant dense<0.000000e+00> : vector<4x8xf32>
    %70 = vector.multi_reduction <add>, %69, %cst_16 [2] : vector<4x8x8xf32> to vector<4x8xf32>
    %71 = vector.shape_cast %70 : vector<4x8xf32> to vector<4x8x1xf32>
    %72 = tpu.reciprocal %71 {approx = true} : vector<4x8x1xf32> -> vector<4x8x1xf32>
    %73 = vector.broadcast %72 : vector<4x8x1xf32> to vector<4x8x8xf32>
    %74 = arith.mulf %69, %73 : vector<4x8x8xf32>
    %75 = arith.truncf %74 : vector<4x8x8xf32> to vector<4x8x8xbf16>
    "tpu.trace_start"() <{level = 10 : i32, message = "hqk,hkd->hqd"}> : () -> ()
    %cst_17 = arith.constant dense<0.000000e+00> : vector<4x8x8xf32>
    %76 = tpu.matmul %75, %63, %cst_17 {dimension_numbers = #tpu.dot_dimension_numbers<[2], [1], [1], [2], [0, 0, 0, 1, 1, 2], [0], [0]>} : vector<4x8x8xbf16>, vector<4x8x8xbf16>, vector<4x8x8xf32> -> vector<4x8x8xf32>
    "tpu.trace_stop"() : () -> ()
    %77 = vector.extract_strided_slice %76 {offsets = [0, 0, 0], sizes = [1, 8, 8], strides = [1, 1, 1]} : vector<4x8x8xf32> to vector<1x8x8xf32>
    %78 = vector.shape_cast %77 : vector<1x8x8xf32> to vector<8x8xf32>
    %79 = vector.extract_strided_slice %76 {offsets = [1, 0, 0], sizes = [1, 8, 8], strides = [1, 1, 1]} : vector<4x8x8xf32> to vector<1x8x8xf32>
    %80 = vector.shape_cast %79 : vector<1x8x8xf32> to vector<8x8xf32>
    %81 = vector.extract_strided_slice %76 {offsets = [2, 0, 0], sizes = [1, 8, 8], strides = [1, 1, 1]} : vector<4x8x8xf32> to vector<1x8x8xf32>
    %82 = vector.shape_cast %81 : vector<1x8x8xf32> to vector<8x8xf32>
    %83 = vector.extract_strided_slice %76 {offsets = [3, 0, 0], sizes = [1, 8, 8], strides = [1, 1, 1]} : vector<4x8x8xf32> to vector<1x8x8xf32>
    %84 = vector.shape_cast %83 : vector<1x8x8xf32> to vector<8x8xf32>
    %85 = tpu.concatenate %78, %80, %82, %84 in 1 : vector<8x8xf32>, vector<8x8xf32>, vector<8x8xf32>, vector<8x8xf32> -> vector<8x32xf32>
    %86 = arith.truncf %85 : vector<8x32xf32> to vector<8x32xbf16>
    %c0_18 = arith.constant 0 : index
    %c0_19 = arith.constant 0 : index
    %87 = vector.load %arg5[%c0_18, %c0_19] : memref<32x32xbf16, #tpu.memory_space<vmem>>, vector<32x32xbf16>
    %cst_20 = arith.constant dense<0.000000e+00> : vector<8x32xf32>
    %88 = tpu.matmul %86, %87, %cst_20 {dimension_numbers = #tpu.dot_dimension_numbers<[1], [0], [0], [1], [0, 0, 1, 1], [], []>} : vector<8x32xbf16>, vector<32x32xbf16>, vector<8x32xf32> -> vector<8x32xf32>
    %c0_21 = arith.constant 0 : index
    %c0_22 = arith.constant 0 : index
    %89 = vector.load %arg6[%c0_21, %c0_22] : memref<1x32xf32, #tpu.memory_space<vmem>>, vector<1x32xf32>
    %90 = vector.shape_cast %89 : vector<1x32xf32> to vector<32xf32>
    %91 = vector.shape_cast %90 : vector<32xf32> to vector<1x32xf32>
    %92 = vector.broadcast %91 : vector<1x32xf32> to vector<8x32xf32>
    %93 = arith.addf %88, %92 : vector<8x32xf32>
    %94 = arith.addf %93, %1 : vector<8x32xf32>
    %c0_23 = arith.constant 0 : index
    %c0_24 = arith.constant 0 : index
    %95 = vector.load %arg7[%c0_23, %c0_24] : memref<1x32xf32, #tpu.memory_space<vmem>>, vector<1x32xf32>
    %96 = vector.shape_cast %95 : vector<1x32xf32> to vector<32xf32>
    %c0_25 = arith.constant 0 : index
    %c0_26 = arith.constant 0 : index
    %97 = vector.load %arg8[%c0_25, %c0_26] : memref<1x32xf32, #tpu.memory_space<vmem>>, vector<1x32xf32>
    %98 = vector.shape_cast %97 : vector<1x32xf32> to vector<32xf32>
    %cst_27 = arith.constant dense<0.000000e+00> : vector<8xf32>
    %99 = vector.multi_reduction <add>, %94, %cst_27 [1] : vector<8x32xf32> to vector<8xf32>
    %100 = vector.shape_cast %99 : vector<8xf32> to vector<8x1xf32>
    %cst_28 = arith.constant 3.200000e+01 : f32
    %101 = vector.broadcast %cst_28 : f32 to vector<8x1xf32>
    %102 = arith.divf %100, %101 : vector<8x1xf32>
    %103 = vector.broadcast %102 : vector<8x1xf32> to vector<8x32xf32>
    %104 = arith.subf %94, %103 : vector<8x32xf32>
    %105 = arith.mulf %104, %104 : vector<8x32xf32>
    %cst_29 = arith.constant dense<0.000000e+00> : vector<8xf32>
    %106 = vector.multi_reduction <add>, %105, %cst_29 [1] : vector<8x32xf32> to vector<8xf32>
    %107 = vector.shape_cast %106 : vector<8xf32> to vector<8x1xf32>
    %cst_30 = arith.constant 3.200000e+01 : f32
    %108 = vector.broadcast %cst_30 : f32 to vector<8x1xf32>
    %109 = arith.divf %107, %108 : vector<8x1xf32>
    %110 = vector.broadcast %102 : vector<8x1xf32> to vector<8x32xf32>
    %111 = arith.subf %94, %110 : vector<8x32xf32>
    %cst_31 = arith.constant 9.99999974E-6 : f32
    %112 = vector.broadcast %cst_31 : f32 to vector<8x1xf32>
    %113 = arith.addf %109, %112 : vector<8x1xf32>
    %114 = math.rsqrt %113 : vector<8x1xf32>
    %115 = vector.broadcast %114 : vector<8x1xf32> to vector<8x32xf32>
    %116 = arith.mulf %111, %115 : vector<8x32xf32>
    %117 = vector.shape_cast %96 : vector<32xf32> to vector<1x32xf32>
    %118 = vector.broadcast %117 : vector<1x32xf32> to vector<8x32xf32>
    %119 = arith.mulf %116, %118 : vector<8x32xf32>
    %120 = vector.shape_cast %98 : vector<32xf32> to vector<1x32xf32>
    %121 = vector.broadcast %120 : vector<1x32xf32> to vector<8x32xf32>
    %122 = arith.addf %119, %121 : vector<8x32xf32>
    %123 = arith.truncf %122 : vector<8x32xf32> to vector<8x32xbf16>
    %c0_32 = arith.constant 0 : index
    %c0_33 = arith.constant 0 : index
    %124 = vector.load %arg9[%c0_32, %c0_33] : memref<32x64xbf16, #tpu.memory_space<vmem>>, vector<32x64xbf16>
    %cst_34 = arith.constant dense<0.000000e+00> : vector<8x64xf32>
    %125 = tpu.matmul %123, %124, %cst_34 {dimension_numbers = #tpu.dot_dimension_numbers<[1], [0], [0], [1], [0, 0, 1, 1], [], []>} : vector<8x32xbf16>, vector<32x64xbf16>, vector<8x64xf32> -> vector<8x64xf32>
    %c0_35 = arith.constant 0 : index
    %c0_36 = arith.constant 0 : index
    %126 = vector.load %arg10[%c0_35, %c0_36] : memref<1x64xf32, #tpu.memory_space<vmem>>, vector<1x64xf32>
    %127 = vector.shape_cast %126 : vector<1x64xf32> to vector<64xf32>
    %128 = vector.shape_cast %127 : vector<64xf32> to vector<1x64xf32>
    %129 = vector.broadcast %128 : vector<1x64xf32> to vector<8x64xf32>
    %130 = arith.addf %125, %129 : vector<8x64xf32>
    %cst_37 = arith.constant 5.000000e-01 : f32
    %131 = vector.broadcast %cst_37 : f32 to vector<8x64xf32>
    %132 = arith.mulf %131, %130 : vector<8x64xf32>
    %cst_38 = arith.constant 0.707106769 : f32
    %133 = vector.broadcast %cst_38 : f32 to vector<8x64xf32>
    %134 = arith.mulf %130, %133 : vector<8x64xf32>
    %135 = math.erf %134 : vector<8x64xf32>
    %cst_39 = arith.constant 1.000000e+00 : f32
    %136 = vector.broadcast %cst_39 : f32 to vector<8x64xf32>
    %137 = arith.addf %136, %135 : vector<8x64xf32>
    %138 = arith.mulf %132, %137 : vector<8x64xf32>
    %139 = arith.truncf %138 : vector<8x64xf32> to vector<8x64xbf16>
    %c0_40 = arith.constant 0 : index
    %c0_41 = arith.constant 0 : index
    %140 = vector.load %arg11[%c0_40, %c0_41] : memref<64x32xbf16, #tpu.memory_space<vmem>>, vector<64x32xbf16>
    %cst_42 = arith.constant dense<0.000000e+00> : vector<8x32xf32>
    %141 = tpu.matmul %139, %140, %cst_42 {dimension_numbers = #tpu.dot_dimension_numbers<[1], [0], [0], [1], [0, 0, 1, 1], [], []>} : vector<8x64xbf16>, vector<64x32xbf16>, vector<8x32xf32> -> vector<8x32xf32>
    %c0_43 = arith.constant 0 : index
    %c0_44 = arith.constant 0 : index
    %142 = vector.load %arg12[%c0_43, %c0_44] : memref<1x32xf32, #tpu.memory_space<vmem>>, vector<1x32xf32>
    %143 = vector.shape_cast %142 : vector<1x32xf32> to vector<32xf32>
    %144 = vector.shape_cast %143 : vector<32xf32> to vector<1x32xf32>
    %145 = vector.broadcast %144 : vector<1x32xf32> to vector<8x32xf32>
    %146 = arith.addf %141, %145 : vector<8x32xf32>
    %147 = arith.addf %146, %94 : vector<8x32xf32>
    %c0_45 = arith.constant 0 : index
    %c0_46 = arith.constant 0 : index
    %c0_47 = arith.constant 0 : index
    %148 = vector.load %arg13[%c0_45, %c0_46, %c0_47] : memref<1x8x32xf32, #tpu.memory_space<vmem>>, vector<1x8x32xf32>
    %149 = vector.shape_cast %148 : vector<1x8x32xf32> to vector<8x32xf32>
    %150 = vector.shape_cast %147 : vector<8x32xf32> to vector<1x8x32xf32>
    tpu.vector_store %arg13[%c0_45, %c0_46, %c0_47], %150 {strides = array<i32>} : memref<1x8x32xf32, #tpu.memory_space<vmem>>, vector<1x8x32xf32>,
    return
  }
  func.func @transform_0(%arg0: i32) -> (i32, i32, i32) {
    %c0_i32 = arith.constant 0 : i32
    %c0_i32_0 = arith.constant 0 : i32
    %c0_i32_1 = arith.constant 0 : i32
    return %arg0, %c0_i32, %c0_i32_0 : i32, i32, i32
  }
  func.func @transform_1(%arg0: i32) -> (i32, i32) {
    %c0_i32 = arith.constant 0 : i32
    %c0_i32_0 = arith.constant 0 : i32
    %c0_i32_1 = arith.constant 0 : i32
    return %c0_i32, %c0_i32_0 : i32, i32
  }
  func.func @transform_2(%arg0: i32) -> (i32, i32) {
    %c0_i32 = arith.constant 0 : i32
    %c0_i32_0 = arith.constant 0 : i32
    %c0_i32_1 = arith.constant 0 : i32
    return %c0_i32, %c0_i32_0 : i32, i32
  }
  func.func @transform_3(%arg0: i32) -> (i32, i32) {
    %c0_i32 = arith.constant 0 : i32
    %c0_i32_0 = arith.constant 0 : i32
    %c0_i32_1 = arith.constant 0 : i32
    return %c0_i32, %c0_i32_0 : i32, i32
  }
  func.func @transform_4(%arg0: i32) -> (i32, i32) {
    %c0_i32 = arith.constant 0 : i32
    %c0_i32_0 = arith.constant 0 : i32
    %c0_i32_1 = arith.constant 0 : i32
    return %c0_i32, %c0_i32_0 : i32, i32
  }
  func.func @transform_5(%arg0: i32) -> (i32, i32) {
    %c0_i32 = arith.constant 0 : i32
    %c0_i32_0 = arith.constant 0 : i32
    %c0_i32_1 = arith.constant 0 : i32
    return %c0_i32, %c0_i32_0 : i32, i32
  }
  func.func @transform_6(%arg0: i32) -> (i32, i32) {
    %c0_i32 = arith.constant 0 : i32
    %c0_i32_0 = arith.constant 0 : i32
    %c0_i32_1 = arith.constant 0 : i32
    return %c0_i32, %c0_i32_0 : i32, i32
  }
  func.func @transform_7(%arg0: i32) -> (i32, i32) {
    %c0_i32 = arith.constant 0 : i32
    %c0_i32_0 = arith.constant 0 : i32
    %c0_i32_1 = arith.constant 0 : i32
    return %c0_i32, %c0_i32_0 : i32, i32
  }
  func.func @transform_8(%arg0: i32) -> (i32, i32) {
    %c0_i32 = arith.constant 0 : i32
    %c0_i32_0 = arith.constant 0 : i32
    %c0_i32_1 = arith.constant 0 : i32
    return %c0_i32, %c0_i32_0 : i32, i32
  }
  func.func @transform_9(%arg0: i32) -> (i32, i32) {
    %c0_i32 = arith.constant 0 : i32
    %c0_i32_0 = arith.constant 0 : i32
    %c0_i32_1 = arith.constant 0 : i32
    return %c0_i32, %c0_i32_0 : i32, i32
  }
  func.func @transform_10(%arg0: i32) -> (i32, i32) {
    %c0_i32 = arith.constant 0 : i32
    %c0_i32_0 = arith.constant 0 : i32
    %c0_i32_1 = arith.constant 0 : i32
    return %c0_i32, %c0_i32_0 : i32, i32
  }
  func.func @transform_11(%arg0: i32) -> (i32, i32) {
    %c0_i32 = arith.constant 0 : i32
    %c0_i32_0 = arith.constant 0 : i32
    %c0_i32_1 = arith.constant 0 : i32
    return %c0_i32, %c0_i32_0 : i32, i32
  }
  func.func @transform_12(%arg0: i32) -> (i32, i32, i32) {
    %c0_i32 = arith.constant 0 : i32
    %c0_i32_0 = arith.constant 0 : i32
    %c0_i32_1 = arith.constant 0 : i32
    return %arg0, %c0_i32, %c0_i32_0 : i32, i32, i32
  }
}

module attributes {stable_mosaic.version = 11 : i64} {
  func.func @transformer_layer_kernel(%arg0: i32, %arg1: memref<1x8x32xf32, #tpu.memory_space<vmem>>, %arg2: memref<1x32xf32, #tpu.memory_space<vmem>>, %arg3: memref<1x32xf32, #tpu.memory_space<vmem>>, %arg4: memref<32x96xbf16, #tpu.memory_space<vmem>>, %arg5: memref<32x32xbf16, #tpu.memory_space<vmem>>, %arg6: memref<1x32xf32, #tpu.memory_space<vmem>>, %arg7: memref<1x32xf32, #tpu.memory_space<vmem>>, %arg8: memref<1x32xf32, #tpu.memory_space<vmem>>, %arg9: memref<32x64xbf16, #tpu.memory_space<vmem>>, %arg10: memref<1x64xf32, #tpu.memory_space<vmem>>, %arg11: memref<64x32xbf16, #tpu.memory_space<vmem>>, %arg12: memref<1x32xf32, #tpu.memory_space<vmem>>, %arg13: memref<1x8x32xf32, #tpu.memory_space<vmem>>) attributes {dimension_semantics = [#tpu.dimension_semantics<parallel>], iteration_bounds = array<i64: 2>, scalar_prefetch = 0 : i64, scratch_operands = 0 : i64, tpu.core_type = #tpu.core_type<tc>, window_params = [{transform_indices = @transform_0, window_bounds = array<i64: 1, 8, 32>}, {pipeline_mode = #tpu.pipeline_mode<synchronous>, transform_indices = @transform_1, window_bounds = array<i64: 1, 32>}, {pipeline_mode = #tpu.pipeline_mode<synchronous>, transform_indices = @transform_2, window_bounds = array<i64: 1, 32>}, {pipeline_mode = #tpu.pipeline_mode<synchronous>, transform_indices = @transform_3, window_bounds = array<i64: 32, 96>}, {pipeline_mode = #tpu.pipeline_mode<synchronous>, transform_indices = @transform_4, window_bounds = array<i64: 32, 32>}, {pipeline_mode = #tpu.pipeline_mode<synchronous>, transform_indices = @transform_5, window_bounds = array<i64: 1, 32>}, {pipeline_mode = #tpu.pipeline_mode<synchronous>, transform_indices = @transform_6, window_bounds = array<i64: 1, 32>}, {pipeline_mode = #tpu.pipeline_mode<synchronous>, transform_indices = @transform_7, window_bounds = array<i64: 1, 32>}, {pipeline_mode = #tpu.pipeline_mode<synchronous>, transform_indices = @transform_8, window_bounds = array<i64: 32, 64>}, {pipeline_mode = #tpu.pipeline_mode<synchronous>, transform_indices = @transform_9, window_bounds = array<i64: 1, 64>}, {pipeline_mode = #tpu.pipeline_mode<synchronous>, transform_indices = @transform_10, window_bounds = array<i64: 64, 32>}, {pipeline_mode = #tpu.pipeline_mode<synchronous>, transform_indices = @transform_11, window_bounds = array<i64: 1, 32>}, {transform_indices = @transform_12, window_bounds = array<i64: 1, 8, 32>}]} {
    %c0 = arith.constant 0 : index
    %c0_0 = arith.constant 0 : index
    %c0_1 = arith.constant 0 : index
    %0 = vector.load %arg1[%c0, %c0_0, %c0_1] : memref<1x8x32xf32, #tpu.memory_space<vmem>>, vector<1x8x32xf32>
    %1 = vector.shape_cast %0 : vector<1x8x32xf32> to vector<8x32xf32>
    %c0_2 = arith.constant 0 : index
    %c0_3 = arith.constant 0 : index
    %2 = vector.load %arg2[%c0_2, %c0_3] : memref<1x32xf32, #tpu.memory_space<vmem>>, vector<1x32xf32>
    %3 = vector.shape_cast %2 : vector<1x32xf32> to vector<32xf32>
    %c0_4 = arith.constant 0 : index
    %c0_5 = arith.constant 0 : index
    %4 = vector.load %arg3[%c0_4, %c0_5] : memref<1x32xf32, #tpu.memory_space<vmem>>, vector<1x32xf32>
    %5 = vector.shape_cast %4 : vector<1x32xf32> to vector<32xf32>
    %cst = arith.constant dense<0.000000e+00> : vector<8xf32>
    %6 = vector.multi_reduction <add>, %1, %cst [1] : vector<8x32xf32> to vector<8xf32>
    %7 = vector.shape_cast %6 : vector<8xf32> to vector<8x1xf32>
    %cst_6 = arith.constant 3.200000e+01 : f32
    %8 = vector.broadcast %cst_6 : f32 to vector<8x1xf32>
    %9 = arith.divf %7, %8 : vector<8x1xf32>
    %10 = vector.broadcast %9 : vector<8x1xf32> to vector<8x32xf32>
    %11 = arith.subf %1, %10 : vector<8x32xf32>
    %12 = arith.mulf %11, %11 : vector<8x32xf32>
    %cst_7 = arith.constant dense<0.000000e+00> : vector<8xf32>
    %13 = vector.multi_reduction <add>, %12, %cst_7 [1] : vector<8x32xf32> to vector<8xf32>
    %14 = vector.shape_cast %13 : vector<8xf32> to vector<8x1xf32>
    %cst_8 = arith.constant 3.200000e+01 : f32
    %15 = vector.broadcast %cst_8 : f32 to vector<8x1xf32>
    %16 = arith.divf %14, %15 : vector<8x1xf32>
    %17 = vector.broadcast %9 : vector<8x1xf32> to vector<8x32xf32>
    %18 = arith.subf %1, %17 : vector<8x32xf32>
    %cst_9 = arith.constant 9.99999974E-6 : f32
    %19 = vector.broadcast %cst_9 : f32 to vector<8x1xf32>
    %20 = arith.addf %16, %19 : vector<8x1xf32>
    %21 = math.rsqrt %20 : vector<8x1xf32>
    %22 = vector.broadcast %21 : vector<8x1xf32> to vector<8x32xf32>
    %23 = arith.mulf %18, %22 : vector<8x32xf32>
    %24 = vector.shape_cast %3 : vector<32xf32> to vector<1x32xf32>
    %25 = vector.broadcast %24 : vector<1x32xf32> to vector<8x32xf32>
    %26 = arith.mulf %23, %25 : vector<8x32xf32>
    %27 = vector.shape_cast %5 : vector<32xf32> to vector<1x32xf32>
    %28 = vector.broadcast %27 : vector<1x32xf32> to vector<8x32xf32>
    %29 = arith.addf %26, %28 : vector<8x32xf32>
    %30 = arith.truncf %29 : vector<8x32xf32> to vector<8x32xbf16>
    %c0_10 = arith.constant 0 : index
    %c0_11 = arith.constant 0 : index
    %31 = vector.load %arg4[%c0_10, %c0_11] : memref<32x96xbf16, #tpu.memory_space<vmem>>, vector<32x96xbf16>
    %cst_12 = arith.constant dense<0.000000e+00> : vector<8x96xf32>
    %32 = tpu.matmul %30, %31, %cst_12 {dimension_numbers = #tpu.dot_dimension_numbers<[1], [0], [0], [1], [0, 0, 1, 1], [], []>} : vector<8x32xbf16>, vector<32x96xbf16>, vector<8x96xf32> -> vector<8x96xf32>
    %33 = vector.extract_strided_slice %32 {offsets = [0, 0], sizes = [8, 8], strides = [1, 1]} : vector<8x96xf32> to vector<8x8xf32>
    %34 = vector.extract_strided_slice %32 {offsets = [0, 8], sizes = [8, 8], strides = [1, 1]} : vector<8x96xf32> to vector<8x8xf32>
    %35 = vector.extract_strided_slice %32 {offsets = [0, 16], sizes = [8, 8], strides = [1, 1]} : vector<8x96xf32> to vector<8x8xf32>
    %36 = vector.extract_strided_slice %32 {offsets = [0, 24], sizes = [8, 8], strides = [1, 1]} : vector<8x96xf32> to vector<8x8xf32>
    %37 = vector.extract_strided_slice %32 {offsets = [0, 32], sizes = [8, 8], strides = [1, 1]} : vector<8x96xf32> to vector<8x8xf32>
    %38 = vector.extract_strided_slice %32 {offsets = [0, 40], sizes = [8, 8], strides = [1, 1]} : vector<8x96xf32> to vector<8x8xf32>
    %39 = vector.extract_strided_slice %32 {offsets = [0, 48], sizes = [8, 8], strides = [1, 1]} : vector<8x96xf32> to vector<8x8xf32>
    %40 = vector.extract_strided_slice %32 {offsets = [0, 56], sizes = [8, 8], strides = [1, 1]} : vector<8x96xf32> to vector<8x8xf32>
    %41 = vector.extract_strided_slice %32 {offsets = [0, 64], sizes = [8, 8], strides = [1, 1]} : vector<8x96xf32> to vector<8x8xf32>
    %42 = vector.extract_strided_slice %32 {offsets = [0, 72], sizes = [8, 8], strides = [1, 1]} : vector<8x96xf32> to vector<8x8xf32>
    %43 = vector.extract_strided_slice %32 {offsets = [0, 80], sizes = [8, 8], strides = [1, 1]} : vector<8x96xf32> to vector<8x8xf32>
    %44 = vector.extract_strided_slice %32 {offsets = [0, 88], sizes = [8, 8], strides = [1, 1]} : vector<8x96xf32> to vector<8x8xf32>
    %45 = vector.shape_cast %33 : vector<8x8xf32> to vector<1x8x8xf32>
    %46 = vector.shape_cast %34 : vector<8x8xf32> to vector<1x8x8xf32>
    %47 = vector.shape_cast %35 : vector<8x8xf32> to vector<1x8x8xf32>
    %48 = vector.shape_cast %36 : vector<8x8xf32> to vector<1x8x8xf32>
    %49 = vector.shape_cast %37 : vector<8x8xf32> to vector<1x8x8xf32>
    %50 = vector.shape_cast %38 : vector<8x8xf32> to vector<1x8x8xf32>
    %51 = vector.shape_cast %39 : vector<8x8xf32> to vector<1x8x8xf32>
    %52 = vector.shape_cast %40 : vector<8x8xf32> to vector<1x8x8xf32>
    %53 = vector.shape_cast %41 : vector<8x8xf32> to vector<1x8x8xf32>
    %54 = vector.shape_cast %42 : vector<8x8xf32> to vector<1x8x8xf32>
    %55 = vector.shape_cast %43 : vector<8x8xf32> to vector<1x8x8xf32>
    %56 = vector.shape_cast %44 : vector<8x8xf32> to vector<1x8x8xf32>
    %57 = tpu.concatenate %45, %46, %47, %48, %49, %50, %51, %52, %53, %54, %55, %56 in 0 : vector<1x8x8xf32>, vector<1x8x8xf32>, vector<1x8x8xf32>, vector<1x8x8xf32>, vector<1x8x8xf32>, vector<1x8x8xf32>, vector<1x8x8xf32>, vector<1x8x8xf32>, vector<1x8x8xf32>, vector<1x8x8xf32>, vector<1x8x8xf32>, vector<1x8x8xf32> -> vector<12x8x8xf32>
    %58 = arith.truncf %57 : vector<12x8x8xf32> to vector<12x8x8xbf16>
    %59 = vector.extract_strided_slice %58 {offsets = [0, 0, 0], sizes = [4, 8, 8], strides = [1, 1, 1]} : vector<12x8x8xbf16> to vector<4x8x8xbf16>
    %cst_13 = arith.constant 3.535160e-01 : bf16
    %60 = vector.broadcast %cst_13 : bf16 to vector<4x8x8xbf16>
    %61 = arith.mulf %59, %60 : vector<4x8x8xbf16>
    %62 = vector.extract_strided_slice %58 {offsets = [4, 0, 0], sizes = [4, 8, 8], strides = [1, 1, 1]} : vector<12x8x8xbf16> to vector<4x8x8xbf16>
    %63 = vector.extract_strided_slice %58 {offsets = [8, 0, 0], sizes = [4, 8, 8], strides = [1, 1, 1]} : vector<12x8x8xbf16> to vector<4x8x8xbf16>
    "tpu.trace_start"() <{level = 10 : i32, message = "hqd,hkd->hqk"}> : () -> ()
    %cst_14 = arith.constant dense<0.000000e+00> : vector<4x8x8xf32>
    %64 = tpu.matmul %61, %62, %cst_14 {dimension_numbers = #tpu.dot_dimension_numbers<[2], [2], [1], [1], [0, 0, 0, 1, 1, 1], [0], [0]>} : vector<4x8x8xbf16>, vector<4x8x8xbf16>, vector<4x8x8xf32> -> vector<4x8x8xf32>
    "tpu.trace_stop"() : () -> ()
    %cst_15 = arith.constant dense<0xFF800000> : vector<4x8xf32>
    %65 = vector.multi_reduction <maximumf>, %64, %cst_15 [2] : vector<4x8x8xf32> to vector<4x8xf32>
    %66 = vector.shape_cast %65 : vector<4x8xf32> to vector<4x8x1xf32>
    %67 = vector.broadcast %66 : vector<4x8x1xf32> to vector<4x8x8xf32>
    %68 = arith.subf %64, %67 : vector<4x8x8xf32>
    %69 = math.exp %68 : vector<4x8x8xf32>
    %cst_16 = arith.constant dense<0.000000e+00> : vector<4x8xf32>
    %70 = vector.multi_reduction <add>, %69, %cst_16 [2] : vector<4x8x8xf32> to vector<4x8xf32>
    %71 = vector.shape_cast %70 : vector<4x8xf32> to vector<4x8x1xf32>
    %72 = tpu.reciprocal %71 {approx = true} : vector<4x8x1xf32> -> vector<4x8x1xf32>
    %73 = vector.broadcast %72 : vector<4x8x1xf32> to vector<4x8x8xf32>
    %74 = arith.mulf %69, %73 : vector<4x8x8xf32>
    %75 = arith.truncf %74 : vector<4x8x8xf32> to vector<4x8x8xbf16>
    "tpu.trace_start"() <{level = 10 : i32, message = "hqk,hkd->hqd"}> : () -> ()
    %cst_17 = arith.constant dense<0.000000e+00> : vector<4x8x8xf32>
    %76 = tpu.matmul %75, %63, %cst_17 {dimension_numbers = #tpu.dot_dimension_numbers<[2], [1], [1], [2], [0, 0, 0, 1, 1, 2], [0], [0]>} : vector<4x8x8xbf16>, vector<4x8x8xbf16>, vector<4x8x8xf32> -> vector<4x8x8xf32>
    "tpu.trace_stop"() : () -> ()
    %77 = vector.extract_strided_slice %76 {offsets = [0, 0, 0], sizes = [1, 8, 8], strides = [1, 1, 1]} : vector<4x8x8xf32> to vector<1x8x8xf32>
    %78 = vector.shape_cast %77 : vector<1x8x8xf32> to vector<8x8xf32>
    %79 = vector.extract_strided_slice %76 {offsets = [1, 0, 0], sizes = [1, 8, 8], strides = [1, 1, 1]} : vector<4x8x8xf32> to vector<1x8x8xf32>
    %80 = vector.shape_cast %79 : vector<1x8x8xf32> to vector<8x8xf32>
    %81 = vector.extract_strided_slice %76 {offsets = [2, 0, 0], sizes = [1, 8, 8], strides = [1, 1, 1]} : vector<4x8x8xf32> to vector<1x8x8xf32>
    %82 = vector.shape_cast %81 : vector<1x8x8xf32> to vector<8x8xf32>
    %83 = vector.extract_strided_slice %76 {offsets = [3, 0, 0], sizes = [1, 8, 8], strides = [1, 1, 1]} : vector<4x8x8xf32> to vector<1x8x8xf32>
    %84 = vector.shape_cast %83 : vector<1x8x8xf32> to vector<8x8xf32>
    %85 = tpu.concatenate %78, %80, %82, %84 in 1 : vector<8x8xf32>, vector<8x8xf32>, vector<8x8xf32>, vector<8x8xf32> -> vector<8x32xf32>
    %86 = arith.truncf %85 : vector<8x32xf32> to vector<8x32xbf16>
    %c0_18 = arith.constant 0 : index
    %c0_19 = arith.constant 0 : index
    %87 = vector.load %arg5[%c0_18, %c0_19] : memref<32x32xbf16, #tpu.memory_space<vmem>>, vector<32x32xbf16>
    %cst_20 = arith.constant dense<0.000000e+00> : vector<8x32xf32>
    %88 = tpu.matmul %86, %87, %cst_20 {dimension_numbers = #tpu.dot_dimension_numbers<[1], [0], [0], [1], [0, 0, 1, 1], [], []>} : vector<8x32xbf16>, vector<32x32xbf16>, vector<8x32xf32> -> vector<8x32xf32>
    %c0_21 = arith.constant 0 : index
    %c0_22 = arith.constant 0 : index
    %89 = vector.load %arg6[%c0_21, %c0_22] : memref<1x32xf32, #tpu.memory_space<vmem>>, vector<1x32xf32>
    %90 = vector.shape_cast %89 : vector<1x32xf32> to vector<32xf32>
    %91 = vector.shape_cast %90 : vector<32xf32> to vector<1x32xf32>
    %92 = vector.broadcast %91 : vector<1x32xf32> to vector<8x32xf32>
    %93 = arith.addf %88, %92 : vector<8x32xf32>
    %94 = arith.addf %93, %1 : vector<8x32xf32>
    %c0_23 = arith.constant 0 : index
    %c0_24 = arith.constant 0 : index
    %95 = vector.load %arg7[%c0_23, %c0_24] : memref<1x32xf32, #tpu.memory_space<vmem>>, vector<1x32xf32>
    %96 = vector.shape_cast %95 : vector<1x32xf32> to vector<32xf32>
    %c0_25 = arith.constant 0 : index
    %c0_26 = arith.constant 0 : index
    %97 = vector.load %arg8[%c0_25, %c0_26] : memref<1x32xf32, #tpu.memory_space<vmem>>, vector<1x32xf32>
    %98 = vector.shape_cast %97 : vector<1x32xf32> to vector<32xf32>
    %cst_27 = arith.constant dense<0.000000e+00> : vector<8xf32>
    %99 = vector.multi_reduction <add>, %94, %cst_27 [1] : vector<8x32xf32> to vector<8xf32>
    %100 = vector.shape_cast %99 : vector<8xf32> to vector<8x1xf32>
    %cst_28 = arith.constant 3.200000e+01 : f32
    %101 = vector.broadcast %cst_28 : f32 to vector<8x1xf32>
    %102 = arith.divf %100, %101 : vector<8x1xf32>
    %103 = vector.broadcast %102 : vector<8x1xf32> to vector<8x32xf32>
    %104 = arith.subf %94, %103 : vector<8x32xf32>
    %105 = arith.mulf %104, %104 : vector<8x32xf32>
    %cst_29 = arith.constant dense<0.000000e+00> : vector<8xf32>
    %106 = vector.multi_reduction <add>, %105, %cst_29 [1] : vector<8x32xf32> to vector<8xf32>
    %107 = vector.shape_cast %106 : vector<8xf32> to vector<8x1xf32>
    %cst_30 = arith.constant 3.200000e+01 : f32
    %108 = vector.broadcast %cst_30 : f32 to vector<8x1xf32>
    %109 = arith.divf %107, %108 : vector<8x1xf32>
    %110 = vector.broadcast %102 : vector<8x1xf32> to vector<8x32xf32>
    %111 = arith.subf %94, %110 : vector<8x32xf32>
    %cst_31 = arith.constant 9.99999974E-6 : f32
    %112 = vector.broadcast %cst_31 : f32 to vector<8x1xf32>
    %113 = arith.addf %109, %112 : vector<8x1xf32>
    %114 = math.rsqrt %113 : vector<8x1xf32>
    %115 = vector.broadcast %114 : vector<8x1xf32> to vector<8x32xf32>
    %116 = arith.mulf %111, %115 : vector<8x32xf32>
    %117 = vector.shape_cast %96 : vector<32xf32> to vector<1x32xf32>
    %118 = vector.broadcast %117 : vector<1x32xf32> to vector<8x32xf32>
    %119 = arith.mulf %116, %118 : vector<8x32xf32>
    %120 = vector.shape_cast %98 : vector<32xf32> to vector<1x32xf32>
    %121 = vector.broadcast %120 : vector<1x32xf32> to vector<8x32xf32>
    %122 = arith.addf %119, %121 : vector<8x32xf32>
    %123 = arith.truncf %122 : vector<8x32xf32> to vector<8x32xbf16>
    %c0_32 = arith.constant 0 : index
    %c0_33 = arith.constant 0 : index
    %124 = vector.load %arg9[%c0_32, %c0_33] : memref<32x64xbf16, #tpu.memory_space<vmem>>, vector<32x64xbf16>
    %cst_34 = arith.constant dense<0.000000e+00> : vector<8x64xf32>
    %125 = tpu.matmul %123, %124, %cst_34 {dimension_numbers = #tpu.dot_dimension_numbers<[1], [0], [0], [1], [0, 0, 1, 1], [], []>} : vector<8x32xbf16>, vector<32x64xbf16>, vector<8x64xf32> -> vector<8x64xf32>
    %c0_35 = arith.constant 0 : index
    %c0_36 = arith.constant 0 : index
    %126 = vector.load %arg10[%c0_35, %c0_36] : memref<1x64xf32, #tpu.memory_space<vmem>>, vector<1x64xf32>
    %127 = vector.shape_cast %126 : vector<1x64xf32> to vector<64xf32>
    %128 = vector.shape_cast %127 : vector<64xf32> to vector<1x64xf32>
    %129 = vector.broadcast %128 : vector<1x64xf32> to vector<8x64xf32>
    %130 = arith.addf %125, %129 : vector<8x64xf32>
    %cst_37 = arith.constant 5.000000e-01 : f32
    %131 = vector.broadcast %cst_37 : f32 to vector<8x64xf32>
    %132 = arith.mulf %131, %130 : vector<8x64xf32>
    %cst_38 = arith.constant 0.707106769 : f32
    %133 = vector.broadcast %cst_38 : f32 to vector<8x64xf32>
    %134 = arith.mulf %130, %133 : vector<8x64xf32>
    %135 = math.erf %134 : vector<8x64xf32>
    %cst_39 = arith.constant 1.000000e+00 : f32
    %136 = vector.broadcast %cst_39 : f32 to vector<8x64xf32>
    %137 = arith.addf %136, %135 : vector<8x64xf32>
    %138 = arith.mulf %132, %137 : vector<8x64xf32>
    %139 = arith.truncf %138 : vector<8x64xf32> to vector<8x64xbf16>
    %c0_40 = arith.constant 0 : index
    %c0_41 = arith.constant 0 : index
    %140 = vector.load %arg11[%c0_40, %c0_41] : memref<64x32xbf16, #tpu.memory_space<vmem>>, vector<64x32xbf16>
    %cst_42 = arith.constant dense<0.000000e+00> : vector<8x32xf32>
    %141 = tpu.matmul %139, %140, %cst_42 {dimension_numbers = #tpu.dot_dimension_numbers<[1], [0], [0], [1], [0, 0, 1, 1], [], []>} : vector<8x64xbf16>, vector<64x32xbf16>, vector<8x32xf32> -> vector<8x32xf32>
    %c0_43 = arith.constant 0 : index
    %c0_44 = arith.constant 0 : index
    %142 = vector.load %arg12[%c0_43, %c0_44] : memref<1x32xf32, #tpu.memory_space<vmem>>, vector<1x32xf32>
    %143 = vector.shape_cast %142 : vector<1x32xf32> to vector<32xf32>
    %144 = vector.shape_cast %143 : vector<32xf32> to vector<1x32xf32>
    %145 = vector.broadcast %144 : vector<1x32xf32> to vector<8x32xf32>
    %146 = arith.addf %141, %145 : vector<8x32xf32>
    %147 = arith.addf %146, %94 : vector<8x32xf32>
    %c0_45 = arith.constant 0 : index
    %c0_46 = arith.constant 0 : index
    %c0_47 = arith.constant 0 : index
    %148 = vector.load %arg13[%c0_45, %c0_46, %c0_47] : memref<1x8x32xf32, #tpu.memory_space<vmem>>, vector<1x8x32xf32>
    %149 = vector.shape_cast %148 : vector<1x8x32xf32> to vector<8x32xf32>
    %150 = vector.shape_cast %147 : vector<8x32xf32> to vector<1x8x32xf32>
    tpu.vector_store %arg13[%c0_45, %c0_46, %c0_47], %150 {strides = array<i32>} : memref<1x8x32xf32, #tpu.memory_space<vmem>>, vector<1x8x32xf32>,
    return
  }
  func.func @transform_0(%arg0: i32) -> (i32, i32, i32) {
    %c0_i32 = arith.constant 0 : i32
    %c0_i32_0 = arith.constant 0 : i32
    %c0_i32_1 = arith.constant 0 : i32
    return %arg0, %c0_i32, %c0_i32_0 : i32, i32, i32
  }
  func.func @transform_1(%arg0: i32) -> (i32, i32) {
    %c0_i32 = arith.constant 0 : i32
    %c0_i32_0 = arith.constant 0 : i32
    %c0_i32_1 = arith.constant 0 : i32
    return %c0_i32, %c0_i32_0 : i32, i32
  }
  func.func @transform_2(%arg0: i32) -> (i32, i32) {
    %c0_i32 = arith.constant 0 : i32
    %c0_i32_0 = arith.constant 0 : i32
    %c0_i32_1 = arith.constant 0 : i32
    return %c0_i32, %c0_i32_0 : i32, i32
  }
  func.func @transform_3(%arg0: i32) -> (i32, i32) {
    %c0_i32 = arith.constant 0 : i32
    %c0_i32_0 = arith.constant 0 : i32
    %c0_i32_1 = arith.constant 0 : i32
    return %c0_i32, %c0_i32_0 : i32, i32
  }
  func.func @transform_4(%arg0: i32) -> (i32, i32) {
    %c0_i32 = arith.constant 0 : i32
    %c0_i32_0 = arith.constant 0 : i32
    %c0_i32_1 = arith.constant 0 : i32
    return %c0_i32, %c0_i32_0 : i32, i32
  }
  func.func @transform_5(%arg0: i32) -> (i32, i32) {
    %c0_i32 = arith.constant 0 : i32
    %c0_i32_0 = arith.constant 0 : i32
    %c0_i32_1 = arith.constant 0 : i32
    return %c0_i32, %c0_i32_0 : i32, i32
  }
  func.func @transform_6(%arg0: i32) -> (i32, i32) {
    %c0_i32 = arith.constant 0 : i32
    %c0_i32_0 = arith.constant 0 : i32
    %c0_i32_1 = arith.constant 0 : i32
    return %c0_i32, %c0_i32_0 : i32, i32
  }
  func.func @transform_7(%arg0: i32) -> (i32, i32) {
    %c0_i32 = arith.constant 0 : i32
    %c0_i32_0 = arith.constant 0 : i32
    %c0_i32_1 = arith.constant 0 : i32
    return %c0_i32, %c0_i32_0 : i32, i32
  }
  func.func @transform_8(%arg0: i32) -> (i32, i32) {
    %c0_i32 = arith.constant 0 : i32
    %c0_i32_0 = arith.constant 0 : i32
    %c0_i32_1 = arith.constant 0 : i32
    return %c0_i32, %c0_i32_0 : i32, i32
  }
  func.func @transform_9(%arg0: i32) -> (i32, i32) {
    %c0_i32 = arith.constant 0 : i32
    %c0_i32_0 = arith.constant 0 : i32
    %c0_i32_1 = arith.constant 0 : i32
    return %c0_i32, %c0_i32_0 : i32, i32
  }
  func.func @transform_10(%arg0: i32) -> (i32, i32) {
    %c0_i32 = arith.constant 0 : i32
    %c0_i32_0 = arith.constant 0 : i32
    %c0_i32_1 = arith.constant 0 : i32
    return %c0_i32, %c0_i32_0 : i32, i32
  }
  func.func @transform_11(%arg0: i32) -> (i32, i32) {
    %c0_i32 = arith.constant 0 : i32
    %c0_i32_0 = arith.constant 0 : i32
    %c0_i32_1 = arith.constant 0 : i32
    return %c0_i32, %c0_i32_0 : i32, i32
  }
  func.func @transform_12(%arg0: i32) -> (i32, i32, i32) {
    %c0_i32 = arith.constant 0 : i32
    %c0_i32_0 = arith.constant 0 : i32
    %c0_i32_1 = arith.constant 0 : i32
    return %arg0, %c0_i32, %c0_i32_0 : i32, i32, i32
  }
}

</mosaic_0001>

<llo_original>
// kernel: tpu_custom_call.1
$region0: #{tpu_custom_call.1}
  #allocation0 [shape = 'u32[]', space=smem, size = 0x4, offset = 0x4, fixed_abs, tag = 'smem constant byte address 0x4 - core index']
  #allocation1 [shape = 'u32[72,128]{1,0:T(1,128)}', space=vmem, size = 0x9000, scoped, tag = 'internal scratch']
  %s0 = inlined_call_operand.vmem [shape: f32[2,8,32], index: 0, kind: input, shape index: {}]
  %s1 = inlined_call_operand.hbm [shape: f32[1,32], index: 1, kind: input, shape index: {}]
  %s2 = inlined_call_operand.vmem [shape: f32[1,32], index: 2, kind: input, shape index: {}]
  %s3 = inlined_call_operand.vmem [shape: bf16[32,96], index: 3, kind: input, shape index: {}]
  %s4 = inlined_call_operand.vmem [shape: bf16[32,32], index: 4, kind: input, shape index: {}]
  %s5 = inlined_call_operand.vmem [shape: f32[1,32], index: 5, kind: input, shape index: {}]
  %s6 = inlined_call_operand.vmem [shape: f32[1,32], index: 6, kind: input, shape index: {}]
  %s7 = inlined_call_operand.vmem [shape: f32[1,32], index: 7, kind: input, shape index: {}]
  %s8 = inlined_call_operand.hbm [shape: bf16[32,64], index: 8, kind: input, shape index: {}]
  %s9 = inlined_call_operand.vmem [shape: f32[1,64], index: 9, kind: input, shape index: {}]
  %s10 = inlined_call_operand.vmem [shape: bf16[64,32], index: 10, kind: input, shape index: {}]
  %s11 = inlined_call_operand.vmem [shape: f32[1,32], index: 11, kind: input, shape index: {}]
  %s12 = inlined_call_operand.hbm [shape: f32[2,8,32], index: 12, kind: output, shape index: {}]
  %s13 = sld [smem:[#allocation0]]
  $region89: #{tpu_custom_call.1} parent=0
    _
  %s15 = ssub.s32 1, %s13
  %s16 = scalar_select 0, %s15, %s13
  $region1: #{tpu_custom_call.1} parent=0
    #allocation2 [shape = 'u8[512]{0}', space=vmem, size = 0x400, scoped, tag = 'input window, operand 1, single buffered']
    #allocation3 [shape = 's32[2]{0}', space=sflag, size = 0x8, scoped, tag = 'scoped memory for tpu_custom_call.1']
    #allocation4 [shape = 's32[2]{0}', space=sflag, size = 0x8, scoped, tag = 'scoped memory for tpu_custom_call.1']
    #allocation5 [shape = 'u8[8192]{0}', space=vmem, size = 0x2000, scoped, tag = 'input window, operand 8, single buffered']
    #allocation6 [shape = 's32[1]{0}', space=sflag, size = 0x4, scoped, tag = 'scoped memory for tpu_custom_call.1']
    #allocation7 [shape = 'u8[8192]{0}', space=vmem, size = 0x2000, scoped, tag = 'output window, operand 0']
    %17 = vsyncpa [#allocation3], 0
    %18 = vsyncpa [#allocation6], 0
    %19 = vsyncpa [#allocation4], 0
    %s20 = scalar_lea.sflag [#allocation4], 1
    %21 = vsyncpa %s20, 0
    loop: start=0, step=1, limit=4
    $region2: #{tpu_custom_call.1} parent=1 // loop_pre_header
      _
    $region3: #{tpu_custom_call.1} parent=1 // loop_header
      %s23 = sphi 0, %s27
      %p24 = scmp.ge.s32.totalorder %s23, 4
      %s33 = sphi 0, %s35
      %s36 = sphi 0, %s33
      %s37 = sphi 0, %s36
      %s53 = sphi 0, %s37
      %s57 = sphi 0, %s57
      %s59 = sphi 0, %s57
      %s60 = sphi 0, %s59
      %s74 = sphi 0, %s60
      %s78 = sphi 0, %s78
      %s80 = sphi 0, %s78
      %s81 = sphi 0, %s80
      %s95 = sphi 0, %s81
      %s99 = sphi 0, %s99
      %s101 = sphi 0, %s99
      %s102 = sphi 0, %s101
      %s116 = sphi 0, %s102
      %s120 = sphi 0, %s120
      %s122 = sphi 0, %s120
      %s123 = sphi 0, %s122
      %s137 = sphi 0, %s123
      %s141 = sphi 0, %s141
      %s143 = sphi 0, %s141
      %s144 = sphi 0, %s143
      %s158 = sphi 0, %s144
      %s162 = sphi 0, %s162
      %s164 = sphi 0, %s162
      %s165 = sphi 0, %s164
      %s179 = sphi 0, %s165
      %s183 = sphi 0, %s183
      %s185 = sphi 0, %s183
      %s186 = sphi 0, %s185
      %s200 = sphi 0, %s186
      %s204 = sphi 0, %s204
      %s206 = sphi 0, %s204
      %s207 = sphi 0, %s206
      %s221 = sphi 0, %s207
      %s225 = sphi 0, %s225
      %s227 = sphi 0, %s225
      %s228 = sphi 0, %s227
      %s242 = sphi 0, %s228
      %s246 = sphi 0, %s246
      %s248 = sphi 0, %s246
      %s249 = sphi 0, %s248
      %s263 = sphi 0, %s249
      %s267 = sphi 0, %s267
      %s269 = sphi 0, %s267
      %s270 = sphi 0, %s269
      %s284 = sphi 0, %s270
      %s290 = sphi 0, %s292
      %s293 = sphi 0, %s290
      %s294 = sphi 0, %s293
      %s310 = sphi 0, %s294
    $region4: #{tpu_custom_call.1} parent=1 // loop_header_branch
      %26 = sbr.rel (%p24) target = $region8
    $region5: #{tpu_custom_call.1} parent=1 // loop_body
      %s28 = ssub.s32 %s23, 1
      %s29 = ssub.s32 %s23, 2
      %s30 = sadd.s32 %s23, 1
      %s31 = ssub.s32 %s23, %s30
      %p32 = scmp.eq.s32.totalorder %s31, 0
      %s34 = sadd.s32 %s33, 1
      %s35 = scalar_select %p32, %s33, %s34
      %p38 = pneg %p32
      %p39 = scmp.eq.s32.totalorder %s23, 1
      %p40 = por %p38, %p39
      %p41 = scmp.ne.s32.totalorder %s33, %s36
      %p42 = scmp.eq.s32.totalorder %s23, 0
      %p43 = por %p41, %p42
      %p44 = scmp.ne.s32.totalorder %s33, %s36
      %p45 = scmp.eq.s32.totalorder %s28, 1
      %p46 = por %p44, %p45
      %p47 = scmp.ne.s32.totalorder %s36, %s37
      %p48 = scmp.eq.s32.totalorder %s28, 0
      %p49 = por %p47, %p48
      %p50 = scmp.ne.s32.totalorder %s36, %s37
      %p51 = scmp.eq.s32.totalorder %s29, 1
      %p52 = por %p50, %p51
      %p54 = scmp.ne.s32.totalorder %s37, %s53
      %p55 = scmp.eq.s32.totalorder %s29, 0
      %p56 = por %p54, %p55
      %s58 = sadd.s32 %s57, 1
      %p61 = scmp.eq.s32.totalorder %s23, 1
      %p62 = scmp.ne.s32.totalorder %s57, %s59
      %p63 = scmp.eq.s32.totalorder %s23, 0
      %p64 = por %p62, %p63
      %p65 = scmp.ne.s32.totalorder %s57, %s59
      %p66 = scmp.eq.s32.totalorder %s28, 1
      %p67 = por %p65, %p66
      %p68 = scmp.ne.s32.totalorder %s59, %s60
      %p69 = scmp.eq.s32.totalorder %s28, 0
      %p70 = por %p68, %p69
      %p71 = scmp.ne.s32.totalorder %s59, %s60
      %p72 = scmp.eq.s32.totalorder %s29, 1
      %p73 = por %p71, %p72
      %p75 = scmp.ne.s32.totalorder %s60, %s74
      %p76 = scmp.eq.s32.totalorder %s29, 0
      %p77 = por %p75, %p76
      %s79 = sadd.s32 %s78, 1
      %p82 = scmp.eq.s32.totalorder %s23, 1
      %p83 = scmp.ne.s32.totalorder %s78, %s80
      %p84 = scmp.eq.s32.totalorder %s23, 0
      %p85 = por %p83, %p84
      %p86 = scmp.ne.s32.totalorder %s78, %s80
      %p87 = scmp.eq.s32.totalorder %s28, 1
      %p88 = por %p86, %p87
      %p89 = scmp.ne.s32.totalorder %s80, %s81
      %p90 = scmp.eq.s32.totalorder %s28, 0
      %p91 = por %p89, %p90
      %p92 = scmp.ne.s32.totalorder %s80, %s81
      %p93 = scmp.eq.s32.totalorder %s29, 1
      %p94 = por %p92, %p93
      %p96 = scmp.ne.s32.totalorder %s81, %s95
      %p97 = scmp.eq.s32.totalorder %s29, 0
      %p98 = por %p96, %p97
      %s100 = sadd.s32 %s99, 1
      %p103 = scmp.eq.s32.totalorder %s23, 1
      %p104 = scmp.ne.s32.totalorder %s99, %s101
      %p105 = scmp.eq.s32.totalorder %s23, 0
      %p106 = por %p104, %p105
      %p107 = scmp.ne.s32.totalorder %s99, %s101
      %p108 = scmp.eq.s32.totalorder %s28, 1
      %p109 = por %p107, %p108
      %p110 = scmp.ne.s32.totalorder %s101, %s102
      %p111 = scmp.eq.s32.totalorder %s28, 0
      %p112 = por %p110, %p111
      %p113 = scmp.ne.s32.totalorder %s101, %s102
      %p114 = scmp.eq.s32.totalorder %s29, 1
      %p115 = por %p113, %p114
      %p117 = scmp.ne.s32.totalorder %s102, %s116
      %p118 = scmp.eq.s32.totalorder %s29, 0
      %p119 = por %p117, %p118
      %s121 = sadd.s32 %s120, 1
      %p124 = scmp.eq.s32.totalorder %s23, 1
      %p125 = scmp.ne.s32.totalorder %s120, %s122
      %p126 = scmp.eq.s32.totalorder %s23, 0
      %p127 = por %p125, %p126
      %p128 = scmp.ne.s32.totalorder %s120, %s122
      %p129 = scmp.eq.s32.totalorder %s28, 1
      %p130 = por %p128, %p129
      %p131 = scmp.ne.s32.totalorder %s122, %s123
      %p132 = scmp.eq.s32.totalorder %s28, 0
      %p133 = por %p131, %p132
      %p134 = scmp.ne.s32.totalorder %s122, %s123
      %p135 = scmp.eq.s32.totalorder %s29, 1
      %p136 = por %p134, %p135
      %p138 = scmp.ne.s32.totalorder %s123, %s137
      %p139 = scmp.eq.s32.totalorder %s29, 0
      %p140 = por %p138, %p139
      %s142 = sadd.s32 %s141, 1
      %p145 = scmp.eq.s32.totalorder %s23, 1
      %p146 = scmp.ne.s32.totalorder %s141, %s143
      %p147 = scmp.eq.s32.totalorder %s23, 0
      %p148 = por %p146, %p147
      %p149 = scmp.ne.s32.totalorder %s141, %s143
      %p150 = scmp.eq.s32.totalorder %s28, 1
      %p151 = por %p149, %p150
      %p152 = scmp.ne.s32.totalorder %s143, %s144
      %p153 = scmp.eq.s32.totalorder %s28, 0
      %p154 = por %p152, %p153
      %p155 = scmp.ne.s32.totalorder %s143, %s144
      %p156 = scmp.eq.s32.totalorder %s29, 1
      %p157 = por %p155, %p156
      %p159 = scmp.ne.s32.totalorder %s144, %s158
      %p160 = scmp.eq.s32.totalorder %s29, 0
      %p161 = por %p159, %p160
      %s163 = sadd.s32 %s162, 1
      %p166 = scmp.eq.s32.totalorder %s23, 1
      %p167 = scmp.ne.s32.totalorder %s162, %s164
      %p168 = scmp.eq.s32.totalorder %s23, 0
      %p169 = por %p167, %p168
      %p170 = scmp.ne.s32.totalorder %s162, %s164
      %p171 = scmp.eq.s32.totalorder %s28, 1
      %p172 = por %p170, %p171
      %p173 = scmp.ne.s32.totalorder %s164, %s165
      %p174 = scmp.eq.s32.totalorder %s28, 0
      %p175 = por %p173, %p174
      %p176 = scmp.ne.s32.totalorder %s164, %s165
      %p177 = scmp.eq.s32.totalorder %s29, 1
      %p178 = por %p176, %p177
      %p180 = scmp.ne.s32.totalorder %s165, %s179
      %p181 = scmp.eq.s32.totalorder %s29, 0
      %p182 = por %p180, %p181
      %s184 = sadd.s32 %s183, 1
      %p187 = scmp.eq.s32.totalorder %s23, 1
      %p188 = scmp.ne.s32.totalorder %s183, %s185
      %p189 = scmp.eq.s32.totalorder %s23, 0
      %p190 = por %p188, %p189
      %p191 = scmp.ne.s32.totalorder %s183, %s185
      %p192 = scmp.eq.s32.totalorder %s28, 1
      %p193 = por %p191, %p192
      %p194 = scmp.ne.s32.totalorder %s185, %s186
      %p195 = scmp.eq.s32.totalorder %s28, 0
      %p196 = por %p194, %p195
      %p197 = scmp.ne.s32.totalorder %s185, %s186
      %p198 = scmp.eq.s32.totalorder %s29, 1
      %p199 = por %p197, %p198
      %p201 = scmp.ne.s32.totalorder %s186, %s200
      %p202 = scmp.eq.s32.totalorder %s29, 0
      %p203 = por %p201, %p202
      %s205 = sadd.s32 %s204, 1
      %p208 = scmp.eq.s32.totalorder %s23, 1
      %p209 = scmp.ne.s32.totalorder %s204, %s206
      %p210 = scmp.eq.s32.totalorder %s23, 0
      %p211 = por %p209, %p210
      %p212 = scmp.ne.s32.totalorder %s204, %s206
      %p213 = scmp.eq.s32.totalorder %s28, 1
      %p214 = por %p212, %p213
      %p215 = scmp.ne.s32.totalorder %s206, %s207
      %p216 = scmp.eq.s32.totalorder %s28, 0
      %p217 = por %p215, %p216
      %p218 = scmp.ne.s32.totalorder %s206, %s207
      %p219 = scmp.eq.s32.totalorder %s29, 1
      %p220 = por %p218, %p219
      %p222 = scmp.ne.s32.totalorder %s207, %s221
      %p223 = scmp.eq.s32.totalorder %s29, 0
      %p224 = por %p222, %p223
      %s226 = sadd.s32 %s225, 1
      %p229 = scmp.eq.s32.totalorder %s23, 1
      %p230 = scmp.ne.s32.totalorder %s225, %s227
      %p231 = scmp.eq.s32.totalorder %s23, 0
      %p232 = por %p230, %p231
      %p233 = scmp.ne.s32.totalorder %s225, %s227
      %p234 = scmp.eq.s32.totalorder %s28, 1
      %p235 = por %p233, %p234
      %p236 = scmp.ne.s32.totalorder %s227, %s228
      %p237 = scmp.eq.s32.totalorder %s28, 0
      %p238 = por %p236, %p237
      %p239 = scmp.ne.s32.totalorder %s227, %s228
      %p240 = scmp.eq.s32.totalorder %s29, 1
      %p241 = por %p239, %p240
      %p243 = scmp.ne.s32.totalorder %s228, %s242
      %p244 = scmp.eq.s32.totalorder %s29, 0
      %p245 = por %p243, %p244
      %s247 = sadd.s32 %s246, 1
      %p250 = scmp.eq.s32.totalorder %s23, 1
      %p251 = scmp.ne.s32.totalorder %s246, %s248
      %p252 = scmp.eq.s32.totalorder %s23, 0
      %p253 = por %p251, %p252
      %p254 = scmp.ne.s32.totalorder %s246, %s248
      %p255 = scmp.eq.s32.totalorder %s28, 1
      %p256 = por %p254, %p255
      %p257 = scmp.ne.s32.totalorder %s248, %s249
      %p258 = scmp.eq.s32.totalorder %s28, 0
      %p259 = por %p257, %p258
      %p260 = scmp.ne.s32.totalorder %s248, %s249
      %p261 = scmp.eq.s32.totalorder %s29, 1
      %p262 = por %p260, %p261
      %p264 = scmp.ne.s32.totalorder %s249, %s263
      %p265 = scmp.eq.s32.totalorder %s29, 0
      %p266 = por %p264, %p265
      %s268 = sadd.s32 %s267, 1
      %p271 = scmp.eq.s32.totalorder %s23, 1
      %p272 = scmp.ne.s32.totalorder %s267, %s269
      %p273 = scmp.eq.s32.totalorder %s23, 0
      %p274 = por %p272, %p273
      %p275 = scmp.ne.s32.totalorder %s267, %s269
      %p276 = scmp.eq.s32.totalorder %s28, 1
      %p277 = por %p275, %p276
      %p278 = scmp.ne.s32.totalorder %s269, %s270
      %p279 = scmp.eq.s32.totalorder %s28, 0
      %p280 = por %p278, %p279
      %p281 = scmp.ne.s32.totalorder %s269, %s270
      %p282 = scmp.eq.s32.totalorder %s29, 1
      %p283 = por %p281, %p282
      %p285 = scmp.ne.s32.totalorder %s270, %s284
      %p286 = scmp.eq.s32.totalorder %s29, 0
      %p287 = por %p285, %p286
      %s288 = ssub.s32 %s23, %s30
      %p289 = scmp.eq.s32.totalorder %s288, 0
      %s291 = sadd.s32 %s290, 1
      %s292 = scalar_select %p289, %s290, %s291
      %p295 = pneg %p289
      %p296 = scmp.eq.s32.totalorder %s23, 1
      %p297 = por %p295, %p296
      %p298 = scmp.ne.s32.totalorder %s290, %s293
      %p299 = scmp.eq.s32.totalorder %s23, 0
      %p300 = por %p298, %p299
      %p301 = scmp.ne.s32.totalorder %s290, %s293
      %p302 = scmp.eq.s32.totalorder %s28, 1
      %p303 = por %p301, %p302
      %p304 = scmp.ne.s32.totalorder %s293, %s294
      %p305 = scmp.eq.s32.totalorder %s28, 0
      %p306 = por %p304, %p305
      %p307 = scmp.ne.s32.totalorder %s293, %s294
      %p308 = scmp.eq.s32.totalorder %s29, 1
      %p309 = por %p307, %p308
      %p311 = scmp.ne.s32.totalorder %s294, %s310
      %p312 = scmp.eq.s32.totalorder %s29, 0
      %p313 = por %p311, %p312
      %p314 = scmp.le.s32.totalorder 1, %s23
      %p315 = scmp.lt.s32.totalorder %s23, 3
      %p316 = pnand %p314, %p315
      %p317 = pneg %p316
      // Predicated region
      $region9: #{tpu_custom_call.1} parent=5 // pred_check
        _
      $region10: #{tpu_custom_call.1} parent=5 // pred_check_branch
        %319 = sbr.rel (%p316) target = $region12
      $region11: #{tpu_custom_call.1} parent=5 // pred_region
        %s320 = ssub.s32 %s23, 1
        // Predicated region
        $region13: #{tpu_custom_call.1} parent=11 // pred_check
          %p321 = pneg %p70
        $region14: #{tpu_custom_call.1} parent=11 // pred_check_branch
          %323 = sbr.rel (%p321) target = $region16
        $region15: #{tpu_custom_call.1} parent=11 // pred_region
          %325 = vsyncadd [#allocation3], 0
          %s327 = sshll.u32 %s1, 4
          %s328 = int_to_ptr.hbm [resolvable:$true] %s327
          %s329 = sshll.u32 [#allocation2], 4
          %s330 = int_to_ptr.vmem [resolvable:$true] %s329
          %332 = dma.hbm_to_vmem [thread:$0]  %s328, 16, %s330, [#allocation3]
        $region16: #{tpu_custom_call.1} parent=11 // pred_fallthru
          _
        // Predicated region
        $region17: #{tpu_custom_call.1} parent=11 // pred_check
          %p333 = pneg %p91
        $region18: #{tpu_custom_call.1} parent=11 // pred_check_branch
          %335 = sbr.rel (%p333) target = $region20
        $region19: #{tpu_custom_call.1} parent=11 // pred_region
          _
        $region20: #{tpu_custom_call.1} parent=11 // pred_fallthru
          _
        // Predicated region
        $region21: #{tpu_custom_call.1} parent=11 // pred_check
          %p336 = pneg %p112
        $region22: #{tpu_custom_call.1} parent=11 // pred_check_branch
          %338 = sbr.rel (%p336) target = $region24
        $region23: #{tpu_custom_call.1} parent=11 // pred_region
          _
        $region24: #{tpu_custom_call.1} parent=11 // pred_fallthru
          _
        // Predicated region
        $region25: #{tpu_custom_call.1} parent=11 // pred_check
          %p339 = pneg %p133
        $region26: #{tpu_custom_call.1} parent=11 // pred_check_branch
          %341 = sbr.rel (%p339) target = $region28
        $region27: #{tpu_custom_call.1} parent=11 // pred_region
          _
        $region28: #{tpu_custom_call.1} parent=11 // pred_fallthru
          _
        // Predicated region
        $region29: #{tpu_custom_call.1} parent=11 // pred_check
          %p342 = pneg %p154
        $region30: #{tpu_custom_call.1} parent=11 // pred_check_branch
          %344 = sbr.rel (%p342) target = $region32
        $region31: #{tpu_custom_call.1} parent=11 // pred_region
          _
        $region32: #{tpu_custom_call.1} parent=11 // pred_fallthru
          _
        // Predicated region
        $region33: #{tpu_custom_call.1} parent=11 // pred_check
          %p345 = pneg %p175
        $region34: #{tpu_custom_call.1} parent=11 // pred_check_branch
          %347 = sbr.rel (%p345) target = $region36
        $region35: #{tpu_custom_call.1} parent=11 // pred_region
          _
        $region36: #{tpu_custom_call.1} parent=11 // pred_fallthru
          _
        // Predicated region
        $region37: #{tpu_custom_call.1} parent=11 // pred_check
          %p348 = pneg %p196
        $region38: #{tpu_custom_call.1} parent=11 // pred_check_branch
          %350 = sbr.rel (%p348) target = $region40
        $region39: #{tpu_custom_call.1} parent=11 // pred_region
          _
        $region40: #{tpu_custom_call.1} parent=11 // pred_fallthru
          _
        // Predicated region
        $region41: #{tpu_custom_call.1} parent=11 // pred_check
          %p351 = pneg %p217
        $region42: #{tpu_custom_call.1} parent=11 // pred_check_branch
          %353 = sbr.rel (%p351) target = $region44
        $region43: #{tpu_custom_call.1} parent=11 // pred_region
          %355 = vsyncadd [#allocation6], 0
          %s356 = sshll.u32 %s8, 4
          %s357 = int_to_ptr.hbm [resolvable:$true] %s356
          %s358 = sshll.u32 [#allocation5], 4
          %s359 = int_to_ptr.vmem [resolvable:$true] %s358
          %364 = dma.hbm_to_vmem [thread:$0]  %s357, 256, %s359, [#allocation6], 64, 64, 4
        $region44: #{tpu_custom_call.1} parent=11 // pred_fallthru
          _
        // Predicated region
        $region45: #{tpu_custom_call.1} parent=11 // pred_check
          %p365 = pneg %p238
        $region46: #{tpu_custom_call.1} parent=11 // pred_check_branch
          %367 = sbr.rel (%p365) target = $region48
        $region47: #{tpu_custom_call.1} parent=11 // pred_region
          _
        $region48: #{tpu_custom_call.1} parent=11 // pred_fallthru
          _
        // Predicated region
        $region49: #{tpu_custom_call.1} parent=11 // pred_check
          %p368 = pneg %p259
        $region50: #{tpu_custom_call.1} parent=11 // pred_check_branch
          %370 = sbr.rel (%p368) target = $region52
        $region51: #{tpu_custom_call.1} parent=11 // pred_region
          _
        $region52: #{tpu_custom_call.1} parent=11 // pred_fallthru
          _
        // Predicated region
        $region53: #{tpu_custom_call.1} parent=11 // pred_check
          %p371 = pneg %p280
        $region54: #{tpu_custom_call.1} parent=11 // pred_check_branch
          %373 = sbr.rel (%p371) target = $region56
        $region55: #{tpu_custom_call.1} parent=11 // pred_region
          _
        $region56: #{tpu_custom_call.1} parent=11 // pred_fallthru
          _
      $region12: #{tpu_custom_call.1} parent=5 // pred_fallthru
        _
      %p374 = scmp.lt.s32.totalorder %s23, 2
      // Predicated region
      $region57: #{tpu_custom_call.1} parent=5 // pred_check
        %p375 = pneg %p374
      $region58: #{tpu_custom_call.1} parent=5 // pred_check_branch
        %377 = sbr.rel (%p375) target = $region60
      $region59: #{tpu_custom_call.1} parent=5 // pred_region
        // Predicated region
        $region61: #{tpu_custom_call.1} parent=59 // pred_check
          %p378 = pneg %p43
        $region62: #{tpu_custom_call.1} parent=59 // pred_check_branch
          %380 = sbr.rel (%p378) target = $region64
        $region63: #{tpu_custom_call.1} parent=59 // pred_region
          %p381 = scmp.lt.s32.totalorder %s23, 1
          %s382 = scalar_select %p381, %s23, 1
          %s383 = smul.addr %s382, 8
          %s384 = scalar_lea.vmem %s0, %s383
        $region64: #{tpu_custom_call.1} parent=59 // pred_fallthru
          _
      $region60: #{tpu_custom_call.1} parent=5 // pred_fallthru
        _
      %p385 = scmp.le.s32.totalorder 1, %s23
      %p386 = scmp.lt.s32.totalorder %s23, 3
      %p387 = pnand %p385, %p386
      %p388 = pneg %p387
      // Predicated region
      $region65: #{tpu_custom_call.1} parent=5 // pred_check
        _
      $region66: #{tpu_custom_call.1} parent=5 // pred_check_branch
        %390 = sbr.rel (%p387) target = $region68
      $region67: #{tpu_custom_call.1} parent=5 // pred_region
        %s391 = ssub.s32 %s23, 1
        // Predicated region
        $region69: #{tpu_custom_call.1} parent=67 // pred_check
          %p392 = pneg %p70
        $region70: #{tpu_custom_call.1} parent=67 // pred_check_branch
          %394 = sbr.rel (%p392) target = $region72
        $region71: #{tpu_custom_call.1} parent=67 // pred_region
          %396 = dma.done [#allocation3], 16
        $region72: #{tpu_custom_call.1} parent=67 // pred_fallthru
          _
        // Predicated region
        $region73: #{tpu_custom_call.1} parent=67 // pred_check
          %p397 = pneg %p217
        $region74: #{tpu_custom_call.1} parent=67 // pred_check_branch
          %399 = sbr.rel (%p397) target = $region76
        $region75: #{tpu_custom_call.1} parent=67 // pred_region
          %401 = dma.done [#allocation6], 256
        $region76: #{tpu_custom_call.1} parent=67 // pred_fallthru
          _
        %p402 = scmp.lt.s32.totalorder %s28, 1
        %s403 = scalar_select %p402, %s28, 1
        %s404 = smul.addr %s403, 8
        %s405 = scalar_lea.vmem %s0, %s404
        %p406 = pneg %p49
        %p407 = pneg %p46
        %p408 = pneg %p70
        %p409 = pneg %p67
        %p410 = pneg %p91
        %p411 = pneg %p88
        %p412 = pneg %p112
        %p413 = pneg %p109
        %p414 = pneg %p133
        %p415 = pneg %p130
        %p416 = pneg %p154
        %p417 = pneg %p151
        %p418 = pneg %p175
        %p419 = pneg %p172
        %p420 = pneg %p196
        %p421 = pneg %p193
        %p422 = pneg %p217
        %p423 = pneg %p214
        %p424 = pneg %p238
        %p425 = pneg %p235
        %p426 = pneg %p259
        %p427 = pneg %p256
        %p428 = pneg %p280
        %p429 = pneg %p277
        %p430 = pneg %p306
        %p431 = pneg %p303
        %s432 = sand.u32 %s293, 1
        %s433 = scalar_lea.sflag [#allocation4], %s432
        %s434 = sand.u32 %s293, 1
        %s435 = smul.addr %s434, 8
        %s436 = scalar_lea.vmem [#allocation7], %s435
        %p437 = scmp.lt.s32.totalorder %s28, 1
        %s438 = scalar_select %p437, %s28, 1
        %s439 = smul.addr %s438, 8
        %s440 = scalar_lea.vmem %s0, %s439
        %v442 = vld [vmem:[%s440] sm:$0xff]
        %v443 = vld [vmem:[#allocation2] sm:$0x1]
        %v444 = vld [vmem:[%s2] sm:$0x1]
        %vm445 = vcmask 261120
        %v446 = vsel %vm445, %v442, 0.0
        %447 = vadd.xlane.f32.xlu0 %v446
        %v448 = vpop.xlane.xlu0 %447
        %v449 = vrcp.pop 32.0
        %v450 = vmul.f32 32.0, %v449
        %v451 = vsub.f32 1.0, %v450
        %v452 = vmul.f32 %v449, %v451
        %v453 = vadd.f32 %v449, %v452
        %vm454 = vweird.f32 %v449
        %v455 = vsel %vm454, %v449, %v453
        %v456 = vmul.f32 %v448, %v455
        %v457 = vsub.f32 %v442, %v456
        %v458 = vmul.f32 %v457, %v457
        %v459 = vsel %vm445, %v458, 0.0
        %460 = vadd.xlane.f32.xlu0 %v459
        %v461 = vpop.xlane.xlu0 %460
        %v462 = vmul.f32 %v461, %v455
        %v463 = vadd.f32 %v462, 1e-05
        %v464 = vrsqrt.pop %v463
        %v465 = vmul.f32 %v464, %v463
        %v466 = vmul.f32 %v465, %v464
        %v467 = vmul.f32 0.5, %v466
        %v468 = vsub.f32 1.5, %v467
        %v469 = vmul.f32 %v464, %v468
        %vm470 = vweird.f32 %v463
        %vm471 = vweird.f32 %v464
        %vm472 = vmor %vm470, %vm471
        %v473 = vsel %vm472, %v464, %v469
        %v474 = vmul.f32 %v457, %v473
        %v476 = vperm.slane %v443, 0
        %v478 = vmul.f32 %v474, %v476
        %v480 = vperm.slane %v444, 0
        %v482 = vadd.f32 %v478, %v480
        %v483 = vpack.c.bf16 %v482, %v482
        %v484 = vld [vmem:[%s3] sm:$0xf]
        %v485 = vld [vmem:[%s3 + $0x4] sm:$0xf]
        %v486 = vld [vmem:[%s3 + $0x8] sm:$0xf]
        %v487 = vld [vmem:[%s3 + $0xc] sm:$0xf]
        %v492 = vunpack.c.l.b16 %v484
        %v493 = vunpack.c.l.b16 %v485
        %v494 = vunpack.c.l.b16 %v486
        %v495 = vunpack.c.l.b16 %v487
        %v496 = vpack.c.b16 %v493, %v492
        %v497 = vpack.c.b16 %v495, %v494
        %v501 = vsel %vm445, %v483, 0
        %503 = vmatpush.bf16.msra.mxu0 0
        %504 = vmatpush.bf16.msra.mxu0 0
        %505 = vmatpush.bf16.msra.mxu0 0
        %506 = vmatpush.bf16.msra.mxu0 0
        %507 = vmatpush.bf16.msra.mxu0 0
        %508 = vmatpush.bf16.msra.mxu0 0
        %509 = vmatpush.bf16.msra.mxu0 %v497
        %510 = vmatpush.bf16.msra.mxu0 %v496
        %511 = vmatmul.bf16.gmra.mxu0 %v501
        %v512 = vpop.f32.mrf.mxu0
        %v513 = vadd.f32 0.0, %v512
        %v514 = vpop.f32.mrf.mxu0
        %515 = vdwg.mxu0
        %517 = vrot.lane.b32.xlu0 %v513, 120
        %v518 = vpop.permute.xlu0 %517
        %520 = vrot.lane.b32.xlu0 %v513, 112
        %v521 = vpop.permute.xlu0 %520
        %523 = vrot.lane.b32.xlu0 %v513, 104
        %v524 = vpop.permute.xlu0 %523
        %526 = vrot.lane.b32.xlu0 %v513, 96
        %v527 = vpop.permute.xlu0 %526
        %529 = vrot.lane.b32.xlu0 %v513, 88
        %v530 = vpop.permute.xlu0 %529
        %532 = vrot.lane.b32.xlu0 %v513, 80
        %v533 = vpop.permute.xlu0 %532
        %535 = vrot.lane.b32.xlu0 %v513, 72
        %v536 = vpop.permute.xlu0 %535
        %538 = vrot.lane.b32.xlu0 %v513, 64
        %v539 = vpop.permute.xlu0 %538
        %541 = vrot.lane.b32.xlu0 %v513, 56
        %v542 = vpop.permute.xlu0 %541
        %544 = vrot.lane.b32.xlu0 %v513, 48
        %v545 = vpop.permute.xlu0 %544
        %547 = vrot.lane.b32.xlu0 %v513, 40
        %v548 = vpop.permute.xlu0 %547
        %v550 = vrot.slane %v521, 4
        %vm551 = vcmask 1047556
        %v552 = vsel %vm551, %v550, %v513
        %v553 = vrot.slane %v513, 4
        %v554 = vsel %vm551, %v521, %v553
        %v556 = vunpack.c.l.s4 1983009808
        %v557 = vunpack.c.0.s8 %v556
        %v558 = vperm.slane %v552, %v557
        %v560 = vunpack.c.l.s4 1983009808
        %v561 = vunpack.c.0.s8 %v560
        %v562 = vperm.slane %v554, %v561
        %v563 = vrot.slane %v524, 4
        %v564 = vsel %vm551, %v563, %v518
        %v565 = vrot.slane %v518, 4
        %v566 = vsel %vm551, %v524, %v565
        %v568 = vunpack.c.l.s4 1983009808
        %v569 = vunpack.c.0.s8 %v568
        %v570 = vperm.slane %v564, %v569
        %v572 = vunpack.c.l.s4 1983009808
        %v573 = vunpack.c.0.s8 %v572
        %v574 = vperm.slane %v566, %v573
        %v575 = vrot.slane %v533, 4
        %v576 = vsel %vm551, %v575, %v527
        %v577 = vrot.slane %v527, 4
        %v578 = vsel %vm551, %v533, %v577
        %v580 = vunpack.c.l.s4 1983009808
        %v581 = vunpack.c.0.s8 %v580
        %v582 = vperm.slane %v576, %v581
        %v584 = vunpack.c.l.s4 1983009808
        %v585 = vunpack.c.0.s8 %v584
        %v586 = vperm.slane %v578, %v585
        %v587 = vrot.slane %v536, 4
        %v588 = vsel %vm551, %v587, %v530
        %v589 = vrot.slane %v530, 4
        %v590 = vsel %vm551, %v536, %v589
        %v592 = vunpack.c.l.s4 1983009808
        %v593 = vunpack.c.0.s8 %v592
        %v594 = vperm.slane %v588, %v593
        %v596 = vunpack.c.l.s4 1983009808
        %v597 = vunpack.c.0.s8 %v596
        %v598 = vperm.slane %v590, %v597
        %v599 = vrot.slane %v570, 4
        %v600 = vsel %vm551, %v599, %v558
        %v601 = vrot.slane %v558, 4
        %v602 = vsel %vm551, %v570, %v601
        %v604 = vunpack.c.l.s4 1934713408
        %v605 = vunpack.c.0.s8 %v604
        %v606 = vperm.slane %v600, %v605
        %v608 = vunpack.c.l.s4 1934713408
        %v609 = vunpack.c.0.s8 %v608
        %v610 = vperm.slane %v602, %v609
        %v611 = vrot.slane %v574, 4
        %v612 = vsel %vm551, %v611, %v562
        %v613 = vrot.slane %v562, 4
        %v614 = vsel %vm551, %v574, %v613
        %v616 = vunpack.c.l.s4 1934713408
        %v617 = vunpack.c.0.s8 %v616
        %v618 = vperm.slane %v612, %v617
        %v620 = vunpack.c.l.s4 1934713408
        %v621 = vunpack.c.0.s8 %v620
        %v622 = vperm.slane %v614, %v621
        %v623 = vrot.slane %v594, 4
        %v624 = vsel %vm551, %v623, %v582
        %v625 = vrot.slane %v582, 4
        %v626 = vsel %vm551, %v594, %v625
        %v628 = vunpack.c.l.s4 1934713408
        %v629 = vunpack.c.0.s8 %v628
        %v630 = vperm.slane %v624, %v629
        %v632 = vunpack.c.l.s4 1934713408
        %v633 = vunpack.c.0.s8 %v632
        %v634 = vperm.slane %v626, %v633
        %v635 = vrot.slane %v598, 4
        %v636 = vsel %vm551, %v635, %v586
        %v637 = vrot.slane %v586, 4
        %v638 = vsel %vm551, %v598, %v637
        %v640 = vunpack.c.l.s4 1934713408
        %v641 = vunpack.c.0.s8 %v640
        %v642 = vperm.slane %v636, %v641
        %v644 = vunpack.c.l.s4 1934713408
        %v645 = vunpack.c.0.s8 %v644
        %v646 = vperm.slane %v638, %v645
        %v647 = vrot.slane %v630, 4
        %v648 = vsel %vm551, %v647, %v606
        %v649 = vrot.slane %v606, 4
        %v650 = vsel %vm551, %v630, %v649
        %v651 = vrot.slane %v634, 4
        %v652 = vsel %vm551, %v651, %v610
        %v653 = vrot.slane %v610, 4
        %v654 = vsel %vm551, %v634, %v653
        %v655 = vrot.slane %v642, 4
        %v656 = vsel %vm551, %v655, %v618
        %v657 = vrot.slane %v618, 4
        %v658 = vsel %vm551, %v642, %v657
        %v659 = vrot.slane %v646, 4
        %v660 = vsel %vm551, %v659, %v622
        %v661 = vrot.slane %v622, 4
        %v662 = vsel %vm551, %v646, %v661
        %v663 = vrot.slane %v545, 4
        %v664 = vsel %vm551, %v663, %v539
        %v665 = vrot.slane %v539, 4
        %v666 = vsel %vm551, %v545, %v665
        %v668 = vunpack.c.l.s4 1983009808
        %v669 = vunpack.c.0.s8 %v668
        %v670 = vperm.slane %v664, %v669
        %v672 = vunpack.c.l.s4 1983009808
        %v673 = vunpack.c.0.s8 %v672
        %v674 = vperm.slane %v666, %v673
        %v675 = vrot.slane %v548, 4
        %v676 = vsel %vm551, %v675, %v542
        %v677 = vrot.slane %v542, 4
        %v678 = vsel %vm551, %v548, %v677
        %v680 = vunpack.c.l.s4 1983009808
        %v681 = vunpack.c.0.s8 %v680
        %v682 = vperm.slane %v676, %v681
        %v684 = vunpack.c.l.s4 1983009808
        %v685 = vunpack.c.0.s8 %v684
        %v686 = vperm.slane %v678, %v685
        %v687 = vrot.slane %v682, 4
        %v688 = vsel %vm551, %v687, %v670
        %v689 = vrot.slane %v670, 4
        %v690 = vsel %vm551, %v682, %v689
        %v692 = vunpack.c.l.s4 1934713408
        %v693 = vunpack.c.0.s8 %v692
        %v694 = vperm.slane %v688, %v693
        %v696 = vunpack.c.l.s4 1934713408
        %v697 = vunpack.c.0.s8 %v696
        %v698 = vperm.slane %v690, %v697
        %v699 = vrot.slane %v686, 4
        %v700 = vsel %vm551, %v699, %v674
        %v701 = vrot.slane %v674, 4
        %v702 = vsel %vm551, %v686, %v701
        %v704 = vunpack.c.l.s4 1934713408
        %v705 = vunpack.c.0.s8 %v704
        %v706 = vperm.slane %v700, %v705
        %v708 = vunpack.c.l.s4 1934713408
        %v709 = vunpack.c.0.s8 %v708
        %v710 = vperm.slane %v702, %v709
        %v711 = vrot.slane %v694, 4
        %v712 = vsel %vm551, 0.0, %v711
        %v713 = vrot.slane %v698, 4
        %v714 = vsel %vm551, 0.0, %v713
        %v715 = vrot.slane %v706, 4
        %v716 = vsel %vm551, 0.0, %v715
        %v717 = vrot.slane %v710, 4
        %v718 = vsel %vm551, 0.0, %v717
        %v719 = vrot.slane %v652, 4
        %v720 = vsel %vm551, %v719, %v648
        %v721 = vrot.slane %v648, 4
        %v722 = vsel %vm551, %v652, %v721
        %v724 = vunpack.c.l.s4 1983009808
        %v725 = vunpack.c.0.s8 %v724
        %v726 = vperm.slane %v720, %v725
        %v728 = vunpack.c.l.s4 1983009808
        %v729 = vunpack.c.0.s8 %v728
        %v730 = vperm.slane %v722, %v729
        %v731 = vrot.slane %v654, 4
        %v732 = vsel %vm551, %v731, %v650
        %v733 = vrot.slane %v650, 4
        %v734 = vsel %vm551, %v654, %v733
        %v736 = vunpack.c.l.s4 1983009808
        %v737 = vunpack.c.0.s8 %v736
        %v738 = vperm.slane %v732, %v737
        %v740 = vunpack.c.l.s4 1983009808
        %v741 = vunpack.c.0.s8 %v740
        %v742 = vperm.slane %v734, %v741
        %v743 = vrot.slane %v660, 4
        %v744 = vsel %vm551, %v743, %v656
        %v745 = vrot.slane %v656, 4
        %v746 = vsel %vm551, %v660, %v745
        %v748 = vunpack.c.l.s4 1983009808
        %v749 = vunpack.c.0.s8 %v748
        %v750 = vperm.slane %v744, %v749
        %v752 = vunpack.c.l.s4 1983009808
        %v753 = vunpack.c.0.s8 %v752
        %v754 = vperm.slane %v746, %v753
        %v755 = vrot.slane %v662, 4
        %v756 = vsel %vm551, %v755, %v658
        %v757 = vrot.slane %v658, 4
        %v758 = vsel %vm551, %v662, %v757
        %v760 = vunpack.c.l.s4 1983009808
        %v761 = vunpack.c.0.s8 %v760
        %v762 = vperm.slane %v756, %v761
        %v764 = vunpack.c.l.s4 1983009808
        %v765 = vunpack.c.0.s8 %v764
        %v766 = vperm.slane %v758, %v765
        %v767 = vrot.slane %v738, 4
        %v768 = vsel %vm551, %v767, %v726
        %v769 = vrot.slane %v726, 4
        %v770 = vsel %vm551, %v738, %v769
        %v772 = vunpack.c.l.s4 1934713408
        %v773 = vunpack.c.0.s8 %v772
        %v774 = vperm.slane %v768, %v773
        %v776 = vunpack.c.l.s4 1934713408
        %v777 = vunpack.c.0.s8 %v776
        %v778 = vperm.slane %v770, %v777
        %v779 = vrot.slane %v742, 4
        %v780 = vsel %vm551, %v779, %v730
        %v781 = vrot.slane %v730, 4
        %v782 = vsel %vm551, %v742, %v781
        %v784 = vunpack.c.l.s4 1934713408
        %v785 = vunpack.c.0.s8 %v784
        %v786 = vperm.slane %v780, %v785
        %v788 = vunpack.c.l.s4 1934713408
        %v789 = vunpack.c.0.s8 %v788
        %v790 = vperm.slane %v782, %v789
        %v791 = vrot.slane %v762, 4
        %v792 = vsel %vm551, %v791, %v750
        %v793 = vrot.slane %v750, 4
        %v794 = vsel %vm551, %v762, %v793
        %v796 = vunpack.c.l.s4 1934713408
        %v797 = vunpack.c.0.s8 %v796
        %v798 = vperm.slane %v792, %v797
        %v800 = vunpack.c.l.s4 1934713408
        %v801 = vunpack.c.0.s8 %v800
        %v802 = vperm.slane %v794, %v801
        %v803 = vrot.slane %v766, 4
        %v804 = vsel %vm551, %v803, %v754
        %v805 = vrot.slane %v754, 4
        %v806 = vsel %vm551, %v766, %v805
        %v808 = vunpack.c.l.s4 1934713408
        %v809 = vunpack.c.0.s8 %v808
        %v810 = vperm.slane %v804, %v809
        %v812 = vunpack.c.l.s4 1934713408
        %v813 = vunpack.c.0.s8 %v812
        %v814 = vperm.slane %v806, %v813
        %v815 = vrot.slane %v798, 4
        %v816 = vsel %vm551, %v815, %v774
        %v817 = vrot.slane %v774, 4
        %v818 = vsel %vm551, %v798, %v817
        %v819 = vrot.slane %v802, 4
        %v820 = vsel %vm551, %v819, %v778
        %v821 = vrot.slane %v778, 4
        %v822 = vsel %vm551, %v802, %v821
        %v823 = vrot.slane %v810, 4
        %v824 = vsel %vm551, %v823, %v786
        %v825 = vrot.slane %v786, 4
        %v826 = vsel %vm551, %v810, %v825
        %v827 = vrot.slane %v814, 4
        %v828 = vsel %vm551, %v827, %v790
        %v829 = vrot.slane %v790, 4
        %v830 = vsel %vm551, %v814, %v829
        %v831 = vsel %vm551, %v713, %v694
        %v833 = vunpack.c.l.s4 1983009808
        %v834 = vunpack.c.0.s8 %v833
        %v835 = vperm.slane %v831, %v834
        %v836 = vrot.slane %v714, 4
        %v837 = vsel %vm551, %v836, %v712
        %v839 = vunpack.c.l.s4 1983009808
        %v840 = vunpack.c.0.s8 %v839
        %v841 = vperm.slane %v837, %v840
        %v842 = vsel %vm551, %v717, %v706
        %v844 = vunpack.c.l.s4 1983009808
        %v845 = vunpack.c.0.s8 %v844
        %v846 = vperm.slane %v842, %v845
        %v847 = vrot.slane %v718, 4
        %v848 = vsel %vm551, %v847, %v716
        %v850 = vunpack.c.l.s4 1983009808
        %v851 = vunpack.c.0.s8 %v850
        %v852 = vperm.slane %v848, %v851
        %v853 = vrot.slane %v841, 4
        %v854 = vsel %vm551, %v853, %v835
        %v855 = vrot.slane %v835, 4
        %v856 = vsel %vm551, %v841, %v855
        %v858 = vunpack.c.l.s4 1934713408
        %v859 = vunpack.c.0.s8 %v858
        %v860 = vperm.slane %v854, %v859
        %v862 = vunpack.c.l.s4 1934713408
        %v863 = vunpack.c.0.s8 %v862
        %v864 = vperm.slane %v856, %v863
        %v865 = vrot.slane %v852, 4
        %v866 = vsel %vm551, %v865, %v846
        %v867 = vrot.slane %v846, 4
        %v868 = vsel %vm551, %v852, %v867
        %v870 = vunpack.c.l.s4 1934713408
        %v871 = vunpack.c.0.s8 %v870
        %v872 = vperm.slane %v866, %v871
        %v874 = vunpack.c.l.s4 1934713408
        %v875 = vunpack.c.0.s8 %v874
        %v876 = vperm.slane %v868, %v875
        %v877 = vrot.slane %v872, 4
        %v878 = vsel %vm551, %v877, %v860
        %v879 = vrot.slane %v860, 4
        %v880 = vsel %vm551, %v872, %v879
        %v881 = vrot.slane %v876, 4
        %v882 = vsel %vm551, %v881, %v864
        %v883 = vrot.slane %v864, 4
        %v884 = vsel %vm551, %v876, %v883
        %v885 = vpack.c.bf16 %v816, %v816
        %v886 = vpack.c.bf16 %v818, %v818
        %v887 = vpack.c.bf16 %v820, %v820
        %v888 = vpack.c.bf16 %v822, %v822
        %v889 = vpack.c.bf16 %v824, %v824
        %v890 = vpack.c.bf16 %v826, %v826
        %v891 = vpack.c.bf16 %v828, %v828
        %v892 = vpack.c.bf16 %v830, %v830
        %v893 = vpack.c.bf16 %v878, %v878
        %v894 = vpack.c.bf16 %v880, %v880
        %v895 = vpack.c.bf16 %v882, %v882
        %v896 = vpack.c.bf16 %v884, %v884
        %v897 = vunpack.c.l.bf16 %v885
        %v898 = vunpack.c.l.bf16 %v886
        %v899 = vunpack.c.l.bf16 %v887
        %v900 = vunpack.c.l.bf16 %v888
        %v901 = vmul.f32 %v897, 0.35351563
        %v902 = vmul.f32 %v898, 0.35351563
        %v903 = vmul.f32 %v899, 0.35351563
        %v904 = vmul.f32 %v900, 0.35351563
        %v905 = vpack.c.bf16 %v901, %v901
        %v906 = vpack.c.bf16 %v902, %v902
        %v907 = vpack.c.bf16 %v903, %v903
        %v908 = vpack.c.bf16 %v904, %v904
        %vm909 = vcmask 64512
        %v911 = vsel %vm909, %v905, 0
        %v914 = vsel %vm909, %v889, 0
        %916 = vmatpush.bf16.xpose.msra.mxu0 0
        %917 = vmatpush.bf16.xpose.msra.mxu0 0
        %918 = vmatpush.bf16.xpose.msra.mxu0 0
        %919 = vmatpush.bf16.xpose.msra.mxu0 0
        %920 = vmatpush.bf16.xpose.msra.mxu0 0
        %921 = vmatpush.bf16.xpose.msra.mxu0 0
        %922 = vmatpush.bf16.xpose.msra.mxu0 0
        %923 = vmatpush.bf16.xpose.msra.mxu0 %v914
        %924 = vmatmul.bf16.gmra.mxu0 %v911
        %v925 = vpop.f32.mrf.mxu0
        %v926 = vadd.f32 0.0, %v925
        %v927 = vpop.f32.mrf.mxu0
        %928 = vdwg.mxu0
        %v930 = vsel %vm909, %v906, 0
        %v933 = vsel %vm909, %v890, 0
        %935 = vmatpush.bf16.xpose.msra.mxu0 0
        %936 = vmatpush.bf16.xpose.msra.mxu0 0
        %937 = vmatpush.bf16.xpose.msra.mxu0 0
        %938 = vmatpush.bf16.xpose.msra.mxu0 0
        %939 = vmatpush.bf16.xpose.msra.mxu0 0
        %940 = vmatpush.bf16.xpose.msra.mxu0 0
        %941 = vmatpush.bf16.xpose.msra.mxu0 0
        %942 = vmatpush.bf16.xpose.msra.mxu0 %v933
        %943 = vmatmul.bf16.gmra.mxu0 %v930
        %v944 = vpop.f32.mrf.mxu0
        %v945 = vadd.f32 0.0, %v944
        %v946 = vpop.f32.mrf.mxu0
        %947 = vdwg.mxu0
        %v949 = vsel %vm909, %v907, 0
        %v952 = vsel %vm909, %v891, 0
        %954 = vmatpush.bf16.xpose.msra.mxu0 0
        %955 = vmatpush.bf16.xpose.msra.mxu0 0
        %956 = vmatpush.bf16.xpose.msra.mxu0 0
        %957 = vmatpush.bf16.xpose.msra.mxu0 0
        %958 = vmatpush.bf16.xpose.msra.mxu0 0
        %959 = vmatpush.bf16.xpose.msra.mxu0 0
        %960 = vmatpush.bf16.xpose.msra.mxu0 0
        %961 = vmatpush.bf16.xpose.msra.mxu0 %v952
        %962 = vmatmul.bf16.gmra.mxu0 %v949
        %v963 = vpop.f32.mrf.mxu0
        %v964 = vadd.f32 0.0, %v963
        %v965 = vpop.f32.mrf.mxu0
        %966 = vdwg.mxu0
        %v968 = vsel %vm909, %v908, 0
        %v971 = vsel %vm909, %v892, 0
        %973 = vmatpush.bf16.xpose.msra.mxu0 0
        %974 = vmatpush.bf16.xpose.msra.mxu0 0
        %975 = vmatpush.bf16.xpose.msra.mxu0 0
        %976 = vmatpush.bf16.xpose.msra.mxu0 0
        %977 = vmatpush.bf16.xpose.msra.mxu0 0
        %978 = vmatpush.bf16.xpose.msra.mxu0 0
        %979 = vmatpush.bf16.xpose.msra.mxu0 0
        %980 = vmatpush.bf16.xpose.msra.mxu0 %v971
        %981 = vmatmul.bf16.gmra.mxu0 %v968
        %v982 = vpop.f32.mrf.mxu0
        %v983 = vadd.f32 0.0, %v982
        %v984 = vpop.f32.mrf.mxu0
        %985 = vdwg.mxu0
        %v986 = vsel %vm909, %v926, -inf
        %987 = vmax.xlane.f32.xlu0 %v986
        %v988 = vpop.xlane.xlu0 %987
        %v989 = vsel %vm909, %v945, -inf
        %990 = vmax.xlane.f32.xlu0 %v989
        %v991 = vpop.xlane.xlu0 %990
        %v992 = vsel %vm909, %v964, -inf
        %993 = vmax.xlane.f32.xlu0 %v992
        %v994 = vpop.xlane.xlu0 %993
        %v995 = vsel %vm909, %v983, -inf
        %996 = vmax.xlane.f32.xlu0 %v995
        %v997 = vpop.xlane.xlu0 %996
        %v998 = vsub.f32 %v926, %v988
        %v999 = vsub.f32 %v945, %v991
        %v1000 = vsub.f32 %v964, %v994
        %v1001 = vsub.f32 %v983, %v997
        %v1002 = vmul.f32 %v998, 1.442695
        %v1003 = vpow.pop %v1002
        %v1004 = vmul.f32 %v999, 1.442695
        %v1005 = vpow.pop %v1004
        %v1006 = vmul.f32 %v1000, 1.442695
        %v1007 = vpow.pop %v1006
        %v1008 = vmul.f32 %v1001, 1.442695
        %v1009 = vpow.pop %v1008
        %v1010 = vsel %vm909, %v1003, 0.0
        %1011 = vadd.xlane.f32.xlu0 %v1010
        %v1012 = vpop.xlane.xlu0 %1011
        %v1013 = vsel %vm909, %v1005, 0.0
        %1014 = vadd.xlane.f32.xlu0 %v1013
        %v1015 = vpop.xlane.xlu0 %1014
        %v1016 = vsel %vm909, %v1007, 0.0
        %1017 = vadd.xlane.f32.xlu0 %v1016
        %v1018 = vpop.xlane.xlu0 %1017
        %v1019 = vsel %vm909, %v1009, 0.0
        %1020 = vadd.xlane.f32.xlu0 %v1019
        %v1021 = vpop.xlane.xlu0 %1020
        %v1022 = vrcp.pop %v1012
        %v1023 = vrcp.pop %v1015
        %v1024 = vrcp.pop %v1018
        %v1025 = vrcp.pop %v1021
        %v1026 = vmul.f32 %v1003, %v1022
        %v1027 = vmul.f32 %v1005, %v1023
        %v1028 = vmul.f32 %v1007, %v1024
        %v1029 = vmul.f32 %v1009, %v1025
        %v1030 = vpack.c.bf16 %v1026, %v1026
        %v1031 = vpack.c.bf16 %v1027, %v1027
        %v1032 = vpack.c.bf16 %v1028, %v1028
        %v1033 = vpack.c.bf16 %v1029, %v1029
        %v1035 = vsel %vm909, %v1030, 0
        %vm1037 = vcmask 1043456
        %v1039 = vsel %vm1037, %v893, 0
        %1041 = vmatpush.bf16.msra.mxu0 0
        %1042 = vmatpush.bf16.msra.mxu0 0
        %1043 = vmatpush.bf16.msra.mxu0 0
        %1044 = vmatpush.bf16.msra.mxu0 0
        %1045 = vmatpush.bf16.msra.mxu0 0
        %1046 = vmatpush.bf16.msra.mxu0 0
        %1047 = vmatpush.bf16.msra.mxu0 0
        %1048 = vmatpush.bf16.msra.mxu0 %v1039
        %1049 = vmatmul.bf16.gmra.mxu0 %v1035
        %v1050 = vpop.f32.mrf.mxu0
        %v1051 = vadd.f32 0.0, %v1050
        %v1052 = vpop.f32.mrf.mxu0
        %1053 = vdwg.mxu0
        %v1055 = vsel %vm909, %v1031, 0
        %v1058 = vsel %vm1037, %v894, 0
        %1060 = vmatpush.bf16.msra.mxu0 0
        %1061 = vmatpush.bf16.msra.mxu0 0
        %1062 = vmatpush.bf16.msra.mxu0 0
        %1063 = vmatpush.bf16.msra.mxu0 0
        %1064 = vmatpush.bf16.msra.mxu0 0
        %1065 = vmatpush.bf16.msra.mxu0 0
        %1066 = vmatpush.bf16.msra.mxu0 0
        %1067 = vmatpush.bf16.msra.mxu0 %v1058
        %1068 = vmatmul.bf16.gmra.mxu0 %v1055
        %v1069 = vpop.f32.mrf.mxu0
        %v1070 = vadd.f32 0.0, %v1069
        %v1071 = vpop.f32.mrf.mxu0
        %1072 = vdwg.mxu0
        %v1074 = vsel %vm909, %v1032, 0
        %v1077 = vsel %vm1037, %v895, 0
        %1079 = vmatpush.bf16.msra.mxu0 0
        %1080 = vmatpush.bf16.msra.mxu0 0
        %1081 = vmatpush.bf16.msra.mxu0 0
        %1082 = vmatpush.bf16.msra.mxu0 0
        %1083 = vmatpush.bf16.msra.mxu0 0
        %1084 = vmatpush.bf16.msra.mxu0 0
        %1085 = vmatpush.bf16.msra.mxu0 0
        %1086 = vmatpush.bf16.msra.mxu0 %v1077
        %1087 = vmatmul.bf16.gmra.mxu0 %v1074
        %v1088 = vpop.f32.mrf.mxu0
        %v1089 = vadd.f32 0.0, %v1088
        %v1090 = vpop.f32.mrf.mxu0
        %1091 = vdwg.mxu0
        %v1093 = vsel %vm909, %v1033, 0
        %v1096 = vsel %vm1037, %v896, 0
        %1098 = vmatpush.bf16.msra.mxu0 0
        %1099 = vmatpush.bf16.msra.mxu0 0
        %1100 = vmatpush.bf16.msra.mxu0 0
        %1101 = vmatpush.bf16.msra.mxu0 0
        %1102 = vmatpush.bf16.msra.mxu0 0
        %1103 = vmatpush.bf16.msra.mxu0 0
        %1104 = vmatpush.bf16.msra.mxu0 0
        %1105 = vmatpush.bf16.msra.mxu0 %v1096
        %1106 = vmatmul.bf16.gmra.mxu0 %v1093
        %v1107 = vpop.f32.mrf.mxu0
        %v1108 = vadd.f32 0.0, %v1107
        %v1109 = vpop.f32.mrf.mxu0
        %1110 = vdwg.mxu0
        %v1111 = vrot.slane %v1089, 4
        %v1112 = vsel %vm551, %v1111, %v1051
        %v1113 = vrot.slane %v1051, 4
        %v1114 = vsel %vm551, %v1089, %v1113
        %v1116 = vunpack.c.l.s4 1983009808
        %v1117 = vunpack.c.0.s8 %v1116
        %v1118 = vperm.slane %v1112, %v1117
        %v1120 = vunpack.c.l.s4 1983009808
        %v1121 = vunpack.c.0.s8 %v1120
        %v1122 = vperm.slane %v1114, %v1121
        %v1123 = vrot.slane %v1108, 4
        %v1124 = vsel %vm551, %v1123, %v1070
        %v1125 = vrot.slane %v1070, 4
        %v1126 = vsel %vm551, %v1108, %v1125
        %v1128 = vunpack.c.l.s4 1983009808
        %v1129 = vunpack.c.0.s8 %v1128
        %v1130 = vperm.slane %v1124, %v1129
        %v1132 = vunpack.c.l.s4 1983009808
        %v1133 = vunpack.c.0.s8 %v1132
        %v1134 = vperm.slane %v1126, %v1133
        %v1135 = vrot.slane %v1130, 4
        %v1136 = vsel %vm551, %v1135, %v1118
        %v1137 = vrot.slane %v1118, 4
        %v1138 = vsel %vm551, %v1130, %v1137
        %v1140 = vunpack.c.l.s4 1934713408
        %v1141 = vunpack.c.0.s8 %v1140
        %v1142 = vperm.slane %v1136, %v1141
        %v1144 = vunpack.c.l.s4 1934713408
        %v1145 = vunpack.c.0.s8 %v1144
        %v1146 = vperm.slane %v1138, %v1145
        %v1147 = vrot.slane %v1134, 4
        %v1148 = vsel %vm551, %v1147, %v1122
        %v1149 = vrot.slane %v1122, 4
        %v1150 = vsel %vm551, %v1134, %v1149
        %v1152 = vunpack.c.l.s4 1934713408
        %v1153 = vunpack.c.0.s8 %v1152
        %v1154 = vperm.slane %v1148, %v1153
        %v1156 = vunpack.c.l.s4 1934713408
        %v1157 = vunpack.c.0.s8 %v1156
        %v1158 = vperm.slane %v1150, %v1157
        %v1159 = vrot.slane %v1142, 4
        %v1160 = vsel %vm551, 0.0, %v1159
        %v1161 = vrot.slane %v1146, 4
        %v1162 = vsel %vm551, 0.0, %v1161
        %v1163 = vrot.slane %v1154, 4
        %v1164 = vsel %vm551, 0.0, %v1163
        %v1165 = vrot.slane %v1158, 4
        %v1166 = vsel %vm551, 0.0, %v1165
        %v1167 = vsel %vm551, %v1161, %v1142
        %v1169 = vunpack.c.l.s4 1983009808
        %v1170 = vunpack.c.0.s8 %v1169
        %v1171 = vperm.slane %v1167, %v1170
        %v1172 = vrot.slane %v1162, 4
        %v1173 = vsel %vm551, %v1172, %v1160
        %v1175 = vunpack.c.l.s4 1983009808
        %v1176 = vunpack.c.0.s8 %v1175
        %v1177 = vperm.slane %v1173, %v1176
        %v1178 = vsel %vm551, %v1165, %v1154
        %v1180 = vunpack.c.l.s4 1983009808
        %v1181 = vunpack.c.0.s8 %v1180
        %v1182 = vperm.slane %v1178, %v1181
        %v1183 = vrot.slane %v1166, 4
        %v1184 = vsel %vm551, %v1183, %v1164
        %v1186 = vunpack.c.l.s4 1983009808
        %v1187 = vunpack.c.0.s8 %v1186
        %v1188 = vperm.slane %v1184, %v1187
        %v1189 = vrot.slane %v1177, 4
        %v1190 = vsel %vm551, %v1189, %v1171
        %v1191 = vrot.slane %v1171, 4
        %v1192 = vsel %vm551, %v1177, %v1191
        %v1194 = vunpack.c.l.s4 1934713408
        %v1195 = vunpack.c.0.s8 %v1194
        %v1196 = vperm.slane %v1190, %v1195
        %v1198 = vunpack.c.l.s4 1934713408
        %v1199 = vunpack.c.0.s8 %v1198
        %v1200 = vperm.slane %v1192, %v1199
        %v1201 = vrot.slane %v1188, 4
        %v1202 = vsel %vm551, %v1201, %v1182
        %v1203 = vrot.slane %v1182, 4
        %v1204 = vsel %vm551, %v1188, %v1203
        %v1206 = vunpack.c.l.s4 1934713408
        %v1207 = vunpack.c.0.s8 %v1206
        %v1208 = vperm.slane %v1202, %v1207
        %v1210 = vunpack.c.l.s4 1934713408
        %v1211 = vunpack.c.0.s8 %v1210
        %v1212 = vperm.slane %v1204, %v1211
        %v1213 = vrot.slane %v1208, 4
        %v1214 = vsel %vm551, %v1213, %v1196
        %v1215 = vrot.slane %v1196, 4
        %v1216 = vsel %vm551, %v1208, %v1215
        %v1217 = vrot.slane %v1212, 4
        %v1218 = vsel %vm551, %v1217, %v1200
        %v1219 = vrot.slane %v1200, 4
        %v1220 = vsel %vm551, %v1212, %v1219
        %1222 = vrot.lane.b32.xlu0 %v1216, 8
        %v1223 = vpop.permute.xlu0 %1222
        %1226 = vrot.lane.b32.xlu0 %v1218, 16
        %v1227 = vpop.permute.xlu0 %1226
        %1230 = vrot.lane.b32.xlu0 %v1220, 24
        %v1231 = vpop.permute.xlu0 %1230
        %v1233 = vsel %vm909, %v1214, %v1223
        %vm1234 = vcmask 130048
        %v1235 = vsel %vm1234, %v1233, %v1227
        %vm1236 = vcmask 195584
        %v1237 = vsel %vm1236, %v1235, %v1231
        %v1238 = vpack.c.bf16 %v1237, %v1237
        %v1239 = vld [vmem:[%s4] sm:$0xf]
        %v1240 = vld [vmem:[%s4 + $0x4] sm:$0xf]
        %v1241 = vld [vmem:[%s4 + $0x8] sm:$0xf]
        %v1242 = vld [vmem:[%s4 + $0xc] sm:$0xf]
        %v1243 = vld [vmem:[%s5] sm:$0x1]
        %v1245 = vperm.slane %v1243, 0
        %v1251 = vunpack.c.l.b16 %v1239
        %v1252 = vunpack.c.l.b16 %v1240
        %v1253 = vunpack.c.l.b16 %v1241
        %v1254 = vunpack.c.l.b16 %v1242
        %v1255 = vpack.c.b16 %v1252, %v1251
        %v1256 = vpack.c.b16 %v1254, %v1253
        %v1260 = vsel %vm445, %v1238, 0
        %1262 = vmatpush.bf16.msra.mxu0 0
        %1263 = vmatpush.bf16.msra.mxu0 0
        %1264 = vmatpush.bf16.msra.mxu0 0
        %1265 = vmatpush.bf16.msra.mxu0 0
        %1266 = vmatpush.bf16.msra.mxu0 0
        %1267 = vmatpush.bf16.msra.mxu0 0
        %1268 = vmatpush.bf16.msra.mxu0 %v1256
        %1269 = vmatpush.bf16.msra.mxu0 %v1255
        %1270 = vmatmul.bf16.gmra.mxu0 %v1260
        %v1271 = vpop.f32.mrf.mxu0
        %v1272 = vadd.f32 %v1245, %v1271
        %v1273 = vpop.f32.mrf.mxu0
        %1274 = vdwg.mxu0
        %v1275 = vadd.f32 %v1272, %v442
        %v1276 = vld [vmem:[%s6] sm:$0x1]
        %v1277 = vld [vmem:[%s7] sm:$0x1]
        %v1278 = vsel %vm445, %v1275, 0.0
        %1279 = vadd.xlane.f32.xlu0 %v1278
        %v1280 = vpop.xlane.xlu0 %1279
        %v1281 = vmul.f32 %v1280, %v455
        %v1282 = vsub.f32 %v1275, %v1281
        %v1283 = vmul.f32 %v1282, %v1282
        %v1284 = vsel %vm445, %v1283, 0.0
        %1285 = vadd.xlane.f32.xlu0 %v1284
        %v1286 = vpop.xlane.xlu0 %1285
        %v1287 = vmul.f32 %v1286, %v455
        %v1288 = vadd.f32 %v1287, 1e-05
        %v1289 = vrsqrt.pop %v1288
        %v1290 = vmul.f32 %v1289, %v1288
        %v1291 = vmul.f32 %v1290, %v1289
        %v1292 = vmul.f32 0.5, %v1291
        %v1293 = vsub.f32 1.5, %v1292
        %v1294 = vmul.f32 %v1289, %v1293
        %vm1295 = vweird.f32 %v1288
        %vm1296 = vweird.f32 %v1289
        %vm1297 = vmor %vm1295, %vm1296
        %v1298 = vsel %vm1297, %v1289, %v1294
        %v1299 = vmul.f32 %v1282, %v1298
        %v1301 = vperm.slane %v1276, 0
        %v1303 = vmul.f32 %v1299, %v1301
        %v1305 = vperm.slane %v1277, 0
        %v1307 = vadd.f32 %v1303, %v1305
        %v1308 = vpack.c.bf16 %v1307, %v1307
        %v1309 = vld [vmem:[#allocation5] sm:$0xf]
        %v1310 = vld [vmem:[#allocation5 + $0x4] sm:$0xf]
        %v1311 = vld [vmem:[#allocation5 + $0x8] sm:$0xf]
        %v1312 = vld [vmem:[#allocation5 + $0xc] sm:$0xf]
        %v1313 = vld [vmem:[%s9] sm:$0x1]
        %v1315 = vperm.slane %v1313, 0
        %v1321 = vunpack.c.l.b16 %v1309
        %v1322 = vunpack.c.l.b16 %v1310
        %v1323 = vunpack.c.l.b16 %v1311
        %v1324 = vunpack.c.l.b16 %v1312
        %v1325 = vpack.c.b16 %v1322, %v1321
        %v1326 = vpack.c.b16 %v1324, %v1323
        %v1330 = vsel %vm445, %v1308, 0
        %1332 = vmatpush.bf16.msra.mxu0 0
        %1333 = vmatpush.bf16.msra.mxu0 0
        %1334 = vmatpush.bf16.msra.mxu0 0
        %1335 = vmatpush.bf16.msra.mxu0 0
        %1336 = vmatpush.bf16.msra.mxu0 0
        %1337 = vmatpush.bf16.msra.mxu0 0
        %1338 = vmatpush.bf16.msra.mxu0 %v1326
        %1339 = vmatpush.bf16.msra.mxu0 %v1325
        %1340 = vmatmul.bf16.gmra.mxu0 %v1330
        %v1341 = vpop.f32.mrf.mxu0
        %v1342 = vadd.f32 %v1315, %v1341
        %v1343 = vpop.f32.mrf.mxu0
        %1344 = vdwg.mxu0
        %v1345 = vmul.f32 %v1342, 0.5
        %v1346 = vmul.f32 %v1342, 0.70710677
        %v1347 = vmul.f32 %v1346, %v1346
        %v1348 = vmin.f32 16.0, %v1347
        %v1349 = vmul.f32 %v1348, 2.1237322e-06
        %v1350 = vadd.f32 %v1349, 0.00028619796
        %v1351 = vmul.f32 %v1348, %v1350
        %v1352 = vadd.f32 %v1351, 0.0036580483
        %v1353 = vmul.f32 %v1348, %v1352
        %v1354 = vadd.f32 %v1353, 0.05243302
        %v1355 = vmul.f32 %v1348, %v1354
        %v1356 = vadd.f32 %v1355, 0.18741608
        %v1357 = vmul.f32 %v1348, %v1356
        %v1358 = vadd.f32 %v1357, 1.1283791
        %v1359 = vmul.f32 %v1346, %v1358
        %v1360 = vmul.f32 %v1348, 3.8918573e-05
        %v1361 = vadd.f32 %v1360, 0.001143296
        %v1362 = vmul.f32 %v1348, %v1361
        %v1363 = vadd.f32 %v1362, 0.014752088
        %v1364 = vmul.f32 %v1348, %v1363
        %v1365 = vadd.f32 %v1364, 0.112945676
        %v1366 = vmul.f32 %v1348, %v1365
        %v1367 = vadd.f32 %v1366, 0.4994258
        %v1368 = vmul.f32 %v1348, %v1367
        %v1369 = vadd.f32 %v1368, 1.0
        %v1370 = vrcp.pop %v1369
        %v1371 = vmul.f32 %v1369, %v1370
        %v1372 = vsub.f32 1.0, %v1371
        %v1373 = vmul.f32 %v1370, %v1372
        %v1374 = vadd.f32 %v1370, %v1373
        %vm1375 = vweird.f32 %v1369
        %vm1376 = vweird.f32 %v1370
        %vm1377 = vmor %vm1375, %vm1376
        %v1378 = vsel %vm1377, %v1370, %v1374
        %v1379 = vand.u32 2147483647, %v1369
        %vm1380 = vcmp.eq.f32.partialorder %v1379, 8.507059e+37
        %v1381 = vand.u32 %v1369, 2147483648
        %v1382 = vor.u32 1.1754944e-38, %v1381
        %v1383 = vsel %vm1380, %v1382, %v1378
        %v1384 = vmul.f32 %v1359, %v1383
        %v1385 = vmin.f32 %v1384, 1.0
        %v1386 = vmax.f32 %v1385, -1.0
        %v1387 = vadd.f32 %v1386, 1.0
        %v1388 = vmul.f32 %v1345, %v1387
        %v1389 = vpack.c.bf16 %v1388, %v1388
        %v1390 = vld [vmem:[%s10] sm:$0xf]
        %v1391 = vld [vmem:[%s10 + $0x4] sm:$0xf]
        %v1392 = vld [vmem:[%s10 + $0x8] sm:$0xf]
        %v1393 = vld [vmem:[%s10 + $0xc] sm:$0xf]
        %v1394 = vld [vmem:[%s10 + $0x10] sm:$0xf]
        %v1395 = vld [vmem:[%s10 + $0x14] sm:$0xf]
        %v1396 = vld [vmem:[%s10 + $0x18] sm:$0xf]
        %v1397 = vld [vmem:[%s10 + $0x1c] sm:$0xf]
        %v1398 = vld [vmem:[%s11] sm:$0x1]
        %v1400 = vperm.slane %v1398, 0
        %v1410 = vunpack.c.l.b16 %v1390
        %v1411 = vunpack.c.l.b16 %v1391
        %v1412 = vunpack.c.l.b16 %v1392
        %v1413 = vunpack.c.l.b16 %v1393
        %v1414 = vunpack.c.l.b16 %v1394
        %v1415 = vunpack.c.l.b16 %v1395
        %v1416 = vunpack.c.l.b16 %v1396
        %v1417 = vunpack.c.l.b16 %v1397
        %v1418 = vpack.c.b16 %v1411, %v1410
        %v1419 = vpack.c.b16 %v1413, %v1412
        %v1420 = vpack.c.b16 %v1415, %v1414
        %v1421 = vpack.c.b16 %v1417, %v1416
        %vm1426 = vcmask 523264
        %v1428 = vsel %vm1426, %v1389, 0
        %1430 = vmatpush.bf16.msra.mxu0 0
        %1431 = vmatpush.bf16.msra.mxu0 0
        %1432 = vmatpush.bf16.msra.mxu0 0
        %1433 = vmatpush.bf16.msra.mxu0 0
        %1434 = vmatpush.bf16.msra.mxu0 %v1421
        %1435 = vmatpush.bf16.msra.mxu0 %v1420
        %1436 = vmatpush.bf16.msra.mxu0 %v1419
        %1437 = vmatpush.bf16.msra.mxu0 %v1418
        %1438 = vmatmul.bf16.gmra.mxu0 %v1428
        %v1439 = vpop.f32.mrf.mxu0
        %v1440 = vadd.f32 %v1400, %v1439
        %v1441 = vpop.f32.mrf.mxu0
        %1442 = vdwg.mxu0
        %v1443 = vadd.f32 %v1440, %v1275
        %1444 = vst.msk [vmem:[%s436] sm:$0xff] %vm445, %v1443
        %s1445 = sand.u32 %s293, 1
        %s1446 = scalar_lea.sflag [#allocation4], %s1445
        %s1447 = sand.u32 %s293, 1
        %s1448 = smul.addr %s1447, 8
        %s1449 = scalar_lea.vmem [#allocation7], %s1448
        // Predicated region
        $region77: #{tpu_custom_call.1} parent=67 // pred_check
          %p1450 = pneg %p303
        $region78: #{tpu_custom_call.1} parent=67 // pred_check_branch
          %1452 = sbr.rel (%p1450) target = $region80
        $region79: #{tpu_custom_call.1} parent=67 // pred_region
          %1454 = vsyncadd %s1446, 0
          %s1455 = smul.addr %s28, 8
          %s1456 = scalar_lea.hbm %s12, %s1455
          %s1458 = sshll.u32 %s1449, 4
          %s1459 = int_to_ptr.vmem [resolvable:$true] %s1458
          %s1460 = sshll.u32 %s1456, 4
          %s1461 = int_to_ptr.hbm [resolvable:$true] %s1460
          %1463 = dma.vmem_to_hbm [thread:$0]  %s1459, 128, %s1461, %s1446
        $region80: #{tpu_custom_call.1} parent=67 // pred_fallthru
          _
      $region68: #{tpu_custom_call.1} parent=5 // pred_fallthru
        _
      %p1464 = scmp.le.s32.totalorder 2, %s23
      // Predicated region
      $region81: #{tpu_custom_call.1} parent=5 // pred_check
        %p1465 = pneg %p1464
      $region82: #{tpu_custom_call.1} parent=5 // pred_check_branch
        %1467 = sbr.rel (%p1465) target = $region84
      $region83: #{tpu_custom_call.1} parent=5 // pred_region
        %s1468 = ssub.s32 %s23, 2
        // Predicated region
        $region85: #{tpu_custom_call.1} parent=83 // pred_check
          %p1469 = pneg %p309
        $region86: #{tpu_custom_call.1} parent=83 // pred_check_branch
          %1471 = sbr.rel (%p1469) target = $region88
        $region87: #{tpu_custom_call.1} parent=83 // pred_region
          %s1472 = sand.u32 %s294, 1
          %s1473 = scalar_lea.sflag [#allocation4], %s1472
          %s1474 = sand.u32 %s294, 1
          %s1475 = smul.addr %s1474, 8
          %s1476 = scalar_lea.vmem [#allocation7], %s1475
          %1478 = dma.done %s1473, 128
        $region88: #{tpu_custom_call.1} parent=83 // pred_fallthru
          _
      $region84: #{tpu_custom_call.1} parent=5 // pred_fallthru
        _
    $region6: #{tpu_custom_call.1} parent=1 // loop_footer
      %s27 = sadd.s32 1, %s23
    $region7: #{tpu_custom_call.1} parent=1 // loop_footer_branch
      %22 = sbr.rel target = $region3
    $region8: #{tpu_custom_call.1} parent=1 // loop_exit
      _
    %1479 = vsyncpa [#allocation3], 1
    %s1480 = scalar_lea.sflag [#allocation3], 1
    %1481 = vsyncpa %s1480, 1
    %1482 = vsyncpa [#allocation6], 1
    %1483 = vsyncpa [#allocation4], 1
    %s1484 = scalar_lea.sflag [#allocation4], 1
    %1485 = vsyncpa %s1484, 1

// kernel: tpu_custom_call.1
$region0: #{tpu_custom_call.1}
  #allocation0 [shape = 'u32[]', space=smem, size = 0x4, offset = 0x4, fixed_abs, tag = 'smem constant byte address 0x4 - core index']
  #allocation1 [shape = 'u32[72,128]{1,0:T(1,128)}', space=vmem, size = 0x9000, scoped, tag = 'internal scratch']
  %s0 = inlined_call_operand.vmem [shape: f32[2,8,32], index: 0, kind: input, shape index: {}]
  %s1 = inlined_call_operand.hbm [shape: f32[1,32], index: 1, kind: input, shape index: {}]
  %s2 = inlined_call_operand.vmem [shape: f32[1,32], index: 2, kind: input, shape index: {}]
  %s3 = inlined_call_operand.vmem [shape: bf16[32,96], index: 3, kind: input, shape index: {}]
  %s4 = inlined_call_operand.vmem [shape: bf16[32,32], index: 4, kind: input, shape index: {}]
  %s5 = inlined_call_operand.vmem [shape: f32[1,32], index: 5, kind: input, shape index: {}]
  %s6 = inlined_call_operand.vmem [shape: f32[1,32], index: 6, kind: input, shape index: {}]
  %s7 = inlined_call_operand.vmem [shape: f32[1,32], index: 7, kind: input, shape index: {}]
  %s8 = inlined_call_operand.hbm [shape: bf16[32,64], index: 8, kind: input, shape index: {}]
  %s9 = inlined_call_operand.vmem [shape: f32[1,64], index: 9, kind: input, shape index: {}]
  %s10 = inlined_call_operand.vmem [shape: bf16[64,32], index: 10, kind: input, shape index: {}]
  %s11 = inlined_call_operand.vmem [shape: f32[1,32], index: 11, kind: input, shape index: {}]
  %s12 = inlined_call_operand.hbm [shape: f32[2,8,32], index: 12, kind: output, shape index: {}]
  %s13 = sld [smem:[#allocation0]]
  $region89: #{tpu_custom_call.1} parent=0
    _
  %s15 = ssub.s32 1, %s13
  %s16 = scalar_select 0, %s15, %s13
  $region1: #{tpu_custom_call.1} parent=0
    #allocation2 [shape = 'u8[512]{0}', space=vmem, size = 0x400, scoped, tag = 'input window, operand 1, single buffered']
    #allocation3 [shape = 's32[2]{0}', space=sflag, size = 0x8, scoped, tag = 'scoped memory for tpu_custom_call.1']
    #allocation4 [shape = 's32[2]{0}', space=sflag, size = 0x8, scoped, tag = 'scoped memory for tpu_custom_call.1']
    #allocation5 [shape = 'u8[8192]{0}', space=vmem, size = 0x2000, scoped, tag = 'input window, operand 8, single buffered']
    #allocation6 [shape = 's32[1]{0}', space=sflag, size = 0x4, scoped, tag = 'scoped memory for tpu_custom_call.1']
    #allocation7 [shape = 'u8[8192]{0}', space=vmem, size = 0x2000, scoped, tag = 'output window, operand 0']
    %17 = vsyncpa [#allocation3], 0
    %18 = vsyncpa [#allocation6], 0
    %19 = vsyncpa [#allocation4], 0
    %s20 = scalar_lea.sflag [#allocation4], 1
    %21 = vsyncpa %s20, 0
    loop: start=0, step=1, limit=4
    $region2: #{tpu_custom_call.1} parent=1 // loop_pre_header
      _
    $region3: #{tpu_custom_call.1} parent=1 // loop_header
      %s23 = sphi 0, %s27
      %p24 = scmp.ge.s32.totalorder %s23, 4
      %s33 = sphi 0, %s35
      %s36 = sphi 0, %s33
      %s37 = sphi 0, %s36
      %s53 = sphi 0, %s37
      %s57 = sphi 0, %s57
      %s59 = sphi 0, %s57
      %s60 = sphi 0, %s59
      %s74 = sphi 0, %s60
      %s78 = sphi 0, %s78
      %s80 = sphi 0, %s78
      %s81 = sphi 0, %s80
      %s95 = sphi 0, %s81
      %s99 = sphi 0, %s99
      %s101 = sphi 0, %s99
      %s102 = sphi 0, %s101
      %s116 = sphi 0, %s102
      %s120 = sphi 0, %s120
      %s122 = sphi 0, %s120
      %s123 = sphi 0, %s122
      %s137 = sphi 0, %s123
      %s141 = sphi 0, %s141
      %s143 = sphi 0, %s141
      %s144 = sphi 0, %s143
      %s158 = sphi 0, %s144
      %s162 = sphi 0, %s162
      %s164 = sphi 0, %s162
      %s165 = sphi 0, %s164
      %s179 = sphi 0, %s165
      %s183 = sphi 0, %s183
      %s185 = sphi 0, %s183
      %s186 = sphi 0, %s185
      %s200 = sphi 0, %s186
      %s204 = sphi 0, %s204
      %s206 = sphi 0, %s204
      %s207 = sphi 0, %s206
      %s221 = sphi 0, %s207
      %s225 = sphi 0, %s225
      %s227 = sphi 0, %s225
      %s228 = sphi 0, %s227
      %s242 = sphi 0, %s228
      %s246 = sphi 0, %s246
      %s248 = sphi 0, %s246
      %s249 = sphi 0, %s248
      %s263 = sphi 0, %s249
      %s267 = sphi 0, %s267
      %s269 = sphi 0, %s267
      %s270 = sphi 0, %s269
      %s284 = sphi 0, %s270
      %s290 = sphi 0, %s292
      %s293 = sphi 0, %s290
      %s294 = sphi 0, %s293
      %s310 = sphi 0, %s294
    $region4: #{tpu_custom_call.1} parent=1 // loop_header_branch
      %26 = sbr.rel (%p24) target = $region8
    $region5: #{tpu_custom_call.1} parent=1 // loop_body
      %s28 = ssub.s32 %s23, 1
      %s29 = ssub.s32 %s23, 2
      %s30 = sadd.s32 %s23, 1
      %s31 = ssub.s32 %s23, %s30
      %p32 = scmp.eq.s32.totalorder %s31, 0
      %s34 = sadd.s32 %s33, 1
      %s35 = scalar_select %p32, %s33, %s34
      %p38 = pneg %p32
      %p39 = scmp.eq.s32.totalorder %s23, 1
      %p40 = por %p38, %p39
      %p41 = scmp.ne.s32.totalorder %s33, %s36
      %p42 = scmp.eq.s32.totalorder %s23, 0
      %p43 = por %p41, %p42
      %p44 = scmp.ne.s32.totalorder %s33, %s36
      %p45 = scmp.eq.s32.totalorder %s28, 1
      %p46 = por %p44, %p45
      %p47 = scmp.ne.s32.totalorder %s36, %s37
      %p48 = scmp.eq.s32.totalorder %s28, 0
      %p49 = por %p47, %p48
      %p50 = scmp.ne.s32.totalorder %s36, %s37
      %p51 = scmp.eq.s32.totalorder %s29, 1
      %p52 = por %p50, %p51
      %p54 = scmp.ne.s32.totalorder %s37, %s53
      %p55 = scmp.eq.s32.totalorder %s29, 0
      %p56 = por %p54, %p55
      %s58 = sadd.s32 %s57, 1
      %p61 = scmp.eq.s32.totalorder %s23, 1
      %p62 = scmp.ne.s32.totalorder %s57, %s59
      %p63 = scmp.eq.s32.totalorder %s23, 0
      %p64 = por %p62, %p63
      %p65 = scmp.ne.s32.totalorder %s57, %s59
      %p66 = scmp.eq.s32.totalorder %s28, 1
      %p67 = por %p65, %p66
      %p68 = scmp.ne.s32.totalorder %s59, %s60
      %p69 = scmp.eq.s32.totalorder %s28, 0
      %p70 = por %p68, %p69
      %p71 = scmp.ne.s32.totalorder %s59, %s60
      %p72 = scmp.eq.s32.totalorder %s29, 1
      %p73 = por %p71, %p72
      %p75 = scmp.ne.s32.totalorder %s60, %s74
      %p76 = scmp.eq.s32.totalorder %s29, 0
      %p77 = por %p75, %p76
      %s79 = sadd.s32 %s78, 1
      %p82 = scmp.eq.s32.totalorder %s23, 1
      %p83 = scmp.ne.s32.totalorder %s78, %s80
      %p84 = scmp.eq.s32.totalorder %s23, 0
      %p85 = por %p83, %p84
      %p86 = scmp.ne.s32.totalorder %s78, %s80
      %p87 = scmp.eq.s32.totalorder %s28, 1
      %p88 = por %p86, %p87
      %p89 = scmp.ne.s32.totalorder %s80, %s81
      %p90 = scmp.eq.s32.totalorder %s28, 0
      %p91 = por %p89, %p90
      %p92 = scmp.ne.s32.totalorder %s80, %s81
      %p93 = scmp.eq.s32.totalorder %s29, 1
      %p94 = por %p92, %p93
      %p96 = scmp.ne.s32.totalorder %s81, %s95
      %p97 = scmp.eq.s32.totalorder %s29, 0
      %p98 = por %p96, %p97
      %s100 = sadd.s32 %s99, 1
      %p103 = scmp.eq.s32.totalorder %s23, 1
      %p104 = scmp.ne.s32.totalorder %s99, %s101
      %p105 = scmp.eq.s32.totalorder %s23, 0
      %p106 = por %p104, %p105
      %p107 = scmp.ne.s32.totalorder %s99, %s101
      %p108 = scmp.eq.s32.totalorder %s28, 1
      %p109 = por %p107, %p108
      %p110 = scmp.ne.s32.totalorder %s101, %s102
      %p111 = scmp.eq.s32.totalorder %s28, 0
      %p112 = por %p110, %p111
      %p113 = scmp.ne.s32.totalorder %s101, %s102
      %p114 = scmp.eq.s32.totalorder %s29, 1
      %p115 = por %p113, %p114
      %p117 = scmp.ne.s32.totalorder %s102, %s116
      %p118 = scmp.eq.s32.totalorder %s29, 0
      %p119 = por %p117, %p118
      %s121 = sadd.s32 %s120, 1
      %p124 = scmp.eq.s32.totalorder %s23, 1
      %p125 = scmp.ne.s32.totalorder %s120, %s122
      %p126 = scmp.eq.s32.totalorder %s23, 0
      %p127 = por %p125, %p126
      %p128 = scmp.ne.s32.totalorder %s120, %s122
      %p129 = scmp.eq.s32.totalorder %s28, 1
      %p130 = por %p128, %p129
      %p131 = scmp.ne.s32.totalorder %s122, %s123
      %p132 = scmp.eq.s32.totalorder %s28, 0
      %p133 = por %p131, %p132
      %p134 = scmp.ne.s32.totalorder %s122, %s123
      %p135 = scmp.eq.s32.totalorder %s29, 1
      %p136 = por %p134, %p135
      %p138 = scmp.ne.s32.totalorder %s123, %s137
      %p139 = scmp.eq.s32.totalorder %s29, 0
      %p140 = por %p138, %p139
      %s142 = sadd.s32 %s141, 1
      %p145 = scmp.eq.s32.totalorder %s23, 1
      %p146 = scmp.ne.s32.totalorder %s141, %s143
      %p147 = scmp.eq.s32.totalorder %s23, 0
      %p148 = por %p146, %p147
      %p149 = scmp.ne.s32.totalorder %s141, %s143
      %p150 = scmp.eq.s32.totalorder %s28, 1
      %p151 = por %p149, %p150
      %p152 = scmp.ne.s32.totalorder %s143, %s144
      %p153 = scmp.eq.s32.totalorder %s28, 0
      %p154 = por %p152, %p153
      %p155 = scmp.ne.s32.totalorder %s143, %s144
      %p156 = scmp.eq.s32.totalorder %s29, 1
      %p157 = por %p155, %p156
      %p159 = scmp.ne.s32.totalorder %s144, %s158
      %p160 = scmp.eq.s32.totalorder %s29, 0
      %p161 = por %p159, %p160
      %s163 = sadd.s32 %s162, 1
      %p166 = scmp.eq.s32.totalorder %s23, 1
      %p167 = scmp.ne.s32.totalorder %s162, %s164
      %p168 = scmp.eq.s32.totalorder %s23, 0
      %p169 = por %p167, %p168
      %p170 = scmp.ne.s32.totalorder %s162, %s164
      %p171 = scmp.eq.s32.totalorder %s28, 1
      %p172 = por %p170, %p171
      %p173 = scmp.ne.s32.totalorder %s164, %s165
      %p174 = scmp.eq.s32.totalorder %s28, 0
      %p175 = por %p173, %p174
      %p176 = scmp.ne.s32.totalorder %s164, %s165
      %p177 = scmp.eq.s32.totalorder %s29, 1
      %p178 = por %p176, %p177
      %p180 = scmp.ne.s32.totalorder %s165, %s179
      %p181 = scmp.eq.s32.totalorder %s29, 0
      %p182 = por %p180, %p181
      %s184 = sadd.s32 %s183, 1
      %p187 = scmp.eq.s32.totalorder %s23, 1
      %p188 = scmp.ne.s32.totalorder %s183, %s185
      %p189 = scmp.eq.s32.totalorder %s23, 0
      %p190 = por %p188, %p189
      %p191 = scmp.ne.s32.totalorder %s183, %s185
      %p192 = scmp.eq.s32.totalorder %s28, 1
      %p193 = por %p191, %p192
      %p194 = scmp.ne.s32.totalorder %s185, %s186
      %p195 = scmp.eq.s32.totalorder %s28, 0
      %p196 = por %p194, %p195
      %p197 = scmp.ne.s32.totalorder %s185, %s186
      %p198 = scmp.eq.s32.totalorder %s29, 1
      %p199 = por %p197, %p198
      %p201 = scmp.ne.s32.totalorder %s186, %s200
      %p202 = scmp.eq.s32.totalorder %s29, 0
      %p203 = por %p201, %p202
      %s205 = sadd.s32 %s204, 1
      %p208 = scmp.eq.s32.totalorder %s23, 1
      %p209 = scmp.ne.s32.totalorder %s204, %s206
      %p210 = scmp.eq.s32.totalorder %s23, 0
      %p211 = por %p209, %p210
      %p212 = scmp.ne.s32.totalorder %s204, %s206
      %p213 = scmp.eq.s32.totalorder %s28, 1
      %p214 = por %p212, %p213
      %p215 = scmp.ne.s32.totalorder %s206, %s207
      %p216 = scmp.eq.s32.totalorder %s28, 0
      %p217 = por %p215, %p216
      %p218 = scmp.ne.s32.totalorder %s206, %s207
      %p219 = scmp.eq.s32.totalorder %s29, 1
      %p220 = por %p218, %p219
      %p222 = scmp.ne.s32.totalorder %s207, %s221
      %p223 = scmp.eq.s32.totalorder %s29, 0
      %p224 = por %p222, %p223
      %s226 = sadd.s32 %s225, 1
      %p229 = scmp.eq.s32.totalorder %s23, 1
      %p230 = scmp.ne.s32.totalorder %s225, %s227
      %p231 = scmp.eq.s32.totalorder %s23, 0
      %p232 = por %p230, %p231
      %p233 = scmp.ne.s32.totalorder %s225, %s227
      %p234 = scmp.eq.s32.totalorder %s28, 1
      %p235 = por %p233, %p234
      %p236 = scmp.ne.s32.totalorder %s227, %s228
      %p237 = scmp.eq.s32.totalorder %s28, 0
      %p238 = por %p236, %p237
      %p239 = scmp.ne.s32.totalorder %s227, %s228
      %p240 = scmp.eq.s32.totalorder %s29, 1
      %p241 = por %p239, %p240
      %p243 = scmp.ne.s32.totalorder %s228, %s242
      %p244 = scmp.eq.s32.totalorder %s29, 0
      %p245 = por %p243, %p244
      %s247 = sadd.s32 %s246, 1
      %p250 = scmp.eq.s32.totalorder %s23, 1
      %p251 = scmp.ne.s32.totalorder %s246, %s248
      %p252 = scmp.eq.s32.totalorder %s23, 0
      %p253 = por %p251, %p252
      %p254 = scmp.ne.s32.totalorder %s246, %s248
      %p255 = scmp.eq.s32.totalorder %s28, 1
      %p256 = por %p254, %p255
      %p257 = scmp.ne.s32.totalorder %s248, %s249
      %p258 = scmp.eq.s32.totalorder %s28, 0
      %p259 = por %p257, %p258
      %p260 = scmp.ne.s32.totalorder %s248, %s249
      %p261 = scmp.eq.s32.totalorder %s29, 1
      %p262 = por %p260, %p261
      %p264 = scmp.ne.s32.totalorder %s249, %s263
      %p265 = scmp.eq.s32.totalorder %s29, 0
      %p266 = por %p264, %p265
      %s268 = sadd.s32 %s267, 1
      %p271 = scmp.eq.s32.totalorder %s23, 1
      %p272 = scmp.ne.s32.totalorder %s267, %s269
      %p273 = scmp.eq.s32.totalorder %s23, 0
      %p274 = por %p272, %p273
      %p275 = scmp.ne.s32.totalorder %s267, %s269
      %p276 = scmp.eq.s32.totalorder %s28, 1
      %p277 = por %p275, %p276
      %p278 = scmp.ne.s32.totalorder %s269, %s270
      %p279 = scmp.eq.s32.totalorder %s28, 0
      %p280 = por %p278, %p279
      %p281 = scmp.ne.s32.totalorder %s269, %s270
      %p282 = scmp.eq.s32.totalorder %s29, 1
      %p283 = por %p281, %p282
      %p285 = scmp.ne.s32.totalorder %s270, %s284
      %p286 = scmp.eq.s32.totalorder %s29, 0
      %p287 = por %p285, %p286
      %s288 = ssub.s32 %s23, %s30
      %p289 = scmp.eq.s32.totalorder %s288, 0
      %s291 = sadd.s32 %s290, 1
      %s292 = scalar_select %p289, %s290, %s291
      %p295 = pneg %p289
      %p296 = scmp.eq.s32.totalorder %s23, 1
      %p297 = por %p295, %p296
      %p298 = scmp.ne.s32.totalorder %s290, %s293
      %p299 = scmp.eq.s32.totalorder %s23, 0
      %p300 = por %p298, %p299
      %p301 = scmp.ne.s32.totalorder %s290, %s293
      %p302 = scmp.eq.s32.totalorder %s28, 1
      %p303 = por %p301, %p302
      %p304 = scmp.ne.s32.totalorder %s293, %s294
      %p305 = scmp.eq.s32.totalorder %s28, 0
      %p306 = por %p304, %p305
      %p307 = scmp.ne.s32.totalorder %s293, %s294
      %p308 = scmp.eq.s32.totalorder %s29, 1
      %p309 = por %p307, %p308
      %p311 = scmp.ne.s32.totalorder %s294, %s310
      %p312 = scmp.eq.s32.totalorder %s29, 0
      %p313 = por %p311, %p312
      %p314 = scmp.le.s32.totalorder 1, %s23
      %p315 = scmp.lt.s32.totalorder %s23, 3
      %p316 = pnand %p314, %p315
      %p317 = pneg %p316
      // Predicated region
      $region9: #{tpu_custom_call.1} parent=5 // pred_check
        _
      $region10: #{tpu_custom_call.1} parent=5 // pred_check_branch
        %319 = sbr.rel (%p316) target = $region12
      $region11: #{tpu_custom_call.1} parent=5 // pred_region
        %s320 = ssub.s32 %s23, 1
        // Predicated region
        $region13: #{tpu_custom_call.1} parent=11 // pred_check
          %p321 = pneg %p70
        $region14: #{tpu_custom_call.1} parent=11 // pred_check_branch
          %323 = sbr.rel (%p321) target = $region16
        $region15: #{tpu_custom_call.1} parent=11 // pred_region
          %325 = vsyncadd [#allocation3], 0
          %s327 = sshll.u32 %s1, 4
          %s328 = int_to_ptr.hbm [resolvable:$true] %s327
          %s329 = sshll.u32 [#allocation2], 4
          %s330 = int_to_ptr.vmem [resolvable:$true] %s329
          %332 = dma.hbm_to_vmem [thread:$0]  %s328, 16, %s330, [#allocation3]
        $region16: #{tpu_custom_call.1} parent=11 // pred_fallthru
          _
        // Predicated region
        $region17: #{tpu_custom_call.1} parent=11 // pred_check
          %p333 = pneg %p91
        $region18: #{tpu_custom_call.1} parent=11 // pred_check_branch
          %335 = sbr.rel (%p333) target = $region20
        $region19: #{tpu_custom_call.1} parent=11 // pred_region
          _
        $region20: #{tpu_custom_call.1} parent=11 // pred_fallthru
          _
        // Predicated region
        $region21: #{tpu_custom_call.1} parent=11 // pred_check
          %p336 = pneg %p112
        $region22: #{tpu_custom_call.1} parent=11 // pred_check_branch
          %338 = sbr.rel (%p336) target = $region24
        $region23: #{tpu_custom_call.1} parent=11 // pred_region
          _
        $region24: #{tpu_custom_call.1} parent=11 // pred_fallthru
          _
        // Predicated region
        $region25: #{tpu_custom_call.1} parent=11 // pred_check
          %p339 = pneg %p133
        $region26: #{tpu_custom_call.1} parent=11 // pred_check_branch
          %341 = sbr.rel (%p339) target = $region28
        $region27: #{tpu_custom_call.1} parent=11 // pred_region
          _
        $region28: #{tpu_custom_call.1} parent=11 // pred_fallthru
          _
        // Predicated region
        $region29: #{tpu_custom_call.1} parent=11 // pred_check
          %p342 = pneg %p154
        $region30: #{tpu_custom_call.1} parent=11 // pred_check_branch
          %344 = sbr.rel (%p342) target = $region32
        $region31: #{tpu_custom_call.1} parent=11 // pred_region
          _
        $region32: #{tpu_custom_call.1} parent=11 // pred_fallthru
          _
        // Predicated region
        $region33: #{tpu_custom_call.1} parent=11 // pred_check
          %p345 = pneg %p175
        $region34: #{tpu_custom_call.1} parent=11 // pred_check_branch
          %347 = sbr.rel (%p345) target = $region36
        $region35: #{tpu_custom_call.1} parent=11 // pred_region
          _
        $region36: #{tpu_custom_call.1} parent=11 // pred_fallthru
          _
        // Predicated region
        $region37: #{tpu_custom_call.1} parent=11 // pred_check
          %p348 = pneg %p196
        $region38: #{tpu_custom_call.1} parent=11 // pred_check_branch
          %350 = sbr.rel (%p348) target = $region40
        $region39: #{tpu_custom_call.1} parent=11 // pred_region
          _
        $region40: #{tpu_custom_call.1} parent=11 // pred_fallthru
          _
        // Predicated region
        $region41: #{tpu_custom_call.1} parent=11 // pred_check
          %p351 = pneg %p217
        $region42: #{tpu_custom_call.1} parent=11 // pred_check_branch
          %353 = sbr.rel (%p351) target = $region44
        $region43: #{tpu_custom_call.1} parent=11 // pred_region
          %355 = vsyncadd [#allocation6], 0
          %s356 = sshll.u32 %s8, 4
          %s357 = int_to_ptr.hbm [resolvable:$true] %s356
          %s358 = sshll.u32 [#allocation5], 4
          %s359 = int_to_ptr.vmem [resolvable:$true] %s358
          %364 = dma.hbm_to_vmem [thread:$0]  %s357, 256, %s359, [#allocation6], 64, 64, 4
        $region44: #{tpu_custom_call.1} parent=11 // pred_fallthru
          _
        // Predicated region
        $region45: #{tpu_custom_call.1} parent=11 // pred_check
          %p365 = pneg %p238
        $region46: #{tpu_custom_call.1} parent=11 // pred_check_branch
          %367 = sbr.rel (%p365) target = $region48
        $region47: #{tpu_custom_call.1} parent=11 // pred_region
          _
        $region48: #{tpu_custom_call.1} parent=11 // pred_fallthru
          _
        // Predicated region
        $region49: #{tpu_custom_call.1} parent=11 // pred_check
          %p368 = pneg %p259
        $region50: #{tpu_custom_call.1} parent=11 // pred_check_branch
          %370 = sbr.rel (%p368) target = $region52
        $region51: #{tpu_custom_call.1} parent=11 // pred_region
          _
        $region52: #{tpu_custom_call.1} parent=11 // pred_fallthru
          _
        // Predicated region
        $region53: #{tpu_custom_call.1} parent=11 // pred_check
          %p371 = pneg %p280
        $region54: #{tpu_custom_call.1} parent=11 // pred_check_branch
          %373 = sbr.rel (%p371) target = $region56
        $region55: #{tpu_custom_call.1} parent=11 // pred_region
          _
        $region56: #{tpu_custom_call.1} parent=11 // pred_fallthru
          _
      $region12: #{tpu_custom_call.1} parent=5 // pred_fallthru
        _
      %p374 = scmp.lt.s32.totalorder %s23, 2
      // Predicated region
      $region57: #{tpu_custom_call.1} parent=5 // pred_check
        %p375 = pneg %p374
      $region58: #{tpu_custom_call.1} parent=5 // pred_check_branch
        %377 = sbr.rel (%p375) target = $region60
      $region59: #{tpu_custom_call.1} parent=5 // pred_region
        // Predicated region
        $region61: #{tpu_custom_call.1} parent=59 // pred_check
          %p378 = pneg %p43
        $region62: #{tpu_custom_call.1} parent=59 // pred_check_branch
          %380 = sbr.rel (%p378) target = $region64
        $region63: #{tpu_custom_call.1} parent=59 // pred_region
          %p381 = scmp.lt.s32.totalorder %s23, 1
          %s382 = scalar_select %p381, %s23, 1
          %s383 = smul.addr %s382, 8
          %s384 = scalar_lea.vmem %s0, %s383
        $region64: #{tpu_custom_call.1} parent=59 // pred_fallthru
          _
      $region60: #{tpu_custom_call.1} parent=5 // pred_fallthru
        _
      %p385 = scmp.le.s32.totalorder 1, %s23
      %p386 = scmp.lt.s32.totalorder %s23, 3
      %p387 = pnand %p385, %p386
      %p388 = pneg %p387
      // Predicated region
      $region65: #{tpu_custom_call.1} parent=5 // pred_check
        _
      $region66: #{tpu_custom_call.1} parent=5 // pred_check_branch
        %390 = sbr.rel (%p387) target = $region68
      $region67: #{tpu_custom_call.1} parent=5 // pred_region
        %s391 = ssub.s32 %s23, 1
        // Predicated region
        $region69: #{tpu_custom_call.1} parent=67 // pred_check
          %p392 = pneg %p70
        $region70: #{tpu_custom_call.1} parent=67 // pred_check_branch
          %394 = sbr.rel (%p392) target = $region72
        $region71: #{tpu_custom_call.1} parent=67 // pred_region
          %396 = dma.done [#allocation3], 16
        $region72: #{tpu_custom_call.1} parent=67 // pred_fallthru
          _
        // Predicated region
        $region73: #{tpu_custom_call.1} parent=67 // pred_check
          %p397 = pneg %p217
        $region74: #{tpu_custom_call.1} parent=67 // pred_check_branch
          %399 = sbr.rel (%p397) target = $region76
        $region75: #{tpu_custom_call.1} parent=67 // pred_region
          %401 = dma.done [#allocation6], 256
        $region76: #{tpu_custom_call.1} parent=67 // pred_fallthru
          _
        %p402 = scmp.lt.s32.totalorder %s28, 1
        %s403 = scalar_select %p402, %s28, 1
        %s404 = smul.addr %s403, 8
        %s405 = scalar_lea.vmem %s0, %s404
        %p406 = pneg %p49
        %p407 = pneg %p46
        %p408 = pneg %p70
        %p409 = pneg %p67
        %p410 = pneg %p91
        %p411 = pneg %p88
        %p412 = pneg %p112
        %p413 = pneg %p109
        %p414 = pneg %p133
        %p415 = pneg %p130
        %p416 = pneg %p154
        %p417 = pneg %p151
        %p418 = pneg %p175
        %p419 = pneg %p172
        %p420 = pneg %p196
        %p421 = pneg %p193
        %p422 = pneg %p217
        %p423 = pneg %p214
        %p424 = pneg %p238
        %p425 = pneg %p235
        %p426 = pneg %p259
        %p427 = pneg %p256
        %p428 = pneg %p280
        %p429 = pneg %p277
        %p430 = pneg %p306
        %p431 = pneg %p303
        %s432 = sand.u32 %s293, 1
        %s433 = scalar_lea.sflag [#allocation4], %s432
        %s434 = sand.u32 %s293, 1
        %s435 = smul.addr %s434, 8
        %s436 = scalar_lea.vmem [#allocation7], %s435
        %p437 = scmp.lt.s32.totalorder %s28, 1
        %s438 = scalar_select %p437, %s28, 1
        %s439 = smul.addr %s438, 8
        %s440 = scalar_lea.vmem %s0, %s439
        %v442 = vld [vmem:[%s440] sm:$0xff]
        %v443 = vld [vmem:[#allocation2] sm:$0x1]
        %v444 = vld [vmem:[%s2] sm:$0x1]
        %vm445 = vcmask 261120
        %v446 = vsel %vm445, %v442, 0.0
        %447 = vadd.xlane.f32.xlu0 %v446
        %v448 = vpop.xlane.xlu0 %447
        %v449 = vrcp.pop 32.0
        %v450 = vmul.f32 32.0, %v449
        %v451 = vsub.f32 1.0, %v450
        %v452 = vmul.f32 %v449, %v451
        %v453 = vadd.f32 %v449, %v452
        %vm454 = vweird.f32 %v449
        %v455 = vsel %vm454, %v449, %v453
        %v456 = vmul.f32 %v448, %v455
        %v457 = vsub.f32 %v442, %v456
        %v458 = vmul.f32 %v457, %v457
        %v459 = vsel %vm445, %v458, 0.0
        %460 = vadd.xlane.f32.xlu0 %v459
        %v461 = vpop.xlane.xlu0 %460
        %v462 = vmul.f32 %v461, %v455
        %v463 = vadd.f32 %v462, 1e-05
        %v464 = vrsqrt.pop %v463
        %v465 = vmul.f32 %v464, %v463
        %v466 = vmul.f32 %v465, %v464
        %v467 = vmul.f32 0.5, %v466
        %v468 = vsub.f32 1.5, %v467
        %v469 = vmul.f32 %v464, %v468
        %vm470 = vweird.f32 %v463
        %vm471 = vweird.f32 %v464
        %vm472 = vmor %vm470, %vm471
        %v473 = vsel %vm472, %v464, %v469
        %v474 = vmul.f32 %v457, %v473
        %v476 = vperm.slane %v443, 0
        %v478 = vmul.f32 %v474, %v476
        %v480 = vperm.slane %v444, 0
        %v482 = vadd.f32 %v478, %v480
        %v483 = vpack.c.bf16 %v482, %v482
        %v484 = vld [vmem:[%s3] sm:$0xf]
        %v485 = vld [vmem:[%s3 + $0x4] sm:$0xf]
        %v486 = vld [vmem:[%s3 + $0x8] sm:$0xf]
        %v487 = vld [vmem:[%s3 + $0xc] sm:$0xf]
        %v492 = vunpack.c.l.b16 %v484
        %v493 = vunpack.c.l.b16 %v485
        %v494 = vunpack.c.l.b16 %v486
        %v495 = vunpack.c.l.b16 %v487
        %v496 = vpack.c.b16 %v493, %v492
        %v497 = vpack.c.b16 %v495, %v494
        %v501 = vsel %vm445, %v483, 0
        %503 = vmatpush.bf16.msra.mxu0 0
        %504 = vmatpush.bf16.msra.mxu0 0
        %505 = vmatpush.bf16.msra.mxu0 0
        %506 = vmatpush.bf16.msra.mxu0 0
        %507 = vmatpush.bf16.msra.mxu0 0
        %508 = vmatpush.bf16.msra.mxu0 0
        %509 = vmatpush.bf16.msra.mxu0 %v497
        %510 = vmatpush.bf16.msra.mxu0 %v496
        %511 = vmatmul.bf16.gmra.mxu0 %v501
        %v512 = vpop.f32.mrf.mxu0
        %v513 = vadd.f32 0.0, %v512
        %v514 = vpop.f32.mrf.mxu0
        %515 = vdwg.mxu0
        %517 = vrot.lane.b32.xlu0 %v513, 120
        %v518 = vpop.permute.xlu0 %517
        %520 = vrot.lane.b32.xlu0 %v513, 112
        %v521 = vpop.permute.xlu0 %520
        %523 = vrot.lane.b32.xlu0 %v513, 104
        %v524 = vpop.permute.xlu0 %523
        %526 = vrot.lane.b32.xlu0 %v513, 96
        %v527 = vpop.permute.xlu0 %526
        %529 = vrot.lane.b32.xlu0 %v513, 88
        %v530 = vpop.permute.xlu0 %529
        %532 = vrot.lane.b32.xlu0 %v513, 80
        %v533 = vpop.permute.xlu0 %532
        %535 = vrot.lane.b32.xlu0 %v513, 72
        %v536 = vpop.permute.xlu0 %535
        %538 = vrot.lane.b32.xlu0 %v513, 64
        %v539 = vpop.permute.xlu0 %538
        %541 = vrot.lane.b32.xlu0 %v513, 56
        %v542 = vpop.permute.xlu0 %541
        %544 = vrot.lane.b32.xlu0 %v513, 48
        %v545 = vpop.permute.xlu0 %544
        %547 = vrot.lane.b32.xlu0 %v513, 40
        %v548 = vpop.permute.xlu0 %547
        %v550 = vrot.slane %v521, 4
        %vm551 = vcmask 1047556
        %v552 = vsel %vm551, %v550, %v513
        %v553 = vrot.slane %v513, 4
        %v554 = vsel %vm551, %v521, %v553
        %v556 = vunpack.c.l.s4 1983009808
        %v557 = vunpack.c.0.s8 %v556
        %v558 = vperm.slane %v552, %v557
        %v560 = vunpack.c.l.s4 1983009808
        %v561 = vunpack.c.0.s8 %v560
        %v562 = vperm.slane %v554, %v561
        %v563 = vrot.slane %v524, 4
        %v564 = vsel %vm551, %v563, %v518
        %v565 = vrot.slane %v518, 4
        %v566 = vsel %vm551, %v524, %v565
        %v568 = vunpack.c.l.s4 1983009808
        %v569 = vunpack.c.0.s8 %v568
        %v570 = vperm.slane %v564, %v569
        %v572 = vunpack.c.l.s4 1983009808
        %v573 = vunpack.c.0.s8 %v572
        %v574 = vperm.slane %v566, %v573
        %v575 = vrot.slane %v533, 4
        %v576 = vsel %vm551, %v575, %v527
        %v577 = vrot.slane %v527, 4
        %v578 = vsel %vm551, %v533, %v577
        %v580 = vunpack.c.l.s4 1983009808
        %v581 = vunpack.c.0.s8 %v580
        %v582 = vperm.slane %v576, %v581
        %v584 = vunpack.c.l.s4 1983009808
        %v585 = vunpack.c.0.s8 %v584
        %v586 = vperm.slane %v578, %v585
        %v587 = vrot.slane %v536, 4
        %v588 = vsel %vm551, %v587, %v530
        %v589 = vrot.slane %v530, 4
        %v590 = vsel %vm551, %v536, %v589
        %v592 = vunpack.c.l.s4 1983009808
        %v593 = vunpack.c.0.s8 %v592
        %v594 = vperm.slane %v588, %v593
        %v596 = vunpack.c.l.s4 1983009808
        %v597 = vunpack.c.0.s8 %v596
        %v598 = vperm.slane %v590, %v597
        %v599 = vrot.slane %v570, 4
        %v600 = vsel %vm551, %v599, %v558
        %v601 = vrot.slane %v558, 4
        %v602 = vsel %vm551, %v570, %v601
        %v604 = vunpack.c.l.s4 1934713408
        %v605 = vunpack.c.0.s8 %v604
        %v606 = vperm.slane %v600, %v605
        %v608 = vunpack.c.l.s4 1934713408
        %v609 = vunpack.c.0.s8 %v608
        %v610 = vperm.slane %v602, %v609
        %v611 = vrot.slane %v574, 4
        %v612 = vsel %vm551, %v611, %v562
        %v613 = vrot.slane %v562, 4
        %v614 = vsel %vm551, %v574, %v613
        %v616 = vunpack.c.l.s4 1934713408
        %v617 = vunpack.c.0.s8 %v616
        %v618 = vperm.slane %v612, %v617
        %v620 = vunpack.c.l.s4 1934713408
        %v621 = vunpack.c.0.s8 %v620
        %v622 = vperm.slane %v614, %v621
        %v623 = vrot.slane %v594, 4
        %v624 = vsel %vm551, %v623, %v582
        %v625 = vrot.slane %v582, 4
        %v626 = vsel %vm551, %v594, %v625
        %v628 = vunpack.c.l.s4 1934713408
        %v629 = vunpack.c.0.s8 %v628
        %v630 = vperm.slane %v624, %v629
        %v632 = vunpack.c.l.s4 1934713408
        %v633 = vunpack.c.0.s8 %v632
        %v634 = vperm.slane %v626, %v633
        %v635 = vrot.slane %v598, 4
        %v636 = vsel %vm551, %v635, %v586
        %v637 = vrot.slane %v586, 4
        %v638 = vsel %vm551, %v598, %v637
        %v640 = vunpack.c.l.s4 1934713408
        %v641 = vunpack.c.0.s8 %v640
        %v642 = vperm.slane %v636, %v641
        %v644 = vunpack.c.l.s4 1934713408
        %v645 = vunpack.c.0.s8 %v644
        %v646 = vperm.slane %v638, %v645
        %v647 = vrot.slane %v630, 4
        %v648 = vsel %vm551, %v647, %v606
        %v649 = vrot.slane %v606, 4
        %v650 = vsel %vm551, %v630, %v649
        %v651 = vrot.slane %v634, 4
        %v652 = vsel %vm551, %v651, %v610
        %v653 = vrot.slane %v610, 4
        %v654 = vsel %vm551, %v634, %v653
        %v655 = vrot.slane %v642, 4
        %v656 = vsel %vm551, %v655, %v618
        %v657 = vrot.slane %v618, 4
        %v658 = vsel %vm551, %v642, %v657
        %v659 = vrot.slane %v646, 4
        %v660 = vsel %vm551, %v659, %v622
        %v661 = vrot.slane %v622, 4
        %v662 = vsel %vm551, %v646, %v661
        %v663 = vrot.slane %v545, 4
        %v664 = vsel %vm551, %v663, %v539
        %v665 = vrot.slane %v539, 4
        %v666 = vsel %vm551, %v545, %v665
        %v668 = vunpack.c.l.s4 1983009808
        %v669 = vunpack.c.0.s8 %v668
        %v670 = vperm.slane %v664, %v669
        %v672 = vunpack.c.l.s4 1983009808
        %v673 = vunpack.c.0.s8 %v672
        %v674 = vperm.slane %v666, %v673
        %v675 = vrot.slane %v548, 4
        %v676 = vsel %vm551, %v675, %v542
        %v677 = vrot.slane %v542, 4
        %v678 = vsel %vm551, %v548, %v677
        %v680 = vunpack.c.l.s4 1983009808
        %v681 = vunpack.c.0.s8 %v680
        %v682 = vperm.slane %v676, %v681
        %v684 = vunpack.c.l.s4 1983009808
        %v685 = vunpack.c.0.s8 %v684
        %v686 = vperm.slane %v678, %v685
        %v687 = vrot.slane %v682, 4
        %v688 = vsel %vm551, %v687, %v670
        %v689 = vrot.slane %v670, 4
        %v690 = vsel %vm551, %v682, %v689
        %v692 = vunpack.c.l.s4 1934713408
        %v693 = vunpack.c.0.s8 %v692
        %v694 = vperm.slane %v688, %v693
        %v696 = vunpack.c.l.s4 1934713408
        %v697 = vunpack.c.0.s8 %v696
        %v698 = vperm.slane %v690, %v697
        %v699 = vrot.slane %v686, 4
        %v700 = vsel %vm551, %v699, %v674
        %v701 = vrot.slane %v674, 4
        %v702 = vsel %vm551, %v686, %v701
        %v704 = vunpack.c.l.s4 1934713408
        %v705 = vunpack.c.0.s8 %v704
        %v706 = vperm.slane %v700, %v705
        %v708 = vunpack.c.l.s4 1934713408
        %v709 = vunpack.c.0.s8 %v708
        %v710 = vperm.slane %v702, %v709
        %v711 = vrot.slane %v694, 4
        %v712 = vsel %vm551, 0.0, %v711
        %v713 = vrot.slane %v698, 4
        %v714 = vsel %vm551, 0.0, %v713
        %v715 = vrot.slane %v706, 4
        %v716 = vsel %vm551, 0.0, %v715
        %v717 = vrot.slane %v710, 4
        %v718 = vsel %vm551, 0.0, %v717
        %v719 = vrot.slane %v652, 4
        %v720 = vsel %vm551, %v719, %v648
        %v721 = vrot.slane %v648, 4
        %v722 = vsel %vm551, %v652, %v721
        %v724 = vunpack.c.l.s4 1983009808
        %v725 = vunpack.c.0.s8 %v724
        %v726 = vperm.slane %v720, %v725
        %v728 = vunpack.c.l.s4 1983009808
        %v729 = vunpack.c.0.s8 %v728
        %v730 = vperm.slane %v722, %v729
        %v731 = vrot.slane %v654, 4
        %v732 = vsel %vm551, %v731, %v650
        %v733 = vrot.slane %v650, 4
        %v734 = vsel %vm551, %v654, %v733
        %v736 = vunpack.c.l.s4 1983009808
        %v737 = vunpack.c.0.s8 %v736
        %v738 = vperm.slane %v732, %v737
        %v740 = vunpack.c.l.s4 1983009808
        %v741 = vunpack.c.0.s8 %v740
        %v742 = vperm.slane %v734, %v741
        %v743 = vrot.slane %v660, 4
        %v744 = vsel %vm551, %v743, %v656
        %v745 = vrot.slane %v656, 4
        %v746 = vsel %vm551, %v660, %v745
        %v748 = vunpack.c.l.s4 1983009808
        %v749 = vunpack.c.0.s8 %v748
        %v750 = vperm.slane %v744, %v749
        %v752 = vunpack.c.l.s4 1983009808
        %v753 = vunpack.c.0.s8 %v752
        %v754 = vperm.slane %v746, %v753
        %v755 = vrot.slane %v662, 4
        %v756 = vsel %vm551, %v755, %v658
        %v757 = vrot.slane %v658, 4
        %v758 = vsel %vm551, %v662, %v757
        %v760 = vunpack.c.l.s4 1983009808
        %v761 = vunpack.c.0.s8 %v760
        %v762 = vperm.slane %v756, %v761
        %v764 = vunpack.c.l.s4 1983009808
        %v765 = vunpack.c.0.s8 %v764
        %v766 = vperm.slane %v758, %v765
        %v767 = vrot.slane %v738, 4
        %v768 = vsel %vm551, %v767, %v726
        %v769 = vrot.slane %v726, 4
        %v770 = vsel %vm551, %v738, %v769
        %v772 = vunpack.c.l.s4 1934713408
        %v773 = vunpack.c.0.s8 %v772
        %v774 = vperm.slane %v768, %v773
        %v776 = vunpack.c.l.s4 1934713408
        %v777 = vunpack.c.0.s8 %v776
        %v778 = vperm.slane %v770, %v777
        %v779 = vrot.slane %v742, 4
        %v780 = vsel %vm551, %v779, %v730
        %v781 = vrot.slane %v730, 4
        %v782 = vsel %vm551, %v742, %v781
        %v784 = vunpack.c.l.s4 1934713408
        %v785 = vunpack.c.0.s8 %v784
        %v786 = vperm.slane %v780, %v785
        %v788 = vunpack.c.l.s4 1934713408
        %v789 = vunpack.c.0.s8 %v788
        %v790 = vperm.slane %v782, %v789
        %v791 = vrot.slane %v762, 4
        %v792 = vsel %vm551, %v791, %v750
        %v793 = vrot.slane %v750, 4
        %v794 = vsel %vm551, %v762, %v793
        %v796 = vunpack.c.l.s4 1934713408
        %v797 = vunpack.c.0.s8 %v796
        %v798 = vperm.slane %v792, %v797
        %v800 = vunpack.c.l.s4 1934713408
        %v801 = vunpack.c.0.s8 %v800
        %v802 = vperm.slane %v794, %v801
        %v803 = vrot.slane %v766, 4
        %v804 = vsel %vm551, %v803, %v754
        %v805 = vrot.slane %v754, 4
        %v806 = vsel %vm551, %v766, %v805
        %v808 = vunpack.c.l.s4 1934713408
        %v809 = vunpack.c.0.s8 %v808
        %v810 = vperm.slane %v804, %v809
        %v812 = vunpack.c.l.s4 1934713408
        %v813 = vunpack.c.0.s8 %v812
        %v814 = vperm.slane %v806, %v813
        %v815 = vrot.slane %v798, 4
        %v816 = vsel %vm551, %v815, %v774
        %v817 = vrot.slane %v774, 4
        %v818 = vsel %vm551, %v798, %v817
        %v819 = vrot.slane %v802, 4
        %v820 = vsel %vm551, %v819, %v778
        %v821 = vrot.slane %v778, 4
        %v822 = vsel %vm551, %v802, %v821
        %v823 = vrot.slane %v810, 4
        %v824 = vsel %vm551, %v823, %v786
        %v825 = vrot.slane %v786, 4
        %v826 = vsel %vm551, %v810, %v825
        %v827 = vrot.slane %v814, 4
        %v828 = vsel %vm551, %v827, %v790
        %v829 = vrot.slane %v790, 4
        %v830 = vsel %vm551, %v814, %v829
        %v831 = vsel %vm551, %v713, %v694
        %v833 = vunpack.c.l.s4 1983009808
        %v834 = vunpack.c.0.s8 %v833
        %v835 = vperm.slane %v831, %v834
        %v836 = vrot.slane %v714, 4
        %v837 = vsel %vm551, %v836, %v712
        %v839 = vunpack.c.l.s4 1983009808
        %v840 = vunpack.c.0.s8 %v839
        %v841 = vperm.slane %v837, %v840
        %v842 = vsel %vm551, %v717, %v706
        %v844 = vunpack.c.l.s4 1983009808
        %v845 = vunpack.c.0.s8 %v844
        %v846 = vperm.slane %v842, %v845
        %v847 = vrot.slane %v718, 4
        %v848 = vsel %vm551, %v847, %v716
        %v850 = vunpack.c.l.s4 1983009808
        %v851 = vunpack.c.0.s8 %v850
        %v852 = vperm.slane %v848, %v851
        %v853 = vrot.slane %v841, 4
        %v854 = vsel %vm551, %v853, %v835
        %v855 = vrot.slane %v835, 4
        %v856 = vsel %vm551, %v841, %v855
        %v858 = vunpack.c.l.s4 1934713408
        %v859 = vunpack.c.0.s8 %v858
        %v860 = vperm.slane %v854, %v859
        %v862 = vunpack.c.l.s4 1934713408
        %v863 = vunpack.c.0.s8 %v862
        %v864 = vperm.slane %v856, %v863
        %v865 = vrot.slane %v852, 4
        %v866 = vsel %vm551, %v865, %v846
        %v867 = vrot.slane %v846, 4
        %v868 = vsel %vm551, %v852, %v867
        %v870 = vunpack.c.l.s4 1934713408
        %v871 = vunpack.c.0.s8 %v870
        %v872 = vperm.slane %v866, %v871
        %v874 = vunpack.c.l.s4 1934713408
        %v875 = vunpack.c.0.s8 %v874
        %v876 = vperm.slane %v868, %v875
        %v877 = vrot.slane %v872, 4
        %v878 = vsel %vm551, %v877, %v860
        %v879 = vrot.slane %v860, 4
        %v880 = vsel %vm551, %v872, %v879
        %v881 = vrot.slane %v876, 4
        %v882 = vsel %vm551, %v881, %v864
        %v883 = vrot.slane %v864, 4
        %v884 = vsel %vm551, %v876, %v883
        %v885 = vpack.c.bf16 %v816, %v816
        %v886 = vpack.c.bf16 %v818, %v818
        %v887 = vpack.c.bf16 %v820, %v820
        %v888 = vpack.c.bf16 %v822, %v822
        %v889 = vpack.c.bf16 %v824, %v824
        %v890 = vpack.c.bf16 %v826, %v826
        %v891 = vpack.c.bf16 %v828, %v828
        %v892 = vpack.c.bf16 %v830, %v830
        %v893 = vpack.c.bf16 %v878, %v878
        %v894 = vpack.c.bf16 %v880, %v880
        %v895 = vpack.c.bf16 %v882, %v882
        %v896 = vpack.c.bf16 %v884, %v884
        %v897 = vunpack.c.l.bf16 %v885
        %v898 = vunpack.c.l.bf16 %v886
        %v899 = vunpack.c.l.bf16 %v887
        %v900 = vunpack.c.l.bf16 %v888
        %v901 = vmul.f32 %v897, 0.35351563
        %v902 = vmul.f32 %v898, 0.35351563
        %v903 = vmul.f32 %v899, 0.35351563
        %v904 = vmul.f32 %v900, 0.35351563
        %v905 = vpack.c.bf16 %v901, %v901
        %v906 = vpack.c.bf16 %v902, %v902
        %v907 = vpack.c.bf16 %v903, %v903
        %v908 = vpack.c.bf16 %v904, %v904
        %vm909 = vcmask 64512
        %v911 = vsel %vm909, %v905, 0
        %v914 = vsel %vm909, %v889, 0
        %916 = vmatpush.bf16.xpose.msra.mxu0 0
        %917 = vmatpush.bf16.xpose.msra.mxu0 0
        %918 = vmatpush.bf16.xpose.msra.mxu0 0
        %919 = vmatpush.bf16.xpose.msra.mxu0 0
        %920 = vmatpush.bf16.xpose.msra.mxu0 0
        %921 = vmatpush.bf16.xpose.msra.mxu0 0
        %922 = vmatpush.bf16.xpose.msra.mxu0 0
        %923 = vmatpush.bf16.xpose.msra.mxu0 %v914
        %924 = vmatmul.bf16.gmra.mxu0 %v911
        %v925 = vpop.f32.mrf.mxu0
        %v926 = vadd.f32 0.0, %v925
        %v927 = vpop.f32.mrf.mxu0
        %928 = vdwg.mxu0
        %v930 = vsel %vm909, %v906, 0
        %v933 = vsel %vm909, %v890, 0
        %935 = vmatpush.bf16.xpose.msra.mxu0 0
        %936 = vmatpush.bf16.xpose.msra.mxu0 0
        %937 = vmatpush.bf16.xpose.msra.mxu0 0
        %938 = vmatpush.bf16.xpose.msra.mxu0 0
        %939 = vmatpush.bf16.xpose.msra.mxu0 0
        %940 = vmatpush.bf16.xpose.msra.mxu0 0
        %941 = vmatpush.bf16.xpose.msra.mxu0 0
        %942 = vmatpush.bf16.xpose.msra.mxu0 %v933
        %943 = vmatmul.bf16.gmra.mxu0 %v930
        %v944 = vpop.f32.mrf.mxu0
        %v945 = vadd.f32 0.0, %v944
        %v946 = vpop.f32.mrf.mxu0
        %947 = vdwg.mxu0
        %v949 = vsel %vm909, %v907, 0
        %v952 = vsel %vm909, %v891, 0
        %954 = vmatpush.bf16.xpose.msra.mxu0 0
        %955 = vmatpush.bf16.xpose.msra.mxu0 0
        %956 = vmatpush.bf16.xpose.msra.mxu0 0
        %957 = vmatpush.bf16.xpose.msra.mxu0 0
        %958 = vmatpush.bf16.xpose.msra.mxu0 0
        %959 = vmatpush.bf16.xpose.msra.mxu0 0
        %960 = vmatpush.bf16.xpose.msra.mxu0 0
        %961 = vmatpush.bf16.xpose.msra.mxu0 %v952
        %962 = vmatmul.bf16.gmra.mxu0 %v949
        %v963 = vpop.f32.mrf.mxu0
        %v964 = vadd.f32 0.0, %v963
        %v965 = vpop.f32.mrf.mxu0
        %966 = vdwg.mxu0
        %v968 = vsel %vm909, %v908, 0
        %v971 = vsel %vm909, %v892, 0
        %973 = vmatpush.bf16.xpose.msra.mxu0 0
        %974 = vmatpush.bf16.xpose.msra.mxu0 0
        %975 = vmatpush.bf16.xpose.msra.mxu0 0
        %976 = vmatpush.bf16.xpose.msra.mxu0 0
        %977 = vmatpush.bf16.xpose.msra.mxu0 0
        %978 = vmatpush.bf16.xpose.msra.mxu0 0
        %979 = vmatpush.bf16.xpose.msra.mxu0 0
        %980 = vmatpush.bf16.xpose.msra.mxu0 %v971
        %981 = vmatmul.bf16.gmra.mxu0 %v968
        %v982 = vpop.f32.mrf.mxu0
        %v983 = vadd.f32 0.0, %v982
        %v984 = vpop.f32.mrf.mxu0
        %985 = vdwg.mxu0
        %v986 = vsel %vm909, %v926, -inf
        %987 = vmax.xlane.f32.xlu0 %v986
        %v988 = vpop.xlane.xlu0 %987
        %v989 = vsel %vm909, %v945, -inf
        %990 = vmax.xlane.f32.xlu0 %v989
        %v991 = vpop.xlane.xlu0 %990
        %v992 = vsel %vm909, %v964, -inf
        %993 = vmax.xlane.f32.xlu0 %v992
        %v994 = vpop.xlane.xlu0 %993
        %v995 = vsel %vm909, %v983, -inf
        %996 = vmax.xlane.f32.xlu0 %v995
        %v997 = vpop.xlane.xlu0 %996
        %v998 = vsub.f32 %v926, %v988
        %v999 = vsub.f32 %v945, %v991
        %v1000 = vsub.f32 %v964, %v994
        %v1001 = vsub.f32 %v983, %v997
        %v1002 = vmul.f32 %v998, 1.442695
        %v1003 = vpow.pop %v1002
        %v1004 = vmul.f32 %v999, 1.442695
        %v1005 = vpow.pop %v1004
        %v1006 = vmul.f32 %v1000, 1.442695
        %v1007 = vpow.pop %v1006
        %v1008 = vmul.f32 %v1001, 1.442695
        %v1009 = vpow.pop %v1008
        %v1010 = vsel %vm909, %v1003, 0.0
        %1011 = vadd.xlane.f32.xlu0 %v1010
        %v1012 = vpop.xlane.xlu0 %1011
        %v1013 = vsel %vm909, %v1005, 0.0
        %1014 = vadd.xlane.f32.xlu0 %v1013
        %v1015 = vpop.xlane.xlu0 %1014
        %v1016 = vsel %vm909, %v1007, 0.0
        %1017 = vadd.xlane.f32.xlu0 %v1016
        %v1018 = vpop.xlane.xlu0 %1017
        %v1019 = vsel %vm909, %v1009, 0.0
        %1020 = vadd.xlane.f32.xlu0 %v1019
        %v1021 = vpop.xlane.xlu0 %1020
        %v1022 = vrcp.pop %v1012
        %v1023 = vrcp.pop %v1015
        %v1024 = vrcp.pop %v1018
        %v1025 = vrcp.pop %v1021
        %v1026 = vmul.f32 %v1003, %v1022
        %v1027 = vmul.f32 %v1005, %v1023
        %v1028 = vmul.f32 %v1007, %v1024
        %v1029 = vmul.f32 %v1009, %v1025
        %v1030 = vpack.c.bf16 %v1026, %v1026
        %v1031 = vpack.c.bf16 %v1027, %v1027
        %v1032 = vpack.c.bf16 %v1028, %v1028
        %v1033 = vpack.c.bf16 %v1029, %v1029
        %v1035 = vsel %vm909, %v1030, 0
        %vm1037 = vcmask 1043456
        %v1039 = vsel %vm1037, %v893, 0
        %1041 = vmatpush.bf16.msra.mxu0 0
        %1042 = vmatpush.bf16.msra.mxu0 0
        %1043 = vmatpush.bf16.msra.mxu0 0
        %1044 = vmatpush.bf16.msra.mxu0 0
        %1045 = vmatpush.bf16.msra.mxu0 0
        %1046 = vmatpush.bf16.msra.mxu0 0
        %1047 = vmatpush.bf16.msra.mxu0 0
        %1048 = vmatpush.bf16.msra.mxu0 %v1039
        %1049 = vmatmul.bf16.gmra.mxu0 %v1035
        %v1050 = vpop.f32.mrf.mxu0
        %v1051 = vadd.f32 0.0, %v1050
        %v1052 = vpop.f32.mrf.mxu0
        %1053 = vdwg.mxu0
        %v1055 = vsel %vm909, %v1031, 0
        %v1058 = vsel %vm1037, %v894, 0
        %1060 = vmatpush.bf16.msra.mxu0 0
        %1061 = vmatpush.bf16.msra.mxu0 0
        %1062 = vmatpush.bf16.msra.mxu0 0
        %1063 = vmatpush.bf16.msra.mxu0 0
        %1064 = vmatpush.bf16.msra.mxu0 0
        %1065 = vmatpush.bf16.msra.mxu0 0
        %1066 = vmatpush.bf16.msra.mxu0 0
        %1067 = vmatpush.bf16.msra.mxu0 %v1058
        %1068 = vmatmul.bf16.gmra.mxu0 %v1055
        %v1069 = vpop.f32.mrf.mxu0
        %v1070 = vadd.f32 0.0, %v1069
        %v1071 = vpop.f32.mrf.mxu0
        %1072 = vdwg.mxu0
        %v1074 = vsel %vm909, %v1032, 0
        %v1077 = vsel %vm1037, %v895, 0
        %1079 = vmatpush.bf16.msra.mxu0 0
        %1080 = vmatpush.bf16.msra.mxu0 0
        %1081 = vmatpush.bf16.msra.mxu0 0
        %1082 = vmatpush.bf16.msra.mxu0 0
        %1083 = vmatpush.bf16.msra.mxu0 0
        %1084 = vmatpush.bf16.msra.mxu0 0
        %1085 = vmatpush.bf16.msra.mxu0 0
        %1086 = vmatpush.bf16.msra.mxu0 %v1077
        %1087 = vmatmul.bf16.gmra.mxu0 %v1074
        %v1088 = vpop.f32.mrf.mxu0
        %v1089 = vadd.f32 0.0, %v1088
        %v1090 = vpop.f32.mrf.mxu0
        %1091 = vdwg.mxu0
        %v1093 = vsel %vm909, %v1033, 0
        %v1096 = vsel %vm1037, %v896, 0
        %1098 = vmatpush.bf16.msra.mxu0 0
        %1099 = vmatpush.bf16.msra.mxu0 0
        %1100 = vmatpush.bf16.msra.mxu0 0
        %1101 = vmatpush.bf16.msra.mxu0 0
        %1102 = vmatpush.bf16.msra.mxu0 0
        %1103 = vmatpush.bf16.msra.mxu0 0
        %1104 = vmatpush.bf16.msra.mxu0 0
        %1105 = vmatpush.bf16.msra.mxu0 %v1096
        %1106 = vmatmul.bf16.gmra.mxu0 %v1093
        %v1107 = vpop.f32.mrf.mxu0
        %v1108 = vadd.f32 0.0, %v1107
        %v1109 = vpop.f32.mrf.mxu0
        %1110 = vdwg.mxu0
        %v1111 = vrot.slane %v1089, 4
        %v1112 = vsel %vm551, %v1111, %v1051
        %v1113 = vrot.slane %v1051, 4
        %v1114 = vsel %vm551, %v1089, %v1113
        %v1116 = vunpack.c.l.s4 1983009808
        %v1117 = vunpack.c.0.s8 %v1116
        %v1118 = vperm.slane %v1112, %v1117
        %v1120 = vunpack.c.l.s4 1983009808
        %v1121 = vunpack.c.0.s8 %v1120
        %v1122 = vperm.slane %v1114, %v1121
        %v1123 = vrot.slane %v1108, 4
        %v1124 = vsel %vm551, %v1123, %v1070
        %v1125 = vrot.slane %v1070, 4
        %v1126 = vsel %vm551, %v1108, %v1125
        %v1128 = vunpack.c.l.s4 1983009808
        %v1129 = vunpack.c.0.s8 %v1128
        %v1130 = vperm.slane %v1124, %v1129
        %v1132 = vunpack.c.l.s4 1983009808
        %v1133 = vunpack.c.0.s8 %v1132
        %v1134 = vperm.slane %v1126, %v1133
        %v1135 = vrot.slane %v1130, 4
        %v1136 = vsel %vm551, %v1135, %v1118
        %v1137 = vrot.slane %v1118, 4
        %v1138 = vsel %vm551, %v1130, %v1137
        %v1140 = vunpack.c.l.s4 1934713408
        %v1141 = vunpack.c.0.s8 %v1140
        %v1142 = vperm.slane %v1136, %v1141
        %v1144 = vunpack.c.l.s4 1934713408
        %v1145 = vunpack.c.0.s8 %v1144
        %v1146 = vperm.slane %v1138, %v1145
        %v1147 = vrot.slane %v1134, 4
        %v1148 = vsel %vm551, %v1147, %v1122
        %v1149 = vrot.slane %v1122, 4
        %v1150 = vsel %vm551, %v1134, %v1149
        %v1152 = vunpack.c.l.s4 1934713408
        %v1153 = vunpack.c.0.s8 %v1152
        %v1154 = vperm.slane %v1148, %v1153
        %v1156 = vunpack.c.l.s4 1934713408
        %v1157 = vunpack.c.0.s8 %v1156
        %v1158 = vperm.slane %v1150, %v1157
        %v1159 = vrot.slane %v1142, 4
        %v1160 = vsel %vm551, 0.0, %v1159
        %v1161 = vrot.slane %v1146, 4
        %v1162 = vsel %vm551, 0.0, %v1161
        %v1163 = vrot.slane %v1154, 4
        %v1164 = vsel %vm551, 0.0, %v1163
        %v1165 = vrot.slane %v1158, 4
        %v1166 = vsel %vm551, 0.0, %v1165
        %v1167 = vsel %vm551, %v1161, %v1142
        %v1169 = vunpack.c.l.s4 1983009808
        %v1170 = vunpack.c.0.s8 %v1169
        %v1171 = vperm.slane %v1167, %v1170
        %v1172 = vrot.slane %v1162, 4
        %v1173 = vsel %vm551, %v1172, %v1160
        %v1175 = vunpack.c.l.s4 1983009808
        %v1176 = vunpack.c.0.s8 %v1175
        %v1177 = vperm.slane %v1173, %v1176
        %v1178 = vsel %vm551, %v1165, %v1154
        %v1180 = vunpack.c.l.s4 1983009808
        %v1181 = vunpack.c.0.s8 %v1180
        %v1182 = vperm.slane %v1178, %v1181
        %v1183 = vrot.slane %v1166, 4
        %v1184 = vsel %vm551, %v1183, %v1164
        %v1186 = vunpack.c.l.s4 1983009808
        %v1187 = vunpack.c.0.s8 %v1186
        %v1188 = vperm.slane %v1184, %v1187
        %v1189 = vrot.slane %v1177, 4
        %v1190 = vsel %vm551, %v1189, %v1171
        %v1191 = vrot.slane %v1171, 4
        %v1192 = vsel %vm551, %v1177, %v1191
        %v1194 = vunpack.c.l.s4 1934713408
        %v1195 = vunpack.c.0.s8 %v1194
        %v1196 = vperm.slane %v1190, %v1195
        %v1198 = vunpack.c.l.s4 1934713408
        %v1199 = vunpack.c.0.s8 %v1198
        %v1200 = vperm.slane %v1192, %v1199
        %v1201 = vrot.slane %v1188, 4
        %v1202 = vsel %vm551, %v1201, %v1182
        %v1203 = vrot.slane %v1182, 4
        %v1204 = vsel %vm551, %v1188, %v1203
        %v1206 = vunpack.c.l.s4 1934713408
        %v1207 = vunpack.c.0.s8 %v1206
        %v1208 = vperm.slane %v1202, %v1207
        %v1210 = vunpack.c.l.s4 1934713408
        %v1211 = vunpack.c.0.s8 %v1210
        %v1212 = vperm.slane %v1204, %v1211
        %v1213 = vrot.slane %v1208, 4
        %v1214 = vsel %vm551, %v1213, %v1196
        %v1215 = vrot.slane %v1196, 4
        %v1216 = vsel %vm551, %v1208, %v1215
        %v1217 = vrot.slane %v1212, 4
        %v1218 = vsel %vm551, %v1217, %v1200
        %v1219 = vrot.slane %v1200, 4
        %v1220 = vsel %vm551, %v1212, %v1219
        %1222 = vrot.lane.b32.xlu0 %v1216, 8
        %v1223 = vpop.permute.xlu0 %1222
        %1226 = vrot.lane.b32.xlu0 %v1218, 16
        %v1227 = vpop.permute.xlu0 %1226
        %1230 = vrot.lane.b32.xlu0 %v1220, 24
        %v1231 = vpop.permute.xlu0 %1230
        %v1233 = vsel %vm909, %v1214, %v1223
        %vm1234 = vcmask 130048
        %v1235 = vsel %vm1234, %v1233, %v1227
        %vm1236 = vcmask 195584
        %v1237 = vsel %vm1236, %v1235, %v1231
        %v1238 = vpack.c.bf16 %v1237, %v1237
        %v1239 = vld [vmem:[%s4] sm:$0xf]
        %v1240 = vld [vmem:[%s4 + $0x4] sm:$0xf]
        %v1241 = vld [vmem:[%s4 + $0x8] sm:$0xf]
        %v1242 = vld [vmem:[%s4 + $0xc] sm:$0xf]
        %v1243 = vld [vmem:[%s5] sm:$0x1]
        %v1245 = vperm.slane %v1243, 0
        %v1251 = vunpack.c.l.b16 %v1239
        %v1252 = vunpack.c.l.b16 %v1240
        %v1253 = vunpack.c.l.b16 %v1241
        %v1254 = vunpack.c.l.b16 %v1242
        %v1255 = vpack.c.b16 %v1252, %v1251
        %v1256 = vpack.c.b16 %v1254, %v1253
        %v1260 = vsel %vm445, %v1238, 0
        %1262 = vmatpush.bf16.msra.mxu0 0
        %1263 = vmatpush.bf16.msra.mxu0 0
        %1264 = vmatpush.bf16.msra.mxu0 0
        %1265 = vmatpush.bf16.msra.mxu0 0
        %1266 = vmatpush.bf16.msra.mxu0 0
        %1267 = vmatpush.bf16.msra.mxu0 0
        %1268 = vmatpush.bf16.msra.mxu0 %v1256
        %1269 = vmatpush.bf16.msra.mxu0 %v1255
        %1270 = vmatmul.bf16.gmra.mxu0 %v1260
        %v1271 = vpop.f32.mrf.mxu0
        %v1272 = vadd.f32 %v1245, %v1271
        %v1273 = vpop.f32.mrf.mxu0
        %1274 = vdwg.mxu0
        %v1275 = vadd.f32 %v1272, %v442
        %v1276 = vld [vmem:[%s6] sm:$0x1]
        %v1277 = vld [vmem:[%s7] sm:$0x1]
        %v1278 = vsel %vm445, %v1275, 0.0
        %1279 = vadd.xlane.f32.xlu0 %v1278
        %v1280 = vpop.xlane.xlu0 %1279
        %v1281 = vmul.f32 %v1280, %v455
        %v1282 = vsub.f32 %v1275, %v1281
        %v1283 = vmul.f32 %v1282, %v1282
        %v1284 = vsel %vm445, %v1283, 0.0
        %1285 = vadd.xlane.f32.xlu0 %v1284
        %v1286 = vpop.xlane.xlu0 %1285
        %v1287 = vmul.f32 %v1286, %v455
        %v1288 = vadd.f32 %v1287, 1e-05
        %v1289 = vrsqrt.pop %v1288
        %v1290 = vmul.f32 %v1289, %v1288
        %v1291 = vmul.f32 %v1290, %v1289
        %v1292 = vmul.f32 0.5, %v1291
        %v1293 = vsub.f32 1.5, %v1292
        %v1294 = vmul.f32 %v1289, %v1293
        %vm1295 = vweird.f32 %v1288
        %vm1296 = vweird.f32 %v1289
        %vm1297 = vmor %vm1295, %vm1296
        %v1298 = vsel %vm1297, %v1289, %v1294
        %v1299 = vmul.f32 %v1282, %v1298
        %v1301 = vperm.slane %v1276, 0
        %v1303 = vmul.f32 %v1299, %v1301
        %v1305 = vperm.slane %v1277, 0
        %v1307 = vadd.f32 %v1303, %v1305
        %v1308 = vpack.c.bf16 %v1307, %v1307
        %v1309 = vld [vmem:[#allocation5] sm:$0xf]
        %v1310 = vld [vmem:[#allocation5 + $0x4] sm:$0xf]
        %v1311 = vld [vmem:[#allocation5 + $0x8] sm:$0xf]
        %v1312 = vld [vmem:[#allocation5 + $0xc] sm:$0xf]
        %v1313 = vld [vmem:[%s9] sm:$0x1]
        %v1315 = vperm.slane %v1313, 0
        %v1321 = vunpack.c.l.b16 %v1309
        %v1322 = vunpack.c.l.b16 %v1310
        %v1323 = vunpack.c.l.b16 %v1311
        %v1324 = vunpack.c.l.b16 %v1312
        %v1325 = vpack.c.b16 %v1322, %v1321
        %v1326 = vpack.c.b16 %v1324, %v1323
        %v1330 = vsel %vm445, %v1308, 0
        %1332 = vmatpush.bf16.msra.mxu0 0
        %1333 = vmatpush.bf16.msra.mxu0 0
        %1334 = vmatpush.bf16.msra.mxu0 0
        %1335 = vmatpush.bf16.msra.mxu0 0
        %1336 = vmatpush.bf16.msra.mxu0 0
        %1337 = vmatpush.bf16.msra.mxu0 0
        %1338 = vmatpush.bf16.msra.mxu0 %v1326
        %1339 = vmatpush.bf16.msra.mxu0 %v1325
        %1340 = vmatmul.bf16.gmra.mxu0 %v1330
        %v1341 = vpop.f32.mrf.mxu0
        %v1342 = vadd.f32 %v1315, %v1341
        %v1343 = vpop.f32.mrf.mxu0
        %1344 = vdwg.mxu0
        %v1345 = vmul.f32 %v1342, 0.5
        %v1346 = vmul.f32 %v1342, 0.70710677
        %v1347 = vmul.f32 %v1346, %v1346
        %v1348 = vmin.f32 16.0, %v1347
        %v1349 = vmul.f32 %v1348, 2.1237322e-06
        %v1350 = vadd.f32 %v1349, 0.00028619796
        %v1351 = vmul.f32 %v1348, %v1350
        %v1352 = vadd.f32 %v1351, 0.0036580483
        %v1353 = vmul.f32 %v1348, %v1352
        %v1354 = vadd.f32 %v1353, 0.05243302
        %v1355 = vmul.f32 %v1348, %v1354
        %v1356 = vadd.f32 %v1355, 0.18741608
        %v1357 = vmul.f32 %v1348, %v1356
        %v1358 = vadd.f32 %v1357, 1.1283791
        %v1359 = vmul.f32 %v1346, %v1358
        %v1360 = vmul.f32 %v1348, 3.8918573e-05
        %v1361 = vadd.f32 %v1360, 0.001143296
        %v1362 = vmul.f32 %v1348, %v1361
        %v1363 = vadd.f32 %v1362, 0.014752088
        %v1364 = vmul.f32 %v1348, %v1363
        %v1365 = vadd.f32 %v1364, 0.112945676
        %v1366 = vmul.f32 %v1348, %v1365
        %v1367 = vadd.f32 %v1366, 0.4994258
        %v1368 = vmul.f32 %v1348, %v1367
        %v1369 = vadd.f32 %v1368, 1.0
        %v1370 = vrcp.pop %v1369
        %v1371 = vmul.f32 %v1369, %v1370
        %v1372 = vsub.f32 1.0, %v1371
        %v1373 = vmul.f32 %v1370, %v1372
        %v1374 = vadd.f32 %v1370, %v1373
        %vm1375 = vweird.f32 %v1369
        %vm1376 = vweird.f32 %v1370
        %vm1377 = vmor %vm1375, %vm1376
        %v1378 = vsel %vm1377, %v1370, %v1374
        %v1379 = vand.u32 2147483647, %v1369
        %vm1380 = vcmp.eq.f32.partialorder %v1379, 8.507059e+37
        %v1381 = vand.u32 %v1369, 2147483648
        %v1382 = vor.u32 1.1754944e-38, %v1381
        %v1383 = vsel %vm1380, %v1382, %v1378
        %v1384 = vmul.f32 %v1359, %v1383
        %v1385 = vmin.f32 %v1384, 1.0
        %v1386 = vmax.f32 %v1385, -1.0
        %v1387 = vadd.f32 %v1386, 1.0
        %v1388 = vmul.f32 %v1345, %v1387
        %v1389 = vpack.c.bf16 %v1388, %v1388
        %v1390 = vld [vmem:[%s10] sm:$0xf]
        %v1391 = vld [vmem:[%s10 + $0x4] sm:$0xf]
        %v1392 = vld [vmem:[%s10 + $0x8] sm:$0xf]
        %v1393 = vld [vmem:[%s10 + $0xc] sm:$0xf]
        %v1394 = vld [vmem:[%s10 + $0x10] sm:$0xf]
        %v1395 = vld [vmem:[%s10 + $0x14] sm:$0xf]
        %v1396 = vld [vmem:[%s10 + $0x18] sm:$0xf]
        %v1397 = vld [vmem:[%s10 + $0x1c] sm:$0xf]
        %v1398 = vld [vmem:[%s11] sm:$0x1]
        %v1400 = vperm.slane %v1398, 0
        %v1410 = vunpack.c.l.b16 %v1390
        %v1411 = vunpack.c.l.b16 %v1391
        %v1412 = vunpack.c.l.b16 %v1392
        %v1413 = vunpack.c.l.b16 %v1393
        %v1414 = vunpack.c.l.b16 %v1394
        %v1415 = vunpack.c.l.b16 %v1395
        %v1416 = vunpack.c.l.b16 %v1396
        %v1417 = vunpack.c.l.b16 %v1397
        %v1418 = vpack.c.b16 %v1411, %v1410
        %v1419 = vpack.c.b16 %v1413, %v1412
        %v1420 = vpack.c.b16 %v1415, %v1414
        %v1421 = vpack.c.b16 %v1417, %v1416
        %vm1426 = vcmask 523264
        %v1428 = vsel %vm1426, %v1389, 0
        %1430 = vmatpush.bf16.msra.mxu0 0
        %1431 = vmatpush.bf16.msra.mxu0 0
        %1432 = vmatpush.bf16.msra.mxu0 0
        %1433 = vmatpush.bf16.msra.mxu0 0
        %1434 = vmatpush.bf16.msra.mxu0 %v1421
        %1435 = vmatpush.bf16.msra.mxu0 %v1420
        %1436 = vmatpush.bf16.msra.mxu0 %v1419
        %1437 = vmatpush.bf16.msra.mxu0 %v1418
        %1438 = vmatmul.bf16.gmra.mxu0 %v1428
        %v1439 = vpop.f32.mrf.mxu0
        %v1440 = vadd.f32 %v1400, %v1439
        %v1441 = vpop.f32.mrf.mxu0
        %1442 = vdwg.mxu0
        %v1443 = vadd.f32 %v1440, %v1275
        %1444 = vst.msk [vmem:[%s436] sm:$0xff] %vm445, %v1443
        %s1445 = sand.u32 %s293, 1
        %s1446 = scalar_lea.sflag [#allocation4], %s1445
        %s1447 = sand.u32 %s293, 1
        %s1448 = smul.addr %s1447, 8
        %s1449 = scalar_lea.vmem [#allocation7], %s1448
        // Predicated region
        $region77: #{tpu_custom_call.1} parent=67 // pred_check
          %p1450 = pneg %p303
        $region78: #{tpu_custom_call.1} parent=67 // pred_check_branch
          %1452 = sbr.rel (%p1450) target = $region80
        $region79: #{tpu_custom_call.1} parent=67 // pred_region
          %1454 = vsyncadd %s1446, 0
          %s1455 = smul.addr %s28, 8
          %s1456 = scalar_lea.hbm %s12, %s1455
          %s1458 = sshll.u32 %s1449, 4
          %s1459 = int_to_ptr.vmem [resolvable:$true] %s1458
          %s1460 = sshll.u32 %s1456, 4
          %s1461 = int_to_ptr.hbm [resolvable:$true] %s1460
          %1463 = dma.vmem_to_hbm [thread:$0]  %s1459, 128, %s1461, %s1446
        $region80: #{tpu_custom_call.1} parent=67 // pred_fallthru
          _
      $region68: #{tpu_custom_call.1} parent=5 // pred_fallthru
        _
      %p1464 = scmp.le.s32.totalorder 2, %s23
      // Predicated region
      $region81: #{tpu_custom_call.1} parent=5 // pred_check
        %p1465 = pneg %p1464
      $region82: #{tpu_custom_call.1} parent=5 // pred_check_branch
        %1467 = sbr.rel (%p1465) target = $region84
      $region83: #{tpu_custom_call.1} parent=5 // pred_region
        %s1468 = ssub.s32 %s23, 2
        // Predicated region
        $region85: #{tpu_custom_call.1} parent=83 // pred_check
          %p1469 = pneg %p309
        $region86: #{tpu_custom_call.1} parent=83 // pred_check_branch
          %1471 = sbr.rel (%p1469) target = $region88
        $region87: #{tpu_custom_call.1} parent=83 // pred_region
          %s1472 = sand.u32 %s294, 1
          %s1473 = scalar_lea.sflag [#allocation4], %s1472
          %s1474 = sand.u32 %s294, 1
          %s1475 = smul.addr %s1474, 8
          %s1476 = scalar_lea.vmem [#allocation7], %s1475
          %1478 = dma.done %s1473, 128
        $region88: #{tpu_custom_call.1} parent=83 // pred_fallthru
          _
      $region84: #{tpu_custom_call.1} parent=5 // pred_fallthru
        _
    $region6: #{tpu_custom_call.1} parent=1 // loop_footer
      %s27 = sadd.s32 1, %s23
    $region7: #{tpu_custom_call.1} parent=1 // loop_footer_branch
      %22 = sbr.rel target = $region3
    $region8: #{tpu_custom_call.1} parent=1 // loop_exit
      _
    %1479 = vsyncpa [#allocation3], 1
    %s1480 = scalar_lea.sflag [#allocation3], 1
    %1481 = vsyncpa %s1480, 1
    %1482 = vsyncpa [#allocation6], 1
    %1483 = vsyncpa [#allocation4], 1
    %s1484 = scalar_lea.sflag [#allocation4], 1
    %1485 = vsyncpa %s1484, 1

// kernel: tpu_custom_call.1
$region0: #{tpu_custom_call.1}
  #allocation0 [shape = 'u32[]', space=smem, size = 0x4, offset = 0x4, fixed_abs, tag = 'smem constant byte address 0x4 - core index']
  #allocation1 [shape = 'u32[72,128]{1,0:T(1,128)}', space=vmem, size = 0x9000, scoped, tag = 'internal scratch']
  %s0 = inlined_call_operand.vmem [shape: f32[2,8,32], index: 0, kind: input, shape index: {}]
  %s1 = inlined_call_operand.hbm [shape: f32[1,32], index: 1, kind: input, shape index: {}]
  %s2 = inlined_call_operand.vmem [shape: f32[1,32], index: 2, kind: input, shape index: {}]
  %s3 = inlined_call_operand.vmem [shape: bf16[32,96], index: 3, kind: input, shape index: {}]
  %s4 = inlined_call_operand.vmem [shape: bf16[32,32], index: 4, kind: input, shape index: {}]
  %s5 = inlined_call_operand.vmem [shape: f32[1,32], index: 5, kind: input, shape index: {}]
  %s6 = inlined_call_operand.vmem [shape: f32[1,32], index: 6, kind: input, shape index: {}]
  %s7 = inlined_call_operand.vmem [shape: f32[1,32], index: 7, kind: input, shape index: {}]
  %s8 = inlined_call_operand.hbm [shape: bf16[32,64], index: 8, kind: input, shape index: {}]
  %s9 = inlined_call_operand.vmem [shape: f32[1,64], index: 9, kind: input, shape index: {}]
  %s10 = inlined_call_operand.vmem [shape: bf16[64,32], index: 10, kind: input, shape index: {}]
  %s11 = inlined_call_operand.vmem [shape: f32[1,32], index: 11, kind: input, shape index: {}]
  %s12 = inlined_call_operand.hbm [shape: f32[2,8,32], index: 12, kind: output, shape index: {}]
  %s13 = sld [smem:[#allocation0]]
  $region89: #{tpu_custom_call.1} parent=0
    _
  %s15 = ssub.s32 1, %s13
  %s16 = scalar_select 0, %s15, %s13
  $region1: #{tpu_custom_call.1} parent=0
    #allocation2 [shape = 'u8[512]{0}', space=vmem, size = 0x400, scoped, tag = 'input window, operand 1, single buffered']
    #allocation3 [shape = 's32[2]{0}', space=sflag, size = 0x8, scoped, tag = 'scoped memory for tpu_custom_call.1']
    #allocation4 [shape = 's32[2]{0}', space=sflag, size = 0x8, scoped, tag = 'scoped memory for tpu_custom_call.1']
    #allocation5 [shape = 'u8[8192]{0}', space=vmem, size = 0x2000, scoped, tag = 'input window, operand 8, single buffered']
    #allocation6 [shape = 's32[1]{0}', space=sflag, size = 0x4, scoped, tag = 'scoped memory for tpu_custom_call.1']
    #allocation7 [shape = 'u8[8192]{0}', space=vmem, size = 0x2000, scoped, tag = 'output window, operand 0']
    %17 = vsyncpa [#allocation3], 0
    %18 = vsyncpa [#allocation6], 0
    %19 = vsyncpa [#allocation4], 0
    %s20 = scalar_lea.sflag [#allocation4], 1
    %21 = vsyncpa %s20, 0
    loop: start=0, step=1, limit=4
    $region2: #{tpu_custom_call.1} parent=1 // loop_pre_header
      _
    $region3: #{tpu_custom_call.1} parent=1 // loop_header
      %s23 = sphi 0, %s27
      %p24 = scmp.ge.s32.totalorder %s23, 4
      %s33 = sphi 0, %s35
      %s36 = sphi 0, %s33
      %s37 = sphi 0, %s36
      %s53 = sphi 0, %s37
      %s57 = sphi 0, %s57
      %s59 = sphi 0, %s57
      %s60 = sphi 0, %s59
      %s74 = sphi 0, %s60
      %s78 = sphi 0, %s78
      %s80 = sphi 0, %s78
      %s81 = sphi 0, %s80
      %s95 = sphi 0, %s81
      %s99 = sphi 0, %s99
      %s101 = sphi 0, %s99
      %s102 = sphi 0, %s101
      %s116 = sphi 0, %s102
      %s120 = sphi 0, %s120
      %s122 = sphi 0, %s120
      %s123 = sphi 0, %s122
      %s137 = sphi 0, %s123
      %s141 = sphi 0, %s141
      %s143 = sphi 0, %s141
      %s144 = sphi 0, %s143
      %s158 = sphi 0, %s144
      %s162 = sphi 0, %s162
      %s164 = sphi 0, %s162
      %s165 = sphi 0, %s164
      %s179 = sphi 0, %s165
      %s183 = sphi 0, %s183
      %s185 = sphi 0, %s183
      %s186 = sphi 0, %s185
      %s200 = sphi 0, %s186
      %s204 = sphi 0, %s204
      %s206 = sphi 0, %s204
      %s207 = sphi 0, %s206
      %s221 = sphi 0, %s207
      %s225 = sphi 0, %s225
      %s227 = sphi 0, %s225
      %s228 = sphi 0, %s227
      %s242 = sphi 0, %s228
      %s246 = sphi 0, %s246
      %s248 = sphi 0, %s246
      %s249 = sphi 0, %s248
      %s263 = sphi 0, %s249
      %s267 = sphi 0, %s267
      %s269 = sphi 0, %s267
      %s270 = sphi 0, %s269
      %s284 = sphi 0, %s270
      %s290 = sphi 0, %s292
      %s293 = sphi 0, %s290
      %s294 = sphi 0, %s293
      %s310 = sphi 0, %s294
    $region4: #{tpu_custom_call.1} parent=1 // loop_header_branch
      %26 = sbr.rel (%p24) target = $region8
    $region5: #{tpu_custom_call.1} parent=1 // loop_body
      %s28 = ssub.s32 %s23, 1
      %s29 = ssub.s32 %s23, 2
      %s30 = sadd.s32 %s23, 1
      %s31 = ssub.s32 %s23, %s30
      %p32 = scmp.eq.s32.totalorder %s31, 0
      %s34 = sadd.s32 %s33, 1
      %s35 = scalar_select %p32, %s33, %s34
      %p38 = pneg %p32
      %p39 = scmp.eq.s32.totalorder %s23, 1
      %p40 = por %p38, %p39
      %p41 = scmp.ne.s32.totalorder %s33, %s36
      %p42 = scmp.eq.s32.totalorder %s23, 0
      %p43 = por %p41, %p42
      %p44 = scmp.ne.s32.totalorder %s33, %s36
      %p45 = scmp.eq.s32.totalorder %s28, 1
      %p46 = por %p44, %p45
      %p47 = scmp.ne.s32.totalorder %s36, %s37
      %p48 = scmp.eq.s32.totalorder %s28, 0
      %p49 = por %p47, %p48
      %p50 = scmp.ne.s32.totalorder %s36, %s37
      %p51 = scmp.eq.s32.totalorder %s29, 1
      %p52 = por %p50, %p51
      %p54 = scmp.ne.s32.totalorder %s37, %s53
      %p55 = scmp.eq.s32.totalorder %s29, 0
      %p56 = por %p54, %p55
      %s58 = sadd.s32 %s57, 1
      %p61 = scmp.eq.s32.totalorder %s23, 1
      %p62 = scmp.ne.s32.totalorder %s57, %s59
      %p63 = scmp.eq.s32.totalorder %s23, 0
      %p64 = por %p62, %p63
      %p65 = scmp.ne.s32.totalorder %s57, %s59
      %p66 = scmp.eq.s32.totalorder %s28, 1
      %p67 = por %p65, %p66
      %p68 = scmp.ne.s32.totalorder %s59, %s60
      %p69 = scmp.eq.s32.totalorder %s28, 0
      %p70 = por %p68, %p69
      %p71 = scmp.ne.s32.totalorder %s59, %s60
      %p72 = scmp.eq.s32.totalorder %s29, 1
      %p73 = por %p71, %p72
      %p75 = scmp.ne.s32.totalorder %s60, %s74
      %p76 = scmp.eq.s32.totalorder %s29, 0
      %p77 = por %p75, %p76
      %s79 = sadd.s32 %s78, 1
      %p82 = scmp.eq.s32.totalorder %s23, 1
      %p83 = scmp.ne.s32.totalorder %s78, %s80
      %p84 = scmp.eq.s32.totalorder %s23, 0
      %p85 = por %p83, %p84
      %p86 = scmp.ne.s32.totalorder %s78, %s80
      %p87 = scmp.eq.s32.totalorder %s28, 1
      %p88 = por %p86, %p87
      %p89 = scmp.ne.s32.totalorder %s80, %s81
      %p90 = scmp.eq.s32.totalorder %s28, 0
      %p91 = por %p89, %p90
      %p92 = scmp.ne.s32.totalorder %s80, %s81
      %p93 = scmp.eq.s32.totalorder %s29, 1
      %p94 = por %p92, %p93
      %p96 = scmp.ne.s32.totalorder %s81, %s95
      %p97 = scmp.eq.s32.totalorder %s29, 0
      %p98 = por %p96, %p97
      %s100 = sadd.s32 %s99, 1
      %p103 = scmp.eq.s32.totalorder %s23, 1
      %p104 = scmp.ne.s32.totalorder %s99, %s101
      %p105 = scmp.eq.s32.totalorder %s23, 0
      %p106 = por %p104, %p105
      %p107 = scmp.ne.s32.totalorder %s99, %s101
      %p108 = scmp.eq.s32.totalorder %s28, 1
      %p109 = por %p107, %p108
      %p110 = scmp.ne.s32.totalorder %s101, %s102
      %p111 = scmp.eq.s32.totalorder %s28, 0
      %p112 = por %p110, %p111
      %p113 = scmp.ne.s32.totalorder %s101, %s102
      %p114 = scmp.eq.s32.totalorder %s29, 1
      %p115 = por %p113, %p114
      %p117 = scmp.ne.s32.totalorder %s102, %s116
      %p118 = scmp.eq.s32.totalorder %s29, 0
      %p119 = por %p117, %p118
      %s121 = sadd.s32 %s120, 1
      %p124 = scmp.eq.s32.totalorder %s23, 1
      %p125 = scmp.ne.s32.totalorder %s120, %s122
      %p126 = scmp.eq.s32.totalorder %s23, 0
      %p127 = por %p125, %p126
      %p128 = scmp.ne.s32.totalorder %s120, %s122
      %p129 = scmp.eq.s32.totalorder %s28, 1
      %p130 = por %p128, %p129
      %p131 = scmp.ne.s32.totalorder %s122, %s123
      %p132 = scmp.eq.s32.totalorder %s28, 0
      %p133 = por %p131, %p132
      %p134 = scmp.ne.s32.totalorder %s122, %s123
      %p135 = scmp.eq.s32.totalorder %s29, 1
      %p136 = por %p134, %p135
      %p138 = scmp.ne.s32.totalorder %s123, %s137
      %p139 = scmp.eq.s32.totalorder %s29, 0
      %p140 = por %p138, %p139
      %s142 = sadd.s32 %s141, 1
      %p145 = scmp.eq.s32.totalorder %s23, 1
      %p146 = scmp.ne.s32.totalorder %s141, %s143
      %p147 = scmp.eq.s32.totalorder %s23, 0
      %p148 = por %p146, %p147
      %p149 = scmp.ne.s32.totalorder %s141, %s143
      %p150 = scmp.eq.s32.totalorder %s28, 1
      %p151 = por %p149, %p150
      %p152 = scmp.ne.s32.totalorder %s143, %s144
      %p153 = scmp.eq.s32.totalorder %s28, 0
      %p154 = por %p152, %p153
      %p155 = scmp.ne.s32.totalorder %s143, %s144
      %p156 = scmp.eq.s32.totalorder %s29, 1
      %p157 = por %p155, %p156
      %p159 = scmp.ne.s32.totalorder %s144, %s158
      %p160 = scmp.eq.s32.totalorder %s29, 0
      %p161 = por %p159, %p160
      %s163 = sadd.s32 %s162, 1
      %p166 = scmp.eq.s32.totalorder %s23, 1
      %p167 = scmp.ne.s32.totalorder %s162, %s164
      %p168 = scmp.eq.s32.totalorder %s23, 0
      %p169 = por %p167, %p168
      %p170 = scmp.ne.s32.totalorder %s162, %s164
      %p171 = scmp.eq.s32.totalorder %s28, 1
      %p172 = por %p170, %p171
      %p173 = scmp.ne.s32.totalorder %s164, %s165
      %p174 = scmp.eq.s32.totalorder %s28, 0
      %p175 = por %p173, %p174
      %p176 = scmp.ne.s32.totalorder %s164, %s165
      %p177 = scmp.eq.s32.totalorder %s29, 1
      %p178 = por %p176, %p177
      %p180 = scmp.ne.s32.totalorder %s165, %s179
      %p181 = scmp.eq.s32.totalorder %s29, 0
      %p182 = por %p180, %p181
      %s184 = sadd.s32 %s183, 1
      %p187 = scmp.eq.s32.totalorder %s23, 1
      %p188 = scmp.ne.s32.totalorder %s183, %s185
      %p189 = scmp.eq.s32.totalorder %s23, 0
      %p190 = por %p188, %p189
      %p191 = scmp.ne.s32.totalorder %s183, %s185
      %p192 = scmp.eq.s32.totalorder %s28, 1
      %p193 = por %p191, %p192
      %p194 = scmp.ne.s32.totalorder %s185, %s186
      %p195 = scmp.eq.s32.totalorder %s28, 0
      %p196 = por %p194, %p195
      %p197 = scmp.ne.s32.totalorder %s185, %s186
      %p198 = scmp.eq.s32.totalorder %s29, 1
      %p199 = por %p197, %p198
      %p201 = scmp.ne.s32.totalorder %s186, %s200
      %p202 = scmp.eq.s32.totalorder %s29, 0
      %p203 = por %p201, %p202
      %s205 = sadd.s32 %s204, 1
      %p208 = scmp.eq.s32.totalorder %s23, 1
      %p209 = scmp.ne.s32.totalorder %s204, %s206
      %p210 = scmp.eq.s32.totalorder %s23, 0
      %p211 = por %p209, %p210
      %p212 = scmp.ne.s32.totalorder %s204, %s206
      %p213 = scmp.eq.s32.totalorder %s28, 1
      %p214 = por %p212, %p213
      %p215 = scmp.ne.s32.totalorder %s206, %s207
      %p216 = scmp.eq.s32.totalorder %s28, 0
      %p217 = por %p215, %p216
      %p218 = scmp.ne.s32.totalorder %s206, %s207
      %p219 = scmp.eq.s32.totalorder %s29, 1
      %p220 = por %p218, %p219
      %p222 = scmp.ne.s32.totalorder %s207, %s221
      %p223 = scmp.eq.s32.totalorder %s29, 0
      %p224 = por %p222, %p223
      %s226 = sadd.s32 %s225, 1
      %p229 = scmp.eq.s32.totalorder %s23, 1
      %p230 = scmp.ne.s32.totalorder %s225, %s227
      %p231 = scmp.eq.s32.totalorder %s23, 0
      %p232 = por %p230, %p231
      %p233 = scmp.ne.s32.totalorder %s225, %s227
      %p234 = scmp.eq.s32.totalorder %s28, 1
      %p235 = por %p233, %p234
      %p236 = scmp.ne.s32.totalorder %s227, %s228
      %p237 = scmp.eq.s32.totalorder %s28, 0
      %p238 = por %p236, %p237
      %p239 = scmp.ne.s32.totalorder %s227, %s228
      %p240 = scmp.eq.s32.totalorder %s29, 1
      %p241 = por %p239, %p240
      %p243 = scmp.ne.s32.totalorder %s228, %s242
      %p244 = scmp.eq.s32.totalorder %s29, 0
      %p245 = por %p243, %p244
      %s247 = sadd.s32 %s246, 1
      %p250 = scmp.eq.s32.totalorder %s23, 1
      %p251 = scmp.ne.s32.totalorder %s246, %s248
      %p252 = scmp.eq.s32.totalorder %s23, 0
      %p253 = por %p251, %p252
      %p254 = scmp.ne.s32.totalorder %s246, %s248
      %p255 = scmp.eq.s32.totalorder %s28, 1
      %p256 = por %p254, %p255
      %p257 = scmp.ne.s32.totalorder %s248, %s249
      %p258 = scmp.eq.s32.totalorder %s28, 0
      %p259 = por %p257, %p258
      %p260 = scmp.ne.s32.totalorder %s248, %s249
      %p261 = scmp.eq.s32.totalorder %s29, 1
      %p262 = por %p260, %p261
      %p264 = scmp.ne.s32.totalorder %s249, %s263
      %p265 = scmp.eq.s32.totalorder %s29, 0
      %p266 = por %p264, %p265
      %s268 = sadd.s32 %s267, 1
      %p271 = scmp.eq.s32.totalorder %s23, 1
      %p272 = scmp.ne.s32.totalorder %s267, %s269
      %p273 = scmp.eq.s32.totalorder %s23, 0
      %p274 = por %p272, %p273
      %p275 = scmp.ne.s32.totalorder %s267, %s269
      %p276 = scmp.eq.s32.totalorder %s28, 1
      %p277 = por %p275, %p276
      %p278 = scmp.ne.s32.totalorder %s269, %s270
      %p279 = scmp.eq.s32.totalorder %s28, 0
      %p280 = por %p278, %p279
      %p281 = scmp.ne.s32.totalorder %s269, %s270
      %p282 = scmp.eq.s32.totalorder %s29, 1
      %p283 = por %p281, %p282
      %p285 = scmp.ne.s32.totalorder %s270, %s284
      %p286 = scmp.eq.s32.totalorder %s29, 0
      %p287 = por %p285, %p286
      %s288 = ssub.s32 %s23, %s30
      %p289 = scmp.eq.s32.totalorder %s288, 0
      %s291 = sadd.s32 %s290, 1
      %s292 = scalar_select %p289, %s290, %s291
      %p295 = pneg %p289
      %p296 = scmp.eq.s32.totalorder %s23, 1
      %p297 = por %p295, %p296
      %p298 = scmp.ne.s32.totalorder %s290, %s293
      %p299 = scmp.eq.s32.totalorder %s23, 0
      %p300 = por %p298, %p299
      %p301 = scmp.ne.s32.totalorder %s290, %s293
      %p302 = scmp.eq.s32.totalorder %s28, 1
      %p303 = por %p301, %p302
      %p304 = scmp.ne.s32.totalorder %s293, %s294
      %p305 = scmp.eq.s32.totalorder %s28, 0
      %p306 = por %p304, %p305
      %p307 = scmp.ne.s32.totalorder %s293, %s294
      %p308 = scmp.eq.s32.totalorder %s29, 1
      %p309 = por %p307, %p308
      %p311 = scmp.ne.s32.totalorder %s294, %s310
      %p312 = scmp.eq.s32.totalorder %s29, 0
      %p313 = por %p311, %p312
      %p314 = scmp.le.s32.totalorder 1, %s23
      %p315 = scmp.lt.s32.totalorder %s23, 3
      %p316 = pnand %p314, %p315
      %p317 = pneg %p316
      // Predicated region
      $region9: #{tpu_custom_call.1} parent=5 // pred_check
        _
      $region10: #{tpu_custom_call.1} parent=5 // pred_check_branch
        %319 = sbr.rel (%p316) target = $region12
      $region11: #{tpu_custom_call.1} parent=5 // pred_region
        %s320 = ssub.s32 %s23, 1
        // Predicated region
        $region13: #{tpu_custom_call.1} parent=11 // pred_check
          %p321 = pneg %p70
        $region14: #{tpu_custom_call.1} parent=11 // pred_check_branch
          %323 = sbr.rel (%p321) target = $region16
        $region15: #{tpu_custom_call.1} parent=11 // pred_region
          %325 = vsyncadd [#allocation3], 0
          %s327 = sshll.u32 %s1, 4
          %s328 = int_to_ptr.hbm [resolvable:$true] %s327
          %s329 = sshll.u32 [#allocation2], 4
          %s330 = int_to_ptr.vmem [resolvable:$true] %s329
          %332 = dma.hbm_to_vmem [thread:$0]  %s328, 16, %s330, [#allocation3]
        $region16: #{tpu_custom_call.1} parent=11 // pred_fallthru
          _
        // Predicated region
        $region17: #{tpu_custom_call.1} parent=11 // pred_check
          %p333 = pneg %p91
        $region18: #{tpu_custom_call.1} parent=11 // pred_check_branch
          %335 = sbr.rel (%p333) target = $region20
        $region19: #{tpu_custom_call.1} parent=11 // pred_region
          _
        $region20: #{tpu_custom_call.1} parent=11 // pred_fallthru
          _
        // Predicated region
        $region21: #{tpu_custom_call.1} parent=11 // pred_check
          %p336 = pneg %p112
        $region22: #{tpu_custom_call.1} parent=11 // pred_check_branch
          %338 = sbr.rel (%p336) target = $region24
        $region23: #{tpu_custom_call.1} parent=11 // pred_region
          _
        $region24: #{tpu_custom_call.1} parent=11 // pred_fallthru
          _
        // Predicated region
        $region25: #{tpu_custom_call.1} parent=11 // pred_check
          %p339 = pneg %p133
        $region26: #{tpu_custom_call.1} parent=11 // pred_check_branch
          %341 = sbr.rel (%p339) target = $region28
        $region27: #{tpu_custom_call.1} parent=11 // pred_region
          _
        $region28: #{tpu_custom_call.1} parent=11 // pred_fallthru
          _
        // Predicated region
        $region29: #{tpu_custom_call.1} parent=11 // pred_check
          %p342 = pneg %p154
        $region30: #{tpu_custom_call.1} parent=11 // pred_check_branch
          %344 = sbr.rel (%p342) target = $region32
        $region31: #{tpu_custom_call.1} parent=11 // pred_region
          _
        $region32: #{tpu_custom_call.1} parent=11 // pred_fallthru
          _
        // Predicated region
        $region33: #{tpu_custom_call.1} parent=11 // pred_check
          %p345 = pneg %p175
        $region34: #{tpu_custom_call.1} parent=11 // pred_check_branch
          %347 = sbr.rel (%p345) target = $region36
        $region35: #{tpu_custom_call.1} parent=11 // pred_region
          _
        $region36: #{tpu_custom_call.1} parent=11 // pred_fallthru
          _
        // Predicated region
        $region37: #{tpu_custom_call.1} parent=11 // pred_check
          %p348 = pneg %p196
        $region38: #{tpu_custom_call.1} parent=11 // pred_check_branch
          %350 = sbr.rel (%p348) target = $region40
        $region39: #{tpu_custom_call.1} parent=11 // pred_region
          _
        $region40: #{tpu_custom_call.1} parent=11 // pred_fallthru
          _
        // Predicated region
        $region41: #{tpu_custom_call.1} parent=11 // pred_check
          %p351 = pneg %p217
        $region42: #{tpu_custom_call.1} parent=11 // pred_check_branch
          %353 = sbr.rel (%p351) target = $region44
        $region43: #{tpu_custom_call.1} parent=11 // pred_region
          %355 = vsyncadd [#allocation6], 0
          %s356 = sshll.u32 %s8, 4
          %s357 = int_to_ptr.hbm [resolvable:$true] %s356
          %s358 = sshll.u32 [#allocation5], 4
          %s359 = int_to_ptr.vmem [resolvable:$true] %s358
          %364 = dma.hbm_to_vmem [thread:$0]  %s357, 256, %s359, [#allocation6], 64, 64, 4
        $region44: #{tpu_custom_call.1} parent=11 // pred_fallthru
          _
        // Predicated region
        $region45: #{tpu_custom_call.1} parent=11 // pred_check
          %p365 = pneg %p238
        $region46: #{tpu_custom_call.1} parent=11 // pred_check_branch
          %367 = sbr.rel (%p365) target = $region48
        $region47: #{tpu_custom_call.1} parent=11 // pred_region
          _
        $region48: #{tpu_custom_call.1} parent=11 // pred_fallthru
          _
        // Predicated region
        $region49: #{tpu_custom_call.1} parent=11 // pred_check
          %p368 = pneg %p259
        $region50: #{tpu_custom_call.1} parent=11 // pred_check_branch
          %370 = sbr.rel (%p368) target = $region52
        $region51: #{tpu_custom_call.1} parent=11 // pred_region
          _
        $region52: #{tpu_custom_call.1} parent=11 // pred_fallthru
          _
        // Predicated region
        $region53: #{tpu_custom_call.1} parent=11 // pred_check
          %p371 = pneg %p280
        $region54: #{tpu_custom_call.1} parent=11 // pred_check_branch
          %373 = sbr.rel (%p371) target = $region56
        $region55: #{tpu_custom_call.1} parent=11 // pred_region
          _
        $region56: #{tpu_custom_call.1} parent=11 // pred_fallthru
          _
      $region12: #{tpu_custom_call.1} parent=5 // pred_fallthru
        _
      %p374 = scmp.lt.s32.totalorder %s23, 2
      // Predicated region
      $region57: #{tpu_custom_call.1} parent=5 // pred_check
        %p375 = pneg %p374
      $region58: #{tpu_custom_call.1} parent=5 // pred_check_branch
        %377 = sbr.rel (%p375) target = $region60
      $region59: #{tpu_custom_call.1} parent=5 // pred_region
        // Predicated region
        $region61: #{tpu_custom_call.1} parent=59 // pred_check
          %p378 = pneg %p43
        $region62: #{tpu_custom_call.1} parent=59 // pred_check_branch
          %380 = sbr.rel (%p378) target = $region64
        $region63: #{tpu_custom_call.1} parent=59 // pred_region
          %p381 = scmp.lt.s32.totalorder %s23, 1
          %s382 = scalar_select %p381, %s23, 1
          %s383 = smul.addr %s382, 8
          %s384 = scalar_lea.vmem %s0, %s383
        $region64: #{tpu_custom_call.1} parent=59 // pred_fallthru
          _
      $region60: #{tpu_custom_call.1} parent=5 // pred_fallthru
        _
      %p385 = scmp.le.s32.totalorder 1, %s23
      %p386 = scmp.lt.s32.totalorder %s23, 3
      %p387 = pnand %p385, %p386
      %p388 = pneg %p387
      // Predicated region
      $region65: #{tpu_custom_call.1} parent=5 // pred_check
        _
      $region66: #{tpu_custom_call.1} parent=5 // pred_check_branch
        %390 = sbr.rel (%p387) target = $region68
      $region67: #{tpu_custom_call.1} parent=5 // pred_region
        %s391 = ssub.s32 %s23, 1
        // Predicated region
        $region69: #{tpu_custom_call.1} parent=67 // pred_check
          %p392 = pneg %p70
        $region70: #{tpu_custom_call.1} parent=67 // pred_check_branch
          %394 = sbr.rel (%p392) target = $region72
        $region71: #{tpu_custom_call.1} parent=67 // pred_region
          %396 = dma.done [#allocation3], 16
        $region72: #{tpu_custom_call.1} parent=67 // pred_fallthru
          _
        // Predicated region
        $region73: #{tpu_custom_call.1} parent=67 // pred_check
          %p397 = pneg %p217
        $region74: #{tpu_custom_call.1} parent=67 // pred_check_branch
          %399 = sbr.rel (%p397) target = $region76
        $region75: #{tpu_custom_call.1} parent=67 // pred_region
          %401 = dma.done [#allocation6], 256
        $region76: #{tpu_custom_call.1} parent=67 // pred_fallthru
          _
        %p402 = scmp.lt.s32.totalorder %s28, 1
        %s403 = scalar_select %p402, %s28, 1
        %s404 = smul.addr %s403, 8
        %s405 = scalar_lea.vmem %s0, %s404
        %p406 = pneg %p49
        %p407 = pneg %p46
        %p408 = pneg %p70
        %p409 = pneg %p67
        %p410 = pneg %p91
        %p411 = pneg %p88
        %p412 = pneg %p112
        %p413 = pneg %p109
        %p414 = pneg %p133
        %p415 = pneg %p130
        %p416 = pneg %p154
        %p417 = pneg %p151
        %p418 = pneg %p175
        %p419 = pneg %p172
        %p420 = pneg %p196
        %p421 = pneg %p193
        %p422 = pneg %p217
        %p423 = pneg %p214
        %p424 = pneg %p238
        %p425 = pneg %p235
        %p426 = pneg %p259
        %p427 = pneg %p256
        %p428 = pneg %p280
        %p429 = pneg %p277
        %p430 = pneg %p306
        %p431 = pneg %p303
        %s432 = sand.u32 %s293, 1
        %s433 = scalar_lea.sflag [#allocation4], %s432
        %s434 = sand.u32 %s293, 1
        %s435 = smul.addr %s434, 8
        %s436 = scalar_lea.vmem [#allocation7], %s435
        %p437 = scmp.lt.s32.totalorder %s28, 1
        %s438 = scalar_select %p437, %s28, 1
        %s439 = smul.addr %s438, 8
        %s440 = scalar_lea.vmem %s0, %s439
        %v442 = vld [vmem:[%s440] sm:$0xff]
        %v443 = vld [vmem:[#allocation2] sm:$0x1]
        %v444 = vld [vmem:[%s2] sm:$0x1]
        %vm445 = vcmask 261120
        %v446 = vsel %vm445, %v442, 0.0
        %447 = vadd.xlane.f32.xlu0 %v446
        %v448 = vpop.xlane.xlu0 %447
        %v449 = vrcp.pop 32.0
        %v450 = vmul.f32 32.0, %v449
        %v451 = vsub.f32 1.0, %v450
        %v452 = vmul.f32 %v449, %v451
        %v453 = vadd.f32 %v449, %v452
        %vm454 = vweird.f32 %v449
        %v455 = vsel %vm454, %v449, %v453
        %v456 = vmul.f32 %v448, %v455
        %v457 = vsub.f32 %v442, %v456
        %v458 = vmul.f32 %v457, %v457
        %v459 = vsel %vm445, %v458, 0.0
        %460 = vadd.xlane.f32.xlu0 %v459
        %v461 = vpop.xlane.xlu0 %460
        %v462 = vmul.f32 %v461, %v455
        %v463 = vadd.f32 %v462, 1e-05
        %v464 = vrsqrt.pop %v463
        %v465 = vmul.f32 %v464, %v463
        %v466 = vmul.f32 %v465, %v464
        %v467 = vmul.f32 0.5, %v466
        %v468 = vsub.f32 1.5, %v467
        %v469 = vmul.f32 %v464, %v468
        %vm470 = vweird.f32 %v463
        %vm471 = vweird.f32 %v464
        %vm472 = vmor %vm470, %vm471
        %v473 = vsel %vm472, %v464, %v469
        %v474 = vmul.f32 %v457, %v473
        %v476 = vperm.slane %v443, 0
        %v478 = vmul.f32 %v474, %v476
        %v480 = vperm.slane %v444, 0
        %v482 = vadd.f32 %v478, %v480
        %v483 = vpack.c.bf16 %v482, %v482
        %v484 = vld [vmem:[%s3] sm:$0xf]
        %v485 = vld [vmem:[%s3 + $0x4] sm:$0xf]
        %v486 = vld [vmem:[%s3 + $0x8] sm:$0xf]
        %v487 = vld [vmem:[%s3 + $0xc] sm:$0xf]
        %v492 = vunpack.c.l.b16 %v484
        %v493 = vunpack.c.l.b16 %v485
        %v494 = vunpack.c.l.b16 %v486
        %v495 = vunpack.c.l.b16 %v487
        %v496 = vpack.c.b16 %v493, %v492
        %v497 = vpack.c.b16 %v495, %v494
        %v501 = vsel %vm445, %v483, 0
        %503 = vmatpush.bf16.msra.mxu0 0
        %504 = vmatpush.bf16.msra.mxu0 0
        %505 = vmatpush.bf16.msra.mxu0 0
        %506 = vmatpush.bf16.msra.mxu0 0
        %507 = vmatpush.bf16.msra.mxu0 0
        %508 = vmatpush.bf16.msra.mxu0 0
        %509 = vmatpush.bf16.msra.mxu0 %v497
        %510 = vmatpush.bf16.msra.mxu0 %v496
        %511 = vmatmul.bf16.gmra.mxu0 %v501
        %v512 = vpop.f32.mrf.mxu0
        %v513 = vadd.f32 0.0, %v512
        %v514 = vpop.f32.mrf.mxu0
        %515 = vdwg.mxu0
        %517 = vrot.lane.b32.xlu0 %v513, 120
        %v518 = vpop.permute.xlu0 %517
        %520 = vrot.lane.b32.xlu0 %v513, 112
        %v521 = vpop.permute.xlu0 %520
        %523 = vrot.lane.b32.xlu0 %v513, 104
        %v524 = vpop.permute.xlu0 %523
        %526 = vrot.lane.b32.xlu0 %v513, 96
        %v527 = vpop.permute.xlu0 %526
        %529 = vrot.lane.b32.xlu0 %v513, 88
        %v530 = vpop.permute.xlu0 %529
        %532 = vrot.lane.b32.xlu0 %v513, 80
        %v533 = vpop.permute.xlu0 %532
        %535 = vrot.lane.b32.xlu0 %v513, 72
        %v536 = vpop.permute.xlu0 %535
        %538 = vrot.lane.b32.xlu0 %v513, 64
        %v539 = vpop.permute.xlu0 %538
        %541 = vrot.lane.b32.xlu0 %v513, 56
        %v542 = vpop.permute.xlu0 %541
        %544 = vrot.lane.b32.xlu0 %v513, 48
        %v545 = vpop.permute.xlu0 %544
        %547 = vrot.lane.b32.xlu0 %v513, 40
        %v548 = vpop.permute.xlu0 %547
        %v550 = vpack.c.bf16 %v513, %v513
        %v551 = vpack.c.bf16 %v518, %v518
        %v552 = vpack.c.bf16 %v521, %v521
        %v553 = vpack.c.bf16 %v524, %v524
        %v554 = vpack.c.bf16 %v527, %v527
        %v555 = vpack.c.bf16 %v530, %v530
        %v556 = vpack.c.bf16 %v533, %v533
        %v557 = vpack.c.bf16 %v536, %v536
        %v558 = vpack.c.bf16 %v539, %v539
        %v559 = vpack.c.bf16 %v542, %v542
        %v560 = vpack.c.bf16 %v545, %v545
        %v561 = vpack.c.bf16 %v548, %v548
        %v562 = vunpack.c.l.bf16 %v550
        %v563 = vunpack.c.l.bf16 %v551
        %v564 = vunpack.c.l.bf16 %v552
        %v565 = vunpack.c.l.bf16 %v553
        %v566 = vmul.f32 %v562, 0.35351563
        %v567 = vmul.f32 %v563, 0.35351563
        %v568 = vmul.f32 %v564, 0.35351563
        %v569 = vmul.f32 %v565, 0.35351563
        %v570 = vpack.c.bf16 %v566, %v566
        %v571 = vpack.c.bf16 %v567, %v567
        %v572 = vpack.c.bf16 %v568, %v568
        %v573 = vpack.c.bf16 %v569, %v569
        %vm574 = vcmask 64512
        %v576 = vsel %vm574, %v570, 0
        %v579 = vsel %vm574, %v554, 0
        %581 = vmatpush.bf16.xpose.msra.mxu0 0
        %582 = vmatpush.bf16.xpose.msra.mxu0 0
        %583 = vmatpush.bf16.xpose.msra.mxu0 0
        %584 = vmatpush.bf16.xpose.msra.mxu0 0
        %585 = vmatpush.bf16.xpose.msra.mxu0 0
        %586 = vmatpush.bf16.xpose.msra.mxu0 0
        %587 = vmatpush.bf16.xpose.msra.mxu0 0
        %588 = vmatpush.bf16.xpose.msra.mxu0 %v579
        %589 = vmatmul.bf16.gmra.mxu0 %v576
        %v590 = vpop.f32.mrf.mxu0
        %v591 = vadd.f32 0.0, %v590
        %v592 = vpop.f32.mrf.mxu0
        %593 = vdwg.mxu0
        %v595 = vsel %vm574, %v571, 0
        %v598 = vsel %vm574, %v555, 0
        %600 = vmatpush.bf16.xpose.msra.mxu0 0
        %601 = vmatpush.bf16.xpose.msra.mxu0 0
        %602 = vmatpush.bf16.xpose.msra.mxu0 0
        %603 = vmatpush.bf16.xpose.msra.mxu0 0
        %604 = vmatpush.bf16.xpose.msra.mxu0 0
        %605 = vmatpush.bf16.xpose.msra.mxu0 0
        %606 = vmatpush.bf16.xpose.msra.mxu0 0
        %607 = vmatpush.bf16.xpose.msra.mxu0 %v598
        %608 = vmatmul.bf16.gmra.mxu0 %v595
        %v609 = vpop.f32.mrf.mxu0
        %v610 = vadd.f32 0.0, %v609
        %v611 = vpop.f32.mrf.mxu0
        %612 = vdwg.mxu0
        %v614 = vsel %vm574, %v572, 0
        %v617 = vsel %vm574, %v556, 0
        %619 = vmatpush.bf16.xpose.msra.mxu0 0
        %620 = vmatpush.bf16.xpose.msra.mxu0 0
        %621 = vmatpush.bf16.xpose.msra.mxu0 0
        %622 = vmatpush.bf16.xpose.msra.mxu0 0
        %623 = vmatpush.bf16.xpose.msra.mxu0 0
        %624 = vmatpush.bf16.xpose.msra.mxu0 0
        %625 = vmatpush.bf16.xpose.msra.mxu0 0
        %626 = vmatpush.bf16.xpose.msra.mxu0 %v617
        %627 = vmatmul.bf16.gmra.mxu0 %v614
        %v628 = vpop.f32.mrf.mxu0
        %v629 = vadd.f32 0.0, %v628
        %v630 = vpop.f32.mrf.mxu0
        %631 = vdwg.mxu0
        %v633 = vsel %vm574, %v573, 0
        %v636 = vsel %vm574, %v557, 0
        %638 = vmatpush.bf16.xpose.msra.mxu0 0
        %639 = vmatpush.bf16.xpose.msra.mxu0 0
        %640 = vmatpush.bf16.xpose.msra.mxu0 0
        %641 = vmatpush.bf16.xpose.msra.mxu0 0
        %642 = vmatpush.bf16.xpose.msra.mxu0 0
        %643 = vmatpush.bf16.xpose.msra.mxu0 0
        %644 = vmatpush.bf16.xpose.msra.mxu0 0
        %645 = vmatpush.bf16.xpose.msra.mxu0 %v636
        %646 = vmatmul.bf16.gmra.mxu0 %v633
        %v647 = vpop.f32.mrf.mxu0
        %v648 = vadd.f32 0.0, %v647
        %v649 = vpop.f32.mrf.mxu0
        %650 = vdwg.mxu0
        %v651 = vsel %vm574, %v591, -inf
        %652 = vmax.xlane.f32.xlu0 %v651
        %v653 = vpop.xlane.xlu0 %652
        %v654 = vsel %vm574, %v610, -inf
        %655 = vmax.xlane.f32.xlu0 %v654
        %v656 = vpop.xlane.xlu0 %655
        %v657 = vsel %vm574, %v629, -inf
        %658 = vmax.xlane.f32.xlu0 %v657
        %v659 = vpop.xlane.xlu0 %658
        %v660 = vsel %vm574, %v648, -inf
        %661 = vmax.xlane.f32.xlu0 %v660
        %v662 = vpop.xlane.xlu0 %661
        %v663 = vsub.f32 %v591, %v653
        %v664 = vsub.f32 %v610, %v656
        %v665 = vsub.f32 %v629, %v659
        %v666 = vsub.f32 %v648, %v662
        %v667 = vmul.f32 %v663, 1.442695
        %v668 = vpow.pop %v667
        %v669 = vmul.f32 %v664, 1.442695
        %v670 = vpow.pop %v669
        %v671 = vmul.f32 %v665, 1.442695
        %v672 = vpow.pop %v671
        %v673 = vmul.f32 %v666, 1.442695
        %v674 = vpow.pop %v673
        %v675 = vsel %vm574, %v668, 0.0
        %676 = vadd.xlane.f32.xlu0 %v675
        %v677 = vpop.xlane.xlu0 %676
        %v678 = vsel %vm574, %v670, 0.0
        %679 = vadd.xlane.f32.xlu0 %v678
        %v680 = vpop.xlane.xlu0 %679
        %v681 = vsel %vm574, %v672, 0.0
        %682 = vadd.xlane.f32.xlu0 %v681
        %v683 = vpop.xlane.xlu0 %682
        %v684 = vsel %vm574, %v674, 0.0
        %685 = vadd.xlane.f32.xlu0 %v684
        %v686 = vpop.xlane.xlu0 %685
        %v687 = vrcp.pop %v677
        %v688 = vrcp.pop %v680
        %v689 = vrcp.pop %v683
        %v690 = vrcp.pop %v686
        %v691 = vmul.f32 %v668, %v687
        %v692 = vmul.f32 %v670, %v688
        %v693 = vmul.f32 %v672, %v689
        %v694 = vmul.f32 %v674, %v690
        %v695 = vpack.c.bf16 %v691, %v691
        %v696 = vpack.c.bf16 %v692, %v692
        %v697 = vpack.c.bf16 %v693, %v693
        %v698 = vpack.c.bf16 %v694, %v694
        %v700 = vsel %vm574, %v695, 0
        %vm702 = vcmask 1043456
        %v704 = vsel %vm702, %v558, 0
        %706 = vmatpush.bf16.msra.mxu0 0
        %707 = vmatpush.bf16.msra.mxu0 0
        %708 = vmatpush.bf16.msra.mxu0 0
        %709 = vmatpush.bf16.msra.mxu0 0
        %710 = vmatpush.bf16.msra.mxu0 0
        %711 = vmatpush.bf16.msra.mxu0 0
        %712 = vmatpush.bf16.msra.mxu0 0
        %713 = vmatpush.bf16.msra.mxu0 %v704
        %714 = vmatmul.bf16.gmra.mxu0 %v700
        %v715 = vpop.f32.mrf.mxu0
        %v716 = vadd.f32 0.0, %v715
        %v717 = vpop.f32.mrf.mxu0
        %718 = vdwg.mxu0
        %v720 = vsel %vm574, %v696, 0
        %v723 = vsel %vm702, %v559, 0
        %725 = vmatpush.bf16.msra.mxu0 0
        %726 = vmatpush.bf16.msra.mxu0 0
        %727 = vmatpush.bf16.msra.mxu0 0
        %728 = vmatpush.bf16.msra.mxu0 0
        %729 = vmatpush.bf16.msra.mxu0 0
        %730 = vmatpush.bf16.msra.mxu0 0
        %731 = vmatpush.bf16.msra.mxu0 0
        %732 = vmatpush.bf16.msra.mxu0 %v723
        %733 = vmatmul.bf16.gmra.mxu0 %v720
        %v734 = vpop.f32.mrf.mxu0
        %v735 = vadd.f32 0.0, %v734
        %v736 = vpop.f32.mrf.mxu0
        %737 = vdwg.mxu0
        %v739 = vsel %vm574, %v697, 0
        %v742 = vsel %vm702, %v560, 0
        %744 = vmatpush.bf16.msra.mxu0 0
        %745 = vmatpush.bf16.msra.mxu0 0
        %746 = vmatpush.bf16.msra.mxu0 0
        %747 = vmatpush.bf16.msra.mxu0 0
        %748 = vmatpush.bf16.msra.mxu0 0
        %749 = vmatpush.bf16.msra.mxu0 0
        %750 = vmatpush.bf16.msra.mxu0 0
        %751 = vmatpush.bf16.msra.mxu0 %v742
        %752 = vmatmul.bf16.gmra.mxu0 %v739
        %v753 = vpop.f32.mrf.mxu0
        %v754 = vadd.f32 0.0, %v753
        %v755 = vpop.f32.mrf.mxu0
        %756 = vdwg.mxu0
        %v758 = vsel %vm574, %v698, 0
        %v761 = vsel %vm702, %v561, 0
        %763 = vmatpush.bf16.msra.mxu0 0
        %764 = vmatpush.bf16.msra.mxu0 0
        %765 = vmatpush.bf16.msra.mxu0 0
        %766 = vmatpush.bf16.msra.mxu0 0
        %767 = vmatpush.bf16.msra.mxu0 0
        %768 = vmatpush.bf16.msra.mxu0 0
        %769 = vmatpush.bf16.msra.mxu0 0
        %770 = vmatpush.bf16.msra.mxu0 %v761
        %771 = vmatmul.bf16.gmra.mxu0 %v758
        %v772 = vpop.f32.mrf.mxu0
        %v773 = vadd.f32 0.0, %v772
        %v774 = vpop.f32.mrf.mxu0
        %775 = vdwg.mxu0
        %777 = vrot.lane.b32.xlu0 %v735, 8
        %v778 = vpop.permute.xlu0 %777
        %781 = vrot.lane.b32.xlu0 %v754, 16
        %v782 = vpop.permute.xlu0 %781
        %785 = vrot.lane.b32.xlu0 %v773, 24
        %v786 = vpop.permute.xlu0 %785
        %v788 = vsel %vm574, %v716, %v778
        %vm789 = vcmask 130048
        %v790 = vsel %vm789, %v788, %v782
        %vm791 = vcmask 195584
        %v792 = vsel %vm791, %v790, %v786
        %v793 = vpack.c.bf16 %v792, %v792
        %v794 = vld [vmem:[%s4] sm:$0xf]
        %v795 = vld [vmem:[%s4 + $0x4] sm:$0xf]
        %v796 = vld [vmem:[%s4 + $0x8] sm:$0xf]
        %v797 = vld [vmem:[%s4 + $0xc] sm:$0xf]
        %v798 = vld [vmem:[%s5] sm:$0x1]
        %v800 = vperm.slane %v798, 0
        %v806 = vunpack.c.l.b16 %v794
        %v807 = vunpack.c.l.b16 %v795
        %v808 = vunpack.c.l.b16 %v796
        %v809 = vunpack.c.l.b16 %v797
        %v810 = vpack.c.b16 %v807, %v806
        %v811 = vpack.c.b16 %v809, %v808
        %v815 = vsel %vm445, %v793, 0
        %817 = vmatpush.bf16.msra.mxu0 0
        %818 = vmatpush.bf16.msra.mxu0 0
        %819 = vmatpush.bf16.msra.mxu0 0
        %820 = vmatpush.bf16.msra.mxu0 0
        %821 = vmatpush.bf16.msra.mxu0 0
        %822 = vmatpush.bf16.msra.mxu0 0
        %823 = vmatpush.bf16.msra.mxu0 %v811
        %824 = vmatpush.bf16.msra.mxu0 %v810
        %825 = vmatmul.bf16.gmra.mxu0 %v815
        %v826 = vpop.f32.mrf.mxu0
        %v827 = vadd.f32 %v800, %v826
        %v828 = vpop.f32.mrf.mxu0
        %829 = vdwg.mxu0
        %v830 = vadd.f32 %v827, %v442
        %v831 = vld [vmem:[%s6] sm:$0x1]
        %v832 = vld [vmem:[%s7] sm:$0x1]
        %v833 = vsel %vm445, %v830, 0.0
        %834 = vadd.xlane.f32.xlu0 %v833
        %v835 = vpop.xlane.xlu0 %834
        %v836 = vmul.f32 %v835, %v455
        %v837 = vsub.f32 %v830, %v836
        %v838 = vmul.f32 %v837, %v837
        %v839 = vsel %vm445, %v838, 0.0
        %840 = vadd.xlane.f32.xlu0 %v839
        %v841 = vpop.xlane.xlu0 %840
        %v842 = vmul.f32 %v841, %v455
        %v843 = vadd.f32 %v842, 1e-05
        %v844 = vrsqrt.pop %v843
        %v845 = vmul.f32 %v844, %v843
        %v846 = vmul.f32 %v845, %v844
        %v847 = vmul.f32 0.5, %v846
        %v848 = vsub.f32 1.5, %v847
        %v849 = vmul.f32 %v844, %v848
        %vm850 = vweird.f32 %v843
        %vm851 = vweird.f32 %v844
        %vm852 = vmor %vm850, %vm851
        %v853 = vsel %vm852, %v844, %v849
        %v854 = vmul.f32 %v837, %v853
        %v856 = vperm.slane %v831, 0
        %v858 = vmul.f32 %v854, %v856
        %v860 = vperm.slane %v832, 0
        %v862 = vadd.f32 %v858, %v860
        %v863 = vpack.c.bf16 %v862, %v862
        %v864 = vld [vmem:[#allocation5] sm:$0xf]
        %v865 = vld [vmem:[#allocation5 + $0x4] sm:$0xf]
        %v866 = vld [vmem:[#allocation5 + $0x8] sm:$0xf]
        %v867 = vld [vmem:[#allocation5 + $0xc] sm:$0xf]
        %v868 = vld [vmem:[%s9] sm:$0x1]
        %v870 = vperm.slane %v868, 0
        %v876 = vunpack.c.l.b16 %v864
        %v877 = vunpack.c.l.b16 %v865
        %v878 = vunpack.c.l.b16 %v866
        %v879 = vunpack.c.l.b16 %v867
        %v880 = vpack.c.b16 %v877, %v876
        %v881 = vpack.c.b16 %v879, %v878
        %v885 = vsel %vm445, %v863, 0
        %887 = vmatpush.bf16.msra.mxu0 0
        %888 = vmatpush.bf16.msra.mxu0 0
        %889 = vmatpush.bf16.msra.mxu0 0
        %890 = vmatpush.bf16.msra.mxu0 0
        %891 = vmatpush.bf16.msra.mxu0 0
        %892 = vmatpush.bf16.msra.mxu0 0
        %893 = vmatpush.bf16.msra.mxu0 %v881
        %894 = vmatpush.bf16.msra.mxu0 %v880
        %895 = vmatmul.bf16.gmra.mxu0 %v885
        %v896 = vpop.f32.mrf.mxu0
        %v897 = vadd.f32 %v870, %v896
        %v898 = vpop.f32.mrf.mxu0
        %899 = vdwg.mxu0
        %v900 = vmul.f32 %v897, 0.5
        %v901 = vmul.f32 %v897, 0.70710677
        %v902 = vmul.f32 %v901, %v901
        %v903 = vmin.f32 16.0, %v902
        %v904 = vmul.f32 %v903, 2.1237322e-06
        %v905 = vadd.f32 %v904, 0.00028619796
        %v906 = vmul.f32 %v903, %v905
        %v907 = vadd.f32 %v906, 0.0036580483
        %v908 = vmul.f32 %v903, %v907
        %v909 = vadd.f32 %v908, 0.05243302
        %v910 = vmul.f32 %v903, %v909
        %v911 = vadd.f32 %v910, 0.18741608
        %v912 = vmul.f32 %v903, %v911
        %v913 = vadd.f32 %v912, 1.1283791
        %v914 = vmul.f32 %v901, %v913
        %v915 = vmul.f32 %v903, 3.8918573e-05
        %v916 = vadd.f32 %v915, 0.001143296
        %v917 = vmul.f32 %v903, %v916
        %v918 = vadd.f32 %v917, 0.014752088
        %v919 = vmul.f32 %v903, %v918
        %v920 = vadd.f32 %v919, 0.112945676
        %v921 = vmul.f32 %v903, %v920
        %v922 = vadd.f32 %v921, 0.4994258
        %v923 = vmul.f32 %v903, %v922
        %v924 = vadd.f32 %v923, 1.0
        %v925 = vrcp.pop %v924
        %v926 = vmul.f32 %v924, %v925
        %v927 = vsub.f32 1.0, %v926
        %v928 = vmul.f32 %v925, %v927
        %v929 = vadd.f32 %v925, %v928
        %vm930 = vweird.f32 %v924
        %vm931 = vweird.f32 %v925
        %vm932 = vmor %vm930, %vm931
        %v933 = vsel %vm932, %v925, %v929
        %v934 = vand.u32 2147483647, %v924
        %vm935 = vcmp.eq.f32.partialorder %v934, 8.507059e+37
        %v936 = vand.u32 %v924, 2147483648
        %v937 = vor.u32 1.1754944e-38, %v936
        %v938 = vsel %vm935, %v937, %v933
        %v939 = vmul.f32 %v914, %v938
        %v940 = vmin.f32 %v939, 1.0
        %v941 = vmax.f32 %v940, -1.0
        %v942 = vadd.f32 %v941, 1.0
        %v943 = vmul.f32 %v900, %v942
        %v944 = vpack.c.bf16 %v943, %v943
        %v945 = vld [vmem:[%s10] sm:$0xf]
        %v946 = vld [vmem:[%s10 + $0x4] sm:$0xf]
        %v947 = vld [vmem:[%s10 + $0x8] sm:$0xf]
        %v948 = vld [vmem:[%s10 + $0xc] sm:$0xf]
        %v949 = vld [vmem:[%s10 + $0x10] sm:$0xf]
        %v950 = vld [vmem:[%s10 + $0x14] sm:$0xf]
        %v951 = vld [vmem:[%s10 + $0x18] sm:$0xf]
        %v952 = vld [vmem:[%s10 + $0x1c] sm:$0xf]
        %v953 = vld [vmem:[%s11] sm:$0x1]
        %v955 = vperm.slane %v953, 0
        %v965 = vunpack.c.l.b16 %v945
        %v966 = vunpack.c.l.b16 %v946
        %v967 = vunpack.c.l.b16 %v947
        %v968 = vunpack.c.l.b16 %v948
        %v969 = vunpack.c.l.b16 %v949
        %v970 = vunpack.c.l.b16 %v950
        %v971 = vunpack.c.l.b16 %v951
        %v972 = vunpack.c.l.b16 %v952
        %v973 = vpack.c.b16 %v966, %v965
        %v974 = vpack.c.b16 %v968, %v967
        %v975 = vpack.c.b16 %v970, %v969
        %v976 = vpack.c.b16 %v972, %v971
        %vm981 = vcmask 523264
        %v983 = vsel %vm981, %v944, 0
        %985 = vmatpush.bf16.msra.mxu0 0
        %986 = vmatpush.bf16.msra.mxu0 0
        %987 = vmatpush.bf16.msra.mxu0 0
        %988 = vmatpush.bf16.msra.mxu0 0
        %989 = vmatpush.bf16.msra.mxu0 %v976
        %990 = vmatpush.bf16.msra.mxu0 %v975
        %991 = vmatpush.bf16.msra.mxu0 %v974
        %992 = vmatpush.bf16.msra.mxu0 %v973
        %993 = vmatmul.bf16.gmra.mxu0 %v983
        %v994 = vpop.f32.mrf.mxu0
        %v995 = vadd.f32 %v955, %v994
        %v996 = vpop.f32.mrf.mxu0
        %997 = vdwg.mxu0
        %v998 = vadd.f32 %v995, %v830
        %999 = vst.msk [vmem:[%s436] sm:$0xff] %vm445, %v998
        %s1000 = sand.u32 %s293, 1
        %s1001 = scalar_lea.sflag [#allocation4], %s1000
        %s1002 = sand.u32 %s293, 1
        %s1003 = smul.addr %s1002, 8
        %s1004 = scalar_lea.vmem [#allocation7], %s1003
        // Predicated region
        $region77: #{tpu_custom_call.1} parent=67 // pred_check
          %p1005 = pneg %p303
        $region78: #{tpu_custom_call.1} parent=67 // pred_check_branch
          %1007 = sbr.rel (%p1005) target = $region80
        $region79: #{tpu_custom_call.1} parent=67 // pred_region
          %1009 = vsyncadd %s1001, 0
          %s1010 = smul.addr %s28, 8
          %s1011 = scalar_lea.hbm %s12, %s1010
          %s1013 = sshll.u32 %s1004, 4
          %s1014 = int_to_ptr.vmem [resolvable:$true] %s1013
          %s1015 = sshll.u32 %s1011, 4
          %s1016 = int_to_ptr.hbm [resolvable:$true] %s1015
          %1018 = dma.vmem_to_hbm [thread:$0]  %s1014, 128, %s1016, %s1001
        $region80: #{tpu_custom_call.1} parent=67 // pred_fallthru
          _
      $region68: #{tpu_custom_call.1} parent=5 // pred_fallthru
        _
      %p1019 = scmp.le.s32.totalorder 2, %s23
      // Predicated region
      $region81: #{tpu_custom_call.1} parent=5 // pred_check
        %p1020 = pneg %p1019
      $region82: #{tpu_custom_call.1} parent=5 // pred_check_branch
        %1022 = sbr.rel (%p1020) target = $region84
      $region83: #{tpu_custom_call.1} parent=5 // pred_region
        %s1023 = ssub.s32 %s23, 2
        // Predicated region
        $region85: #{tpu_custom_call.1} parent=83 // pred_check
          %p1024 = pneg %p309
        $region86: #{tpu_custom_call.1} parent=83 // pred_check_branch
          %1026 = sbr.rel (%p1024) target = $region88
        $region87: #{tpu_custom_call.1} parent=83 // pred_region
          %s1027 = sand.u32 %s294, 1
          %s1028 = scalar_lea.sflag [#allocation4], %s1027
          %s1029 = sand.u32 %s294, 1
          %s1030 = smul.addr %s1029, 8
          %s1031 = scalar_lea.vmem [#allocation7], %s1030
          %1033 = dma.done %s1028, 128
        $region88: #{tpu_custom_call.1} parent=83 // pred_fallthru
          _
      $region84: #{tpu_custom_call.1} parent=5 // pred_fallthru
        _
    $region6: #{tpu_custom_call.1} parent=1 // loop_footer
      %s27 = sadd.s32 1, %s23
    $region7: #{tpu_custom_call.1} parent=1 // loop_footer_branch
      %22 = sbr.rel target = $region3
    $region8: #{tpu_custom_call.1} parent=1 // loop_exit
      _
    %1034 = vsyncpa [#allocation3], 1
    %s1035 = scalar_lea.sflag [#allocation3], 1
    %1036 = vsyncpa %s1035, 1
    %1037 = vsyncpa [#allocation6], 1
    %1038 = vsyncpa [#allocation4], 1
    %s1039 = scalar_lea.sflag [#allocation4], 1
    %1040 = vsyncpa %s1039, 1

// kernel: tpu_custom_call.1
$region0: #{tpu_custom_call.1}
  #allocation0 [shape = 'u32[]', space=smem, size = 0x4, offset = 0x4, fixed_abs, tag = 'smem constant byte address 0x4 - core index']
  #allocation1 [shape = 'u32[72,128]{1,0:T(1,128)}', space=vmem, size = 0x9000, scoped, tag = 'internal scratch']
  %s0 = inlined_call_operand.vmem [shape: f32[2,8,32], index: 0, kind: input, shape index: {}]
  %s1 = inlined_call_operand.hbm [shape: f32[1,32], index: 1, kind: input, shape index: {}]
  %s2 = inlined_call_operand.vmem [shape: f32[1,32], index: 2, kind: input, shape index: {}]
  %s3 = inlined_call_operand.vmem [shape: bf16[32,96], index: 3, kind: input, shape index: {}]
  %s4 = inlined_call_operand.vmem [shape: bf16[32,32], index: 4, kind: input, shape index: {}]
  %s5 = inlined_call_operand.vmem [shape: f32[1,32], index: 5, kind: input, shape index: {}]
  %s6 = inlined_call_operand.vmem [shape: f32[1,32], index: 6, kind: input, shape index: {}]
  %s7 = inlined_call_operand.vmem [shape: f32[1,32], index: 7, kind: input, shape index: {}]
  %s8 = inlined_call_operand.hbm [shape: bf16[32,64], index: 8, kind: input, shape index: {}]
  %s9 = inlined_call_operand.vmem [shape: f32[1,64], index: 9, kind: input, shape index: {}]
  %s10 = inlined_call_operand.vmem [shape: bf16[64,32], index: 10, kind: input, shape index: {}]
  %s11 = inlined_call_operand.vmem [shape: f32[1,32], index: 11, kind: input, shape index: {}]
  %s12 = inlined_call_operand.hbm [shape: f32[2,8,32], index: 12, kind: output, shape index: {}]
  %s13 = sld [smem:[#allocation0]]
  $region89: #{tpu_custom_call.1} parent=0
    _
  %s15 = ssub.s32 1, %s13
  %s16 = scalar_select 0, %s15, %s13
  $region1: #{tpu_custom_call.1} parent=0
    #allocation2 [shape = 'u8[512]{0}', space=vmem, size = 0x400, scoped, tag = 'input window, operand 1, single buffered']
    #allocation3 [shape = 's32[2]{0}', space=sflag, size = 0x8, scoped, tag = 'scoped memory for tpu_custom_call.1']
    #allocation4 [shape = 's32[2]{0}', space=sflag, size = 0x8, scoped, tag = 'scoped memory for tpu_custom_call.1']
    #allocation5 [shape = 'u8[8192]{0}', space=vmem, size = 0x2000, scoped, tag = 'input window, operand 8, single buffered']
    #allocation6 [shape = 's32[1]{0}', space=sflag, size = 0x4, scoped, tag = 'scoped memory for tpu_custom_call.1']
    #allocation7 [shape = 'u8[8192]{0}', space=vmem, size = 0x2000, scoped, tag = 'output window, operand 0']
    %17 = vsyncpa [#allocation3], 0
    %18 = vsyncpa [#allocation6], 0
    %19 = vsyncpa [#allocation4], 0
    %s20 = scalar_lea.sflag [#allocation4], 1
    %21 = vsyncpa %s20, 0
    loop: start=0, step=1, limit=4
    $region2: #{tpu_custom_call.1} parent=1 // loop_pre_header
      _
    $region3: #{tpu_custom_call.1} parent=1 // loop_header
      %s23 = sphi 0, %s27
      %p24 = scmp.ge.s32.totalorder %s23, 4
      %s33 = sphi 0, %s35
      %s36 = sphi 0, %s33
      %s37 = sphi 0, %s36
      %s53 = sphi 0, %s37
      %s57 = sphi 0, %s57
      %s59 = sphi 0, %s57
      %s60 = sphi 0, %s59
      %s74 = sphi 0, %s60
      %s78 = sphi 0, %s78
      %s80 = sphi 0, %s78
      %s81 = sphi 0, %s80
      %s95 = sphi 0, %s81
      %s99 = sphi 0, %s99
      %s101 = sphi 0, %s99
      %s102 = sphi 0, %s101
      %s116 = sphi 0, %s102
      %s120 = sphi 0, %s120
      %s122 = sphi 0, %s120
      %s123 = sphi 0, %s122
      %s137 = sphi 0, %s123
      %s141 = sphi 0, %s141
      %s143 = sphi 0, %s141
      %s144 = sphi 0, %s143
      %s158 = sphi 0, %s144
      %s162 = sphi 0, %s162
      %s164 = sphi 0, %s162
      %s165 = sphi 0, %s164
      %s179 = sphi 0, %s165
      %s183 = sphi 0, %s183
      %s185 = sphi 0, %s183
      %s186 = sphi 0, %s185
      %s200 = sphi 0, %s186
      %s204 = sphi 0, %s204
      %s206 = sphi 0, %s204
      %s207 = sphi 0, %s206
      %s221 = sphi 0, %s207
      %s225 = sphi 0, %s225
      %s227 = sphi 0, %s225
      %s228 = sphi 0, %s227
      %s242 = sphi 0, %s228
      %s246 = sphi 0, %s246
      %s248 = sphi 0, %s246
      %s249 = sphi 0, %s248
      %s263 = sphi 0, %s249
      %s267 = sphi 0, %s267
      %s269 = sphi 0, %s267
      %s270 = sphi 0, %s269
      %s284 = sphi 0, %s270
      %s290 = sphi 0, %s292
      %s293 = sphi 0, %s290
      %s294 = sphi 0, %s293
      %s310 = sphi 0, %s294
    $region4: #{tpu_custom_call.1} parent=1 // loop_header_branch
      %26 = sbr.rel (%p24) target = $region8
    $region5: #{tpu_custom_call.1} parent=1 // loop_body
      %s28 = ssub.s32 %s23, 1
      %s29 = ssub.s32 %s23, 2
      %s30 = sadd.s32 %s23, 1
      %s31 = ssub.s32 %s23, %s30
      %p32 = scmp.eq.s32.totalorder %s31, 0
      %s34 = sadd.s32 %s33, 1
      %s35 = scalar_select %p32, %s33, %s34
      %p38 = pneg %p32
      %p39 = scmp.eq.s32.totalorder %s23, 1
      %p40 = por %p38, %p39
      %p41 = scmp.ne.s32.totalorder %s33, %s36
      %p42 = scmp.eq.s32.totalorder %s23, 0
      %p43 = por %p41, %p42
      %p44 = scmp.ne.s32.totalorder %s33, %s36
      %p45 = scmp.eq.s32.totalorder %s28, 1
      %p46 = por %p44, %p45
      %p47 = scmp.ne.s32.totalorder %s36, %s37
      %p48 = scmp.eq.s32.totalorder %s28, 0
      %p49 = por %p47, %p48
      %p50 = scmp.ne.s32.totalorder %s36, %s37
      %p51 = scmp.eq.s32.totalorder %s29, 1
      %p52 = por %p50, %p51
      %p54 = scmp.ne.s32.totalorder %s37, %s53
      %p55 = scmp.eq.s32.totalorder %s29, 0
      %p56 = por %p54, %p55
      %s58 = sadd.s32 %s57, 1
      %p61 = scmp.eq.s32.totalorder %s23, 1
      %p62 = scmp.ne.s32.totalorder %s57, %s59
      %p63 = scmp.eq.s32.totalorder %s23, 0
      %p64 = por %p62, %p63
      %p65 = scmp.ne.s32.totalorder %s57, %s59
      %p66 = scmp.eq.s32.totalorder %s28, 1
      %p67 = por %p65, %p66
      %p68 = scmp.ne.s32.totalorder %s59, %s60
      %p69 = scmp.eq.s32.totalorder %s28, 0
      %p70 = por %p68, %p69
      %p71 = scmp.ne.s32.totalorder %s59, %s60
      %p72 = scmp.eq.s32.totalorder %s29, 1
      %p73 = por %p71, %p72
      %p75 = scmp.ne.s32.totalorder %s60, %s74
      %p76 = scmp.eq.s32.totalorder %s29, 0
      %p77 = por %p75, %p76
      %s79 = sadd.s32 %s78, 1
      %p82 = scmp.eq.s32.totalorder %s23, 1
      %p83 = scmp.ne.s32.totalorder %s78, %s80
      %p84 = scmp.eq.s32.totalorder %s23, 0
      %p85 = por %p83, %p84
      %p86 = scmp.ne.s32.totalorder %s78, %s80
      %p87 = scmp.eq.s32.totalorder %s28, 1
      %p88 = por %p86, %p87
      %p89 = scmp.ne.s32.totalorder %s80, %s81
      %p90 = scmp.eq.s32.totalorder %s28, 0
      %p91 = por %p89, %p90
      %p92 = scmp.ne.s32.totalorder %s80, %s81
      %p93 = scmp.eq.s32.totalorder %s29, 1
      %p94 = por %p92, %p93
      %p96 = scmp.ne.s32.totalorder %s81, %s95
      %p97 = scmp.eq.s32.totalorder %s29, 0
      %p98 = por %p96, %p97
      %s100 = sadd.s32 %s99, 1
      %p103 = scmp.eq.s32.totalorder %s23, 1
      %p104 = scmp.ne.s32.totalorder %s99, %s101
      %p105 = scmp.eq.s32.totalorder %s23, 0
      %p106 = por %p104, %p105
      %p107 = scmp.ne.s32.totalorder %s99, %s101
      %p108 = scmp.eq.s32.totalorder %s28, 1
      %p109 = por %p107, %p108
      %p110 = scmp.ne.s32.totalorder %s101, %s102
      %p111 = scmp.eq.s32.totalorder %s28, 0
      %p112 = por %p110, %p111
      %p113 = scmp.ne.s32.totalorder %s101, %s102
      %p114 = scmp.eq.s32.totalorder %s29, 1
      %p115 = por %p113, %p114
      %p117 = scmp.ne.s32.totalorder %s102, %s116
      %p118 = scmp.eq.s32.totalorder %s29, 0
      %p119 = por %p117, %p118
      %s121 = sadd.s32 %s120, 1
      %p124 = scmp.eq.s32.totalorder %s23, 1
      %p125 = scmp.ne.s32.totalorder %s120, %s122
      %p126 = scmp.eq.s32.totalorder %s23, 0
      %p127 = por %p125, %p126
      %p128 = scmp.ne.s32.totalorder %s120, %s122
      %p129 = scmp.eq.s32.totalorder %s28, 1
      %p130 = por %p128, %p129
      %p131 = scmp.ne.s32.totalorder %s122, %s123
      %p132 = scmp.eq.s32.totalorder %s28, 0
      %p133 = por %p131, %p132
      %p134 = scmp.ne.s32.totalorder %s122, %s123
      %p135 = scmp.eq.s32.totalorder %s29, 1
      %p136 = por %p134, %p135
      %p138 = scmp.ne.s32.totalorder %s123, %s137
      %p139 = scmp.eq.s32.totalorder %s29, 0
      %p140 = por %p138, %p139
      %s142 = sadd.s32 %s141, 1
      %p145 = scmp.eq.s32.totalorder %s23, 1
      %p146 = scmp.ne.s32.totalorder %s141, %s143
      %p147 = scmp.eq.s32.totalorder %s23, 0
      %p148 = por %p146, %p147
      %p149 = scmp.ne.s32.totalorder %s141, %s143
      %p150 = scmp.eq.s32.totalorder %s28, 1
      %p151 = por %p149, %p150
      %p152 = scmp.ne.s32.totalorder %s143, %s144
      %p153 = scmp.eq.s32.totalorder %s28, 0
      %p154 = por %p152, %p153
      %p155 = scmp.ne.s32.totalorder %s143, %s144
      %p156 = scmp.eq.s32.totalorder %s29, 1
      %p157 = por %p155, %p156
      %p159 = scmp.ne.s32.totalorder %s144, %s158
      %p160 = scmp.eq.s32.totalorder %s29, 0
      %p161 = por %p159, %p160
      %s163 = sadd.s32 %s162, 1
      %p166 = scmp.eq.s32.totalorder %s23, 1
      %p167 = scmp.ne.s32.totalorder %s162, %s164
      %p168 = scmp.eq.s32.totalorder %s23, 0
      %p169 = por %p167, %p168
      %p170 = scmp.ne.s32.totalorder %s162, %s164
      %p171 = scmp.eq.s32.totalorder %s28, 1
      %p172 = por %p170, %p171
      %p173 = scmp.ne.s32.totalorder %s164, %s165
      %p174 = scmp.eq.s32.totalorder %s28, 0
      %p175 = por %p173, %p174
      %p176 = scmp.ne.s32.totalorder %s164, %s165
      %p177 = scmp.eq.s32.totalorder %s29, 1
      %p178 = por %p176, %p177
      %p180 = scmp.ne.s32.totalorder %s165, %s179
      %p181 = scmp.eq.s32.totalorder %s29, 0
      %p182 = por %p180, %p181
      %s184 = sadd.s32 %s183, 1
      %p187 = scmp.eq.s32.totalorder %s23, 1
      %p188 = scmp.ne.s32.totalorder %s183, %s185
      %p189 = scmp.eq.s32.totalorder %s23, 0
      %p190 = por %p188, %p189
      %p191 = scmp.ne.s32.totalorder %s183, %s185
      %p192 = scmp.eq.s32.totalorder %s28, 1
      %p193 = por %p191, %p192
      %p194 = scmp.ne.s32.totalorder %s185, %s186
      %p195 = scmp.eq.s32.totalorder %s28, 0
      %p196 = por %p194, %p195
      %p197 = scmp.ne.s32.totalorder %s185, %s186
      %p198 = scmp.eq.s32.totalorder %s29, 1
      %p199 = por %p197, %p198
      %p201 = scmp.ne.s32.totalorder %s186, %s200
      %p202 = scmp.eq.s32.totalorder %s29, 0
      %p203 = por %p201, %p202
      %s205 = sadd.s32 %s204, 1
      %p208 = scmp.eq.s32.totalorder %s23, 1
      %p209 = scmp.ne.s32.totalorder %s204, %s206
      %p210 = scmp.eq.s32.totalorder %s23, 0
      %p211 = por %p209, %p210
      %p212 = scmp.ne.s32.totalorder %s204, %s206
      %p213 = scmp.eq.s32.totalorder %s28, 1
      %p214 = por %p212, %p213
      %p215 = scmp.ne.s32.totalorder %s206, %s207
      %p216 = scmp.eq.s32.totalorder %s28, 0
      %p217 = por %p215, %p216
      %p218 = scmp.ne.s32.totalorder %s206, %s207
      %p219 = scmp.eq.s32.totalorder %s29, 1
      %p220 = por %p218, %p219
      %p222 = scmp.ne.s32.totalorder %s207, %s221
      %p223 = scmp.eq.s32.totalorder %s29, 0
      %p224 = por %p222, %p223
      %s226 = sadd.s32 %s225, 1
      %p229 = scmp.eq.s32.totalorder %s23, 1
      %p230 = scmp.ne.s32.totalorder %s225, %s227
      %p231 = scmp.eq.s32.totalorder %s23, 0
      %p232 = por %p230, %p231
      %p233 = scmp.ne.s32.totalorder %s225, %s227
      %p234 = scmp.eq.s32.totalorder %s28, 1
      %p235 = por %p233, %p234
      %p236 = scmp.ne.s32.totalorder %s227, %s228
      %p237 = scmp.eq.s32.totalorder %s28, 0
      %p238 = por %p236, %p237
      %p239 = scmp.ne.s32.totalorder %s227, %s228
      %p240 = scmp.eq.s32.totalorder %s29, 1
      %p241 = por %p239, %p240
      %p243 = scmp.ne.s32.totalorder %s228, %s242
      %p244 = scmp.eq.s32.totalorder %s29, 0
      %p245 = por %p243, %p244
      %s247 = sadd.s32 %s246, 1
      %p250 = scmp.eq.s32.totalorder %s23, 1
      %p251 = scmp.ne.s32.totalorder %s246, %s248
      %p252 = scmp.eq.s32.totalorder %s23, 0
      %p253 = por %p251, %p252
      %p254 = scmp.ne.s32.totalorder %s246, %s248
      %p255 = scmp.eq.s32.totalorder %s28, 1
      %p256 = por %p254, %p255
      %p257 = scmp.ne.s32.totalorder %s248, %s249
      %p258 = scmp.eq.s32.totalorder %s28, 0
      %p259 = por %p257, %p258
      %p260 = scmp.ne.s32.totalorder %s248, %s249
      %p261 = scmp.eq.s32.totalorder %s29, 1
      %p262 = por %p260, %p261
      %p264 = scmp.ne.s32.totalorder %s249, %s263
      %p265 = scmp.eq.s32.totalorder %s29, 0
      %p266 = por %p264, %p265
      %s268 = sadd.s32 %s267, 1
      %p271 = scmp.eq.s32.totalorder %s23, 1
      %p272 = scmp.ne.s32.totalorder %s267, %s269
      %p273 = scmp.eq.s32.totalorder %s23, 0
      %p274 = por %p272, %p273
      %p275 = scmp.ne.s32.totalorder %s267, %s269
      %p276 = scmp.eq.s32.totalorder %s28, 1
      %p277 = por %p275, %p276
      %p278 = scmp.ne.s32.totalorder %s269, %s270
      %p279 = scmp.eq.s32.totalorder %s28, 0
      %p280 = por %p278, %p279
      %p281 = scmp.ne.s32.totalorder %s269, %s270
      %p282 = scmp.eq.s32.totalorder %s29, 1
      %p283 = por %p281, %p282
      %p285 = scmp.ne.s32.totalorder %s270, %s284
      %p286 = scmp.eq.s32.totalorder %s29, 0
      %p287 = por %p285, %p286
      %s288 = ssub.s32 %s23, %s30
      %p289 = scmp.eq.s32.totalorder %s288, 0
      %s291 = sadd.s32 %s290, 1
      %s292 = scalar_select %p289, %s290, %s291
      %p295 = pneg %p289
      %p296 = scmp.eq.s32.totalorder %s23, 1
      %p297 = por %p295, %p296
      %p298 = scmp.ne.s32.totalorder %s290, %s293
      %p299 = scmp.eq.s32.totalorder %s23, 0
      %p300 = por %p298, %p299
      %p301 = scmp.ne.s32.totalorder %s290, %s293
      %p302 = scmp.eq.s32.totalorder %s28, 1
      %p303 = por %p301, %p302
      %p304 = scmp.ne.s32.totalorder %s293, %s294
      %p305 = scmp.eq.s32.totalorder %s28, 0
      %p306 = por %p304, %p305
      %p307 = scmp.ne.s32.totalorder %s293, %s294
      %p308 = scmp.eq.s32.totalorder %s29, 1
      %p309 = por %p307, %p308
      %p311 = scmp.ne.s32.totalorder %s294, %s310
      %p312 = scmp.eq.s32.totalorder %s29, 0
      %p313 = por %p311, %p312
      %p314 = scmp.le.s32.totalorder 1, %s23
      %p315 = scmp.lt.s32.totalorder %s23, 3
      %p316 = pnand %p314, %p315
      %p317 = pneg %p316
      // Predicated region
      $region9: #{tpu_custom_call.1} parent=5 // pred_check
        _
      $region10: #{tpu_custom_call.1} parent=5 // pred_check_branch
        %319 = sbr.rel (%p316) target = $region12
      $region11: #{tpu_custom_call.1} parent=5 // pred_region
        %s320 = ssub.s32 %s23, 1
        // Predicated region
        $region13: #{tpu_custom_call.1} parent=11 // pred_check
          %p321 = pneg %p70
        $region14: #{tpu_custom_call.1} parent=11 // pred_check_branch
          %323 = sbr.rel (%p321) target = $region16
        $region15: #{tpu_custom_call.1} parent=11 // pred_region
          %325 = vsyncadd [#allocation3], 0
          %s327 = sshll.u32 %s1, 4
          %s328 = int_to_ptr.hbm [resolvable:$true] %s327
          %s329 = sshll.u32 [#allocation2], 4
          %s330 = int_to_ptr.vmem [resolvable:$true] %s329
          %332 = dma.hbm_to_vmem [thread:$0]  %s328, 16, %s330, [#allocation3]
        $region16: #{tpu_custom_call.1} parent=11 // pred_fallthru
          _
        // Predicated region
        $region17: #{tpu_custom_call.1} parent=11 // pred_check
          %p333 = pneg %p91
        $region18: #{tpu_custom_call.1} parent=11 // pred_check_branch
          %335 = sbr.rel (%p333) target = $region20
        $region19: #{tpu_custom_call.1} parent=11 // pred_region
          _
        $region20: #{tpu_custom_call.1} parent=11 // pred_fallthru
          _
        // Predicated region
        $region21: #{tpu_custom_call.1} parent=11 // pred_check
          %p336 = pneg %p112
        $region22: #{tpu_custom_call.1} parent=11 // pred_check_branch
          %338 = sbr.rel (%p336) target = $region24
        $region23: #{tpu_custom_call.1} parent=11 // pred_region
          _
        $region24: #{tpu_custom_call.1} parent=11 // pred_fallthru
          _
        // Predicated region
        $region25: #{tpu_custom_call.1} parent=11 // pred_check
          %p339 = pneg %p133
        $region26: #{tpu_custom_call.1} parent=11 // pred_check_branch
          %341 = sbr.rel (%p339) target = $region28
        $region27: #{tpu_custom_call.1} parent=11 // pred_region
          _
        $region28: #{tpu_custom_call.1} parent=11 // pred_fallthru
          _
        // Predicated region
        $region29: #{tpu_custom_call.1} parent=11 // pred_check
          %p342 = pneg %p154
        $region30: #{tpu_custom_call.1} parent=11 // pred_check_branch
          %344 = sbr.rel (%p342) target = $region32
        $region31: #{tpu_custom_call.1} parent=11 // pred_region
          _
        $region32: #{tpu_custom_call.1} parent=11 // pred_fallthru
          _
        // Predicated region
        $region33: #{tpu_custom_call.1} parent=11 // pred_check
          %p345 = pneg %p175
        $region34: #{tpu_custom_call.1} parent=11 // pred_check_branch
          %347 = sbr.rel (%p345) target = $region36
        $region35: #{tpu_custom_call.1} parent=11 // pred_region
          _
        $region36: #{tpu_custom_call.1} parent=11 // pred_fallthru
          _
        // Predicated region
        $region37: #{tpu_custom_call.1} parent=11 // pred_check
          %p348 = pneg %p196
        $region38: #{tpu_custom_call.1} parent=11 // pred_check_branch
          %350 = sbr.rel (%p348) target = $region40
        $region39: #{tpu_custom_call.1} parent=11 // pred_region
          _
        $region40: #{tpu_custom_call.1} parent=11 // pred_fallthru
          _
        // Predicated region
        $region41: #{tpu_custom_call.1} parent=11 // pred_check
          %p351 = pneg %p217
        $region42: #{tpu_custom_call.1} parent=11 // pred_check_branch
          %353 = sbr.rel (%p351) target = $region44
        $region43: #{tpu_custom_call.1} parent=11 // pred_region
          %355 = vsyncadd [#allocation6], 0
          %s356 = sshll.u32 %s8, 4
          %s357 = int_to_ptr.hbm [resolvable:$true] %s356
          %s358 = sshll.u32 [#allocation5], 4
          %s359 = int_to_ptr.vmem [resolvable:$true] %s358
          %364 = dma.hbm_to_vmem [thread:$0]  %s357, 256, %s359, [#allocation6], 64, 64, 4
        $region44: #{tpu_custom_call.1} parent=11 // pred_fallthru
          _
        // Predicated region
        $region45: #{tpu_custom_call.1} parent=11 // pred_check
          %p365 = pneg %p238
        $region46: #{tpu_custom_call.1} parent=11 // pred_check_branch
          %367 = sbr.rel (%p365) target = $region48
        $region47: #{tpu_custom_call.1} parent=11 // pred_region
          _
        $region48: #{tpu_custom_call.1} parent=11 // pred_fallthru
          _
        // Predicated region
        $region49: #{tpu_custom_call.1} parent=11 // pred_check
          %p368 = pneg %p259
        $region50: #{tpu_custom_call.1} parent=11 // pred_check_branch
          %370 = sbr.rel (%p368) target = $region52
        $region51: #{tpu_custom_call.1} parent=11 // pred_region
          _
        $region52: #{tpu_custom_call.1} parent=11 // pred_fallthru
          _
        // Predicated region
        $region53: #{tpu_custom_call.1} parent=11 // pred_check
          %p371 = pneg %p280
        $region54: #{tpu_custom_call.1} parent=11 // pred_check_branch
          %373 = sbr.rel (%p371) target = $region56
        $region55: #{tpu_custom_call.1} parent=11 // pred_region
          _
        $region56: #{tpu_custom_call.1} parent=11 // pred_fallthru
          _
      $region12: #{tpu_custom_call.1} parent=5 // pred_fallthru
        _
      %p374 = scmp.lt.s32.totalorder %s23, 2
      // Predicated region
      $region57: #{tpu_custom_call.1} parent=5 // pred_check
        %p375 = pneg %p374
      $region58: #{tpu_custom_call.1} parent=5 // pred_check_branch
        %377 = sbr.rel (%p375) target = $region60
      $region59: #{tpu_custom_call.1} parent=5 // pred_region
        // Predicated region
        $region61: #{tpu_custom_call.1} parent=59 // pred_check
          %p378 = pneg %p43
        $region62: #{tpu_custom_call.1} parent=59 // pred_check_branch
          %380 = sbr.rel (%p378) target = $region64
        $region63: #{tpu_custom_call.1} parent=59 // pred_region
          %p381 = scmp.lt.s32.totalorder %s23, 1
          %s382 = scalar_select %p381, %s23, 1
          %s383 = smul.addr %s382, 8
          %s384 = scalar_lea.vmem %s0, %s383
        $region64: #{tpu_custom_call.1} parent=59 // pred_fallthru
          _
      $region60: #{tpu_custom_call.1} parent=5 // pred_fallthru
        _
      %p385 = scmp.le.s32.totalorder 1, %s23
      %p386 = scmp.lt.s32.totalorder %s23, 3
      %p387 = pnand %p385, %p386
      %p388 = pneg %p387
      // Predicated region
      $region65: #{tpu_custom_call.1} parent=5 // pred_check
        _
      $region66: #{tpu_custom_call.1} parent=5 // pred_check_branch
        %390 = sbr.rel (%p387) target = $region68
      $region67: #{tpu_custom_call.1} parent=5 // pred_region
        %s391 = ssub.s32 %s23, 1
        // Predicated region
        $region69: #{tpu_custom_call.1} parent=67 // pred_check
          %p392 = pneg %p70
        $region70: #{tpu_custom_call.1} parent=67 // pred_check_branch
          %394 = sbr.rel (%p392) target = $region72
        $region71: #{tpu_custom_call.1} parent=67 // pred_region
          %396 = dma.done [#allocation3], 16
        $region72: #{tpu_custom_call.1} parent=67 // pred_fallthru
          _
        // Predicated region
        $region73: #{tpu_custom_call.1} parent=67 // pred_check
          %p397 = pneg %p217
        $region74: #{tpu_custom_call.1} parent=67 // pred_check_branch
          %399 = sbr.rel (%p397) target = $region76
        $region75: #{tpu_custom_call.1} parent=67 // pred_region
          %401 = dma.done [#allocation6], 256
        $region76: #{tpu_custom_call.1} parent=67 // pred_fallthru
          _
        %p402 = scmp.lt.s32.totalorder %s28, 1
        %s403 = scalar_select %p402, %s28, 1
        %s404 = smul.addr %s403, 8
        %s405 = scalar_lea.vmem %s0, %s404
        %p406 = pneg %p49
        %p407 = pneg %p46
        %p408 = pneg %p70
        %p409 = pneg %p67
        %p410 = pneg %p91
        %p411 = pneg %p88
        %p412 = pneg %p112
        %p413 = pneg %p109
        %p414 = pneg %p133
        %p415 = pneg %p130
        %p416 = pneg %p154
        %p417 = pneg %p151
        %p418 = pneg %p175
        %p419 = pneg %p172
        %p420 = pneg %p196
        %p421 = pneg %p193
        %p422 = pneg %p217
        %p423 = pneg %p214
        %p424 = pneg %p238
        %p425 = pneg %p235
        %p426 = pneg %p259
        %p427 = pneg %p256
        %p428 = pneg %p280
        %p429 = pneg %p277
        %p430 = pneg %p306
        %p431 = pneg %p303
        %s432 = sand.u32 %s293, 1
        %s433 = scalar_lea.sflag [#allocation4], %s432
        %s434 = sand.u32 %s293, 1
        %s435 = smul.addr %s434, 8
        %s436 = scalar_lea.vmem [#allocation7], %s435
        %p437 = scmp.lt.s32.totalorder %s28, 1
        %s438 = scalar_select %p437, %s28, 1
        %s439 = smul.addr %s438, 8
        %s440 = scalar_lea.vmem %s0, %s439
        %v442 = vld [vmem:[%s440] sm:$0xff]
        %v443 = vld [vmem:[#allocation2] sm:$0x1]
        %v444 = vld [vmem:[%s2] sm:$0x1]
        %vm445 = vcmask 261120
        %v446 = vsel %vm445, %v442, 0.0
        %447 = vadd.xlane.f32.xlu0 %v446
        %v448 = vpop.xlane.xlu0 %447
        %v449 = vrcp.pop 32.0
        %v450 = vmul.f32 32.0, %v449
        %v451 = vsub.f32 1.0, %v450
        %v452 = vmul.f32 %v449, %v451
        %v453 = vadd.f32 %v449, %v452
        %vm454 = vweird.f32 %v449
        %v455 = vsel %vm454, %v449, %v453
        %v456 = vmul.f32 %v448, %v455
        %v457 = vsub.f32 %v442, %v456
        %v458 = vmul.f32 %v457, %v457
        %v459 = vsel %vm445, %v458, 0.0
        %460 = vadd.xlane.f32.xlu0 %v459
        %v461 = vpop.xlane.xlu0 %460
        %v462 = vmul.f32 %v461, %v455
        %v463 = vadd.f32 %v462, 1e-05
        %v464 = vrsqrt.pop %v463
        %v465 = vmul.f32 %v464, %v463
        %v466 = vmul.f32 %v465, %v464
        %v467 = vmul.f32 0.5, %v466
        %v468 = vsub.f32 1.5, %v467
        %v469 = vmul.f32 %v464, %v468
        %vm470 = vweird.f32 %v463
        %vm471 = vweird.f32 %v464
        %vm472 = vmor %vm470, %vm471
        %v473 = vsel %vm472, %v464, %v469
        %v474 = vmul.f32 %v457, %v473
        %v476 = vperm.slane %v443, 0
        %v478 = vmul.f32 %v474, %v476
        %v480 = vperm.slane %v444, 0
        %v482 = vadd.f32 %v478, %v480
        %v483 = vpack.c.bf16 %v482, %v482
        %v484 = vld [vmem:[%s3] sm:$0xf]
        %v485 = vld [vmem:[%s3 + $0x4] sm:$0xf]
        %v486 = vld [vmem:[%s3 + $0x8] sm:$0xf]
        %v487 = vld [vmem:[%s3 + $0xc] sm:$0xf]
        %v492 = vunpack.c.l.b16 %v484
        %v493 = vunpack.c.l.b16 %v485
        %v494 = vunpack.c.l.b16 %v486
        %v495 = vunpack.c.l.b16 %v487
        %v496 = vpack.c.b16 %v493, %v492
        %v497 = vpack.c.b16 %v495, %v494
        %v501 = vsel %vm445, %v483, 0
        %503 = vmatpush.bf16.msra.mxu0 0
        %504 = vmatpush.bf16.msra.mxu0 0
        %505 = vmatpush.bf16.msra.mxu0 0
        %506 = vmatpush.bf16.msra.mxu0 0
        %507 = vmatpush.bf16.msra.mxu0 0
        %508 = vmatpush.bf16.msra.mxu0 0
        %509 = vmatpush.bf16.msra.mxu0 %v497
        %510 = vmatpush.bf16.msra.mxu0 %v496
        %511 = vmatmul.bf16.gmra.mxu0 %v501
        %v512 = vpop.f32.mrf.mxu0
        %v513 = vadd.f32 0.0, %v512
        %v514 = vpop.f32.mrf.mxu0
        %515 = vdwg.mxu0
        %517 = vrot.lane.b32.xlu0 %v513, 120
        %v518 = vpop.permute.xlu0 %517
        %520 = vrot.lane.b32.xlu0 %v513, 112
        %v521 = vpop.permute.xlu0 %520
        %523 = vrot.lane.b32.xlu0 %v513, 104
        %v524 = vpop.permute.xlu0 %523
        %526 = vrot.lane.b32.xlu0 %v513, 96
        %v527 = vpop.permute.xlu0 %526
        %529 = vrot.lane.b32.xlu0 %v513, 88
        %v530 = vpop.permute.xlu0 %529
        %532 = vrot.lane.b32.xlu0 %v513, 80
        %v533 = vpop.permute.xlu0 %532
        %535 = vrot.lane.b32.xlu0 %v513, 72
        %v536 = vpop.permute.xlu0 %535
        %538 = vrot.lane.b32.xlu0 %v513, 64
        %v539 = vpop.permute.xlu0 %538
        %541 = vrot.lane.b32.xlu0 %v513, 56
        %v542 = vpop.permute.xlu0 %541
        %544 = vrot.lane.b32.xlu0 %v513, 48
        %v545 = vpop.permute.xlu0 %544
        %547 = vrot.lane.b32.xlu0 %v513, 40
        %v548 = vpop.permute.xlu0 %547
        %v550 = vpack.c.bf16 %v513, %v513
        %v551 = vpack.c.bf16 %v518, %v518
        %v552 = vpack.c.bf16 %v521, %v521
        %v553 = vpack.c.bf16 %v524, %v524
        %v554 = vpack.c.bf16 %v527, %v527
        %v555 = vpack.c.bf16 %v530, %v530
        %v556 = vpack.c.bf16 %v533, %v533
        %v557 = vpack.c.bf16 %v536, %v536
        %v558 = vpack.c.bf16 %v539, %v539
        %v559 = vpack.c.bf16 %v542, %v542
        %v560 = vpack.c.bf16 %v545, %v545
        %v561 = vpack.c.bf16 %v548, %v548
        %v562 = vunpack.c.l.bf16 %v550
        %v563 = vunpack.c.l.bf16 %v551
        %v564 = vunpack.c.l.bf16 %v552
        %v565 = vunpack.c.l.bf16 %v553
        %v566 = vmul.f32 %v562, 0.35351563
        %v567 = vmul.f32 %v563, 0.35351563
        %v568 = vmul.f32 %v564, 0.35351563
        %v569 = vmul.f32 %v565, 0.35351563
        %v570 = vpack.c.bf16 %v566, %v566
        %v571 = vpack.c.bf16 %v567, %v567
        %v572 = vpack.c.bf16 %v568, %v568
        %v573 = vpack.c.bf16 %v569, %v569
        %vm574 = vcmask 64512
        %v576 = vsel %vm574, %v570, 0
        %v579 = vsel %vm574, %v554, 0
        %581 = vmatpush.bf16.xpose.msra.mxu0 0
        %582 = vmatpush.bf16.xpose.msra.mxu0 0
        %583 = vmatpush.bf16.xpose.msra.mxu0 0
        %584 = vmatpush.bf16.xpose.msra.mxu0 0
        %585 = vmatpush.bf16.xpose.msra.mxu0 0
        %586 = vmatpush.bf16.xpose.msra.mxu0 0
        %587 = vmatpush.bf16.xpose.msra.mxu0 0
        %588 = vmatpush.bf16.xpose.msra.mxu0 %v579
        %589 = vmatmul.bf16.gmra.mxu0 %v576
        %v590 = vpop.f32.mrf.mxu0
        %v591 = vadd.f32 0.0, %v590
        %v592 = vpop.f32.mrf.mxu0
        %593 = vdwg.mxu0
        %v595 = vsel %vm574, %v571, 0
        %v598 = vsel %vm574, %v555, 0
        %600 = vmatpush.bf16.xpose.msra.mxu0 0
        %601 = vmatpush.bf16.xpose.msra.mxu0 0
        %602 = vmatpush.bf16.xpose.msra.mxu0 0
        %603 = vmatpush.bf16.xpose.msra.mxu0 0
        %604 = vmatpush.bf16.xpose.msra.mxu0 0
        %605 = vmatpush.bf16.xpose.msra.mxu0 0
        %606 = vmatpush.bf16.xpose.msra.mxu0 0
        %607 = vmatpush.bf16.xpose.msra.mxu0 %v598
        %608 = vmatmul.bf16.gmra.mxu0 %v595
        %v609 = vpop.f32.mrf.mxu0
        %v610 = vadd.f32 0.0, %v609
        %v611 = vpop.f32.mrf.mxu0
        %612 = vdwg.mxu0
        %v614 = vsel %vm574, %v572, 0
        %v617 = vsel %vm574, %v556, 0
        %619 = vmatpush.bf16.xpose.msra.mxu0 0
        %620 = vmatpush.bf16.xpose.msra.mxu0 0
        %621 = vmatpush.bf16.xpose.msra.mxu0 0
        %622 = vmatpush.bf16.xpose.msra.mxu0 0
        %623 = vmatpush.bf16.xpose.msra.mxu0 0
        %624 = vmatpush.bf16.xpose.msra.mxu0 0
        %625 = vmatpush.bf16.xpose.msra.mxu0 0
        %626 = vmatpush.bf16.xpose.msra.mxu0 %v617
        %627 = vmatmul.bf16.gmra.mxu0 %v614
        %v628 = vpop.f32.mrf.mxu0
        %v629 = vadd.f32 0.0, %v628
        %v630 = vpop.f32.mrf.mxu0
        %631 = vdwg.mxu0
        %v633 = vsel %vm574, %v573, 0
        %v636 = vsel %vm574, %v557, 0
        %638 = vmatpush.bf16.xpose.msra.mxu0 0
        %639 = vmatpush.bf16.xpose.msra.mxu0 0
        %640 = vmatpush.bf16.xpose.msra.mxu0 0
        %641 = vmatpush.bf16.xpose.msra.mxu0 0
        %642 = vmatpush.bf16.xpose.msra.mxu0 0
        %643 = vmatpush.bf16.xpose.msra.mxu0 0
        %644 = vmatpush.bf16.xpose.msra.mxu0 0
        %645 = vmatpush.bf16.xpose.msra.mxu0 %v636
        %646 = vmatmul.bf16.gmra.mxu0 %v633
        %v647 = vpop.f32.mrf.mxu0
        %v648 = vadd.f32 0.0, %v647
        %v649 = vpop.f32.mrf.mxu0
        %650 = vdwg.mxu0
        %v651 = vsel %vm574, %v591, -inf
        %652 = vmax.xlane.f32.xlu0 %v651
        %v653 = vpop.xlane.xlu0 %652
        %v654 = vsel %vm574, %v610, -inf
        %655 = vmax.xlane.f32.xlu0 %v654
        %v656 = vpop.xlane.xlu0 %655
        %v657 = vsel %vm574, %v629, -inf
        %658 = vmax.xlane.f32.xlu0 %v657
        %v659 = vpop.xlane.xlu0 %658
        %v660 = vsel %vm574, %v648, -inf
        %661 = vmax.xlane.f32.xlu0 %v660
        %v662 = vpop.xlane.xlu0 %661
        %v663 = vsub.f32 %v591, %v653
        %v664 = vsub.f32 %v610, %v656
        %v665 = vsub.f32 %v629, %v659
        %v666 = vsub.f32 %v648, %v662
        %v667 = vmul.f32 %v663, 1.442695
        %v668 = vpow.pop %v667
        %v669 = vmul.f32 %v664, 1.442695
        %v670 = vpow.pop %v669
        %v671 = vmul.f32 %v665, 1.442695
        %v672 = vpow.pop %v671
        %v673 = vmul.f32 %v666, 1.442695
        %v674 = vpow.pop %v673
        %v675 = vsel %vm574, %v668, 0.0
        %676 = vadd.xlane.f32.xlu0 %v675
        %v677 = vpop.xlane.xlu0 %676
        %v678 = vsel %vm574, %v670, 0.0
        %679 = vadd.xlane.f32.xlu0 %v678
        %v680 = vpop.xlane.xlu0 %679
        %v681 = vsel %vm574, %v672, 0.0
        %682 = vadd.xlane.f32.xlu0 %v681
        %v683 = vpop.xlane.xlu0 %682
        %v684 = vsel %vm574, %v674, 0.0
        %685 = vadd.xlane.f32.xlu0 %v684
        %v686 = vpop.xlane.xlu0 %685
        %v687 = vrcp.pop %v677
        %v688 = vrcp.pop %v680
        %v689 = vrcp.pop %v683
        %v690 = vrcp.pop %v686
        %v691 = vmul.f32 %v668, %v687
        %v692 = vmul.f32 %v670, %v688
        %v693 = vmul.f32 %v672, %v689
        %v694 = vmul.f32 %v674, %v690
        %v695 = vpack.c.bf16 %v691, %v691
        %v696 = vpack.c.bf16 %v692, %v692
        %v697 = vpack.c.bf16 %v693, %v693
        %v698 = vpack.c.bf16 %v694, %v694
        %v700 = vsel %vm574, %v695, 0
        %vm702 = vcmask 1043456
        %v704 = vsel %vm702, %v558, 0
        %706 = vmatpush.bf16.msra.mxu0 0
        %707 = vmatpush.bf16.msra.mxu0 0
        %708 = vmatpush.bf16.msra.mxu0 0
        %709 = vmatpush.bf16.msra.mxu0 0
        %710 = vmatpush.bf16.msra.mxu0 0
        %711 = vmatpush.bf16.msra.mxu0 0
        %712 = vmatpush.bf16.msra.mxu0 0
        %713 = vmatpush.bf16.msra.mxu0 %v704
        %714 = vmatmul.bf16.gmra.mxu0 %v700
        %v715 = vpop.f32.mrf.mxu0
        %v716 = vadd.f32 0.0, %v715
        %v717 = vpop.f32.mrf.mxu0
        %718 = vdwg.mxu0
        %v720 = vsel %vm574, %v696, 0
        %v723 = vsel %vm702, %v559, 0
        %725 = vmatpush.bf16.msra.mxu0 0
        %726 = vmatpush.bf16.msra.mxu0 0
        %727 = vmatpush.bf16.msra.mxu0 0
        %728 = vmatpush.bf16.msra.mxu0 0
        %729 = vmatpush.bf16.msra.mxu0 0
        %730 = vmatpush.bf16.msra.mxu0 0
        %731 = vmatpush.bf16.msra.mxu0 0
        %732 = vmatpush.bf16.msra.mxu0 %v723
        %733 = vmatmul.bf16.gmra.mxu0 %v720
        %v734 = vpop.f32.mrf.mxu0
        %v735 = vadd.f32 0.0, %v734
        %v736 = vpop.f32.mrf.mxu0
        %737 = vdwg.mxu0
        %v739 = vsel %vm574, %v697, 0
        %v742 = vsel %vm702, %v560, 0
        %744 = vmatpush.bf16.msra.mxu0 0
        %745 = vmatpush.bf16.msra.mxu0 0
        %746 = vmatpush.bf16.msra.mxu0 0
        %747 = vmatpush.bf16.msra.mxu0 0
        %748 = vmatpush.bf16.msra.mxu0 0
        %749 = vmatpush.bf16.msra.mxu0 0
        %750 = vmatpush.bf16.msra.mxu0 0
        %751 = vmatpush.bf16.msra.mxu0 %v742
        %752 = vmatmul.bf16.gmra.mxu0 %v739
        %v753 = vpop.f32.mrf.mxu0
        %v754 = vadd.f32 0.0, %v753
        %v755 = vpop.f32.mrf.mxu0
        %756 = vdwg.mxu0
        %v758 = vsel %vm574, %v698, 0
        %v761 = vsel %vm702, %v561, 0
        %763 = vmatpush.bf16.msra.mxu0 0
        %764 = vmatpush.bf16.msra.mxu0 0
        %765 = vmatpush.bf16.msra.mxu0 0
        %766 = vmatpush.bf16.msra.mxu0 0
        %767 = vmatpush.bf16.msra.mxu0 0
        %768 = vmatpush.bf16.msra.mxu0 0
        %769 = vmatpush.bf16.msra.mxu0 0
        %770 = vmatpush.bf16.msra.mxu0 %v761
        %771 = vmatmul.bf16.gmra.mxu0 %v758
        %v772 = vpop.f32.mrf.mxu0
        %v773 = vadd.f32 0.0, %v772
        %v774 = vpop.f32.mrf.mxu0
        %775 = vdwg.mxu0
        %777 = vrot.lane.b32.xlu0 %v735, 8
        %v778 = vpop.permute.xlu0 %777
        %781 = vrot.lane.b32.xlu0 %v754, 16
        %v782 = vpop.permute.xlu0 %781
        %785 = vrot.lane.b32.xlu0 %v773, 24
        %v786 = vpop.permute.xlu0 %785
        %v788 = vsel %vm574, %v716, %v778
        %vm789 = vcmask 130048
        %v790 = vsel %vm789, %v788, %v782
        %vm791 = vcmask 195584
        %v792 = vsel %vm791, %v790, %v786
        %v793 = vpack.c.bf16 %v792, %v792
        %v794 = vld [vmem:[%s4] sm:$0xf]
        %v795 = vld [vmem:[%s4 + $0x4] sm:$0xf]
        %v796 = vld [vmem:[%s4 + $0x8] sm:$0xf]
        %v797 = vld [vmem:[%s4 + $0xc] sm:$0xf]
        %v798 = vld [vmem:[%s5] sm:$0x1]
        %v800 = vperm.slane %v798, 0
        %v806 = vunpack.c.l.b16 %v794
        %v807 = vunpack.c.l.b16 %v795
        %v808 = vunpack.c.l.b16 %v796
        %v809 = vunpack.c.l.b16 %v797
        %v810 = vpack.c.b16 %v807, %v806
        %v811 = vpack.c.b16 %v809, %v808
        %v815 = vsel %vm445, %v793, 0
        %817 = vmatpush.bf16.msra.mxu0 0
        %818 = vmatpush.bf16.msra.mxu0 0
        %819 = vmatpush.bf16.msra.mxu0 0
        %820 = vmatpush.bf16.msra.mxu0 0
        %821 = vmatpush.bf16.msra.mxu0 0
        %822 = vmatpush.bf16.msra.mxu0 0
        %823 = vmatpush.bf16.msra.mxu0 %v811
        %824 = vmatpush.bf16.msra.mxu0 %v810
        %825 = vmatmul.bf16.gmra.mxu0 %v815
        %v826 = vpop.f32.mrf.mxu0
        %v827 = vadd.f32 %v800, %v826
        %v828 = vpop.f32.mrf.mxu0
        %829 = vdwg.mxu0
        %v830 = vadd.f32 %v827, %v442
        %v831 = vld [vmem:[%s6] sm:$0x1]
        %v832 = vld [vmem:[%s7] sm:$0x1]
        %v833 = vsel %vm445, %v830, 0.0
        %834 = vadd.xlane.f32.xlu0 %v833
        %v835 = vpop.xlane.xlu0 %834
        %v836 = vmul.f32 %v835, %v455
        %v837 = vsub.f32 %v830, %v836
        %v838 = vmul.f32 %v837, %v837
        %v839 = vsel %vm445, %v838, 0.0
        %840 = vadd.xlane.f32.xlu0 %v839
        %v841 = vpop.xlane.xlu0 %840
        %v842 = vmul.f32 %v841, %v455
        %v843 = vadd.f32 %v842, 1e-05
        %v844 = vrsqrt.pop %v843
        %v845 = vmul.f32 %v844, %v843
        %v846 = vmul.f32 %v845, %v844
        %v847 = vmul.f32 0.5, %v846
        %v848 = vsub.f32 1.5, %v847
        %v849 = vmul.f32 %v844, %v848
        %vm850 = vweird.f32 %v843
        %vm851 = vweird.f32 %v844
        %vm852 = vmor %vm850, %vm851
        %v853 = vsel %vm852, %v844, %v849
        %v854 = vmul.f32 %v837, %v853
        %v856 = vperm.slane %v831, 0
        %v858 = vmul.f32 %v854, %v856
        %v860 = vperm.slane %v832, 0
        %v862 = vadd.f32 %v858, %v860
        %v863 = vpack.c.bf16 %v862, %v862
        %v864 = vld [vmem:[#allocation5] sm:$0xf]
        %v865 = vld [vmem:[#allocation5 + $0x4] sm:$0xf]
        %v866 = vld [vmem:[#allocation5 + $0x8] sm:$0xf]
        %v867 = vld [vmem:[#allocation5 + $0xc] sm:$0xf]
        %v868 = vld [vmem:[%s9] sm:$0x1]
        %v870 = vperm.slane %v868, 0
        %v876 = vunpack.c.l.b16 %v864
        %v877 = vunpack.c.l.b16 %v865
        %v878 = vunpack.c.l.b16 %v866
        %v879 = vunpack.c.l.b16 %v867
        %v880 = vpack.c.b16 %v877, %v876
        %v881 = vpack.c.b16 %v879, %v878
        %v885 = vsel %vm445, %v863, 0
        %887 = vmatpush.bf16.msra.mxu0 0
        %888 = vmatpush.bf16.msra.mxu0 0
        %889 = vmatpush.bf16.msra.mxu0 0
        %890 = vmatpush.bf16.msra.mxu0 0
        %891 = vmatpush.bf16.msra.mxu0 0
        %892 = vmatpush.bf16.msra.mxu0 0
        %893 = vmatpush.bf16.msra.mxu0 %v881
        %894 = vmatpush.bf16.msra.mxu0 %v880
        %895 = vmatmul.bf16.gmra.mxu0 %v885
        %v896 = vpop.f32.mrf.mxu0
        %v897 = vadd.f32 %v870, %v896
        %v898 = vpop.f32.mrf.mxu0
        %899 = vdwg.mxu0
        %v900 = vmul.f32 %v897, 0.5
        %v901 = vmul.f32 %v897, 0.70710677
        %v902 = vmul.f32 %v901, %v901
        %v903 = vmin.f32 16.0, %v902
        %v904 = vmul.f32 %v903, 2.1237322e-06
        %v905 = vadd.f32 %v904, 0.00028619796
        %v906 = vmul.f32 %v903, %v905
        %v907 = vadd.f32 %v906, 0.0036580483
        %v908 = vmul.f32 %v903, %v907
        %v909 = vadd.f32 %v908, 0.05243302
        %v910 = vmul.f32 %v903, %v909
        %v911 = vadd.f32 %v910, 0.18741608
        %v912 = vmul.f32 %v903, %v911
        %v913 = vadd.f32 %v912, 1.1283791
        %v914 = vmul.f32 %v901, %v913
        %v915 = vmul.f32 %v903, 3.8918573e-05
        %v916 = vadd.f32 %v915, 0.001143296
        %v917 = vmul.f32 %v903, %v916
        %v918 = vadd.f32 %v917, 0.014752088
        %v919 = vmul.f32 %v903, %v918
        %v920 = vadd.f32 %v919, 0.112945676
        %v921 = vmul.f32 %v903, %v920
        %v922 = vadd.f32 %v921, 0.4994258
        %v923 = vmul.f32 %v903, %v922
        %v924 = vadd.f32 %v923, 1.0
        %v925 = vrcp.pop %v924
        %v926 = vmul.f32 %v924, %v925
        %v927 = vsub.f32 1.0, %v926
        %v928 = vmul.f32 %v925, %v927
        %v929 = vadd.f32 %v925, %v928
        %vm930 = vweird.f32 %v924
        %vm931 = vweird.f32 %v925
        %vm932 = vmor %vm930, %vm931
        %v933 = vsel %vm932, %v925, %v929
        %v934 = vand.u32 2147483647, %v924
        %vm935 = vcmp.eq.f32.partialorder %v934, 8.507059e+37
        %v936 = vand.u32 %v924, 2147483648
        %v937 = vor.u32 1.1754944e-38, %v936
        %v938 = vsel %vm935, %v937, %v933
        %v939 = vmul.f32 %v914, %v938
        %v940 = vmin.f32 %v939, 1.0
        %v941 = vmax.f32 %v940, -1.0
        %v942 = vadd.f32 %v941, 1.0
        %v943 = vmul.f32 %v900, %v942
        %v944 = vpack.c.bf16 %v943, %v943
        %v945 = vld [vmem:[%s10] sm:$0xf]
        %v946 = vld [vmem:[%s10 + $0x4] sm:$0xf]
        %v947 = vld [vmem:[%s10 + $0x8] sm:$0xf]
        %v948 = vld [vmem:[%s10 + $0xc] sm:$0xf]
        %v949 = vld [vmem:[%s10 + $0x10] sm:$0xf]
        %v950 = vld [vmem:[%s10 + $0x14] sm:$0xf]
        %v951 = vld [vmem:[%s10 + $0x18] sm:$0xf]
        %v952 = vld [vmem:[%s10 + $0x1c] sm:$0xf]
        %v953 = vld [vmem:[%s11] sm:$0x1]
        %v955 = vperm.slane %v953, 0
        %v965 = vunpack.c.l.b16 %v945
        %v966 = vunpack.c.l.b16 %v946
        %v967 = vunpack.c.l.b16 %v947
        %v968 = vunpack.c.l.b16 %v948
        %v969 = vunpack.c.l.b16 %v949
        %v970 = vunpack.c.l.b16 %v950
        %v971 = vunpack.c.l.b16 %v951
        %v972 = vunpack.c.l.b16 %v952
        %v973 = vpack.c.b16 %v966, %v965
        %v974 = vpack.c.b16 %v968, %v967
        %v975 = vpack.c.b16 %v970, %v969
        %v976 = vpack.c.b16 %v972, %v971
        %vm981 = vcmask 523264
        %v983 = vsel %vm981, %v944, 0
        %985 = vmatpush.bf16.msra.mxu0 0
        %986 = vmatpush.bf16.msra.mxu0 0
        %987 = vmatpush.bf16.msra.mxu0 0
        %988 = vmatpush.bf16.msra.mxu0 0
        %989 = vmatpush.bf16.msra.mxu0 %v976
        %990 = vmatpush.bf16.msra.mxu0 %v975
        %991 = vmatpush.bf16.msra.mxu0 %v974
        %992 = vmatpush.bf16.msra.mxu0 %v973
        %993 = vmatmul.bf16.gmra.mxu0 %v983
        %v994 = vpop.f32.mrf.mxu0
        %v995 = vadd.f32 %v955, %v994
        %v996 = vpop.f32.mrf.mxu0
        %997 = vdwg.mxu0
        %v998 = vadd.f32 %v995, %v830
        %999 = vst.msk [vmem:[%s436] sm:$0xff] %vm445, %v998
        %s1000 = sand.u32 %s293, 1
        %s1001 = scalar_lea.sflag [#allocation4], %s1000
        %s1002 = sand.u32 %s293, 1
        %s1003 = smul.addr %s1002, 8
        %s1004 = scalar_lea.vmem [#allocation7], %s1003
        // Predicated region
        $region77: #{tpu_custom_call.1} parent=67 // pred_check
          %p1005 = pneg %p303
        $region78: #{tpu_custom_call.1} parent=67 // pred_check_branch
          %1007 = sbr.rel (%p1005) target = $region80
        $region79: #{tpu_custom_call.1} parent=67 // pred_region
          %1009 = vsyncadd %s1001, 0
          %s1010 = smul.addr %s28, 8
          %s1011 = scalar_lea.hbm %s12, %s1010
          %s1013 = sshll.u32 %s1004, 4
          %s1014 = int_to_ptr.vmem [resolvable:$true] %s1013
          %s1015 = sshll.u32 %s1011, 4
          %s1016 = int_to_ptr.hbm [resolvable:$true] %s1015
          %1018 = dma.vmem_to_hbm [thread:$0]  %s1014, 128, %s1016, %s1001
        $region80: #{tpu_custom_call.1} parent=67 // pred_fallthru
          _
      $region68: #{tpu_custom_call.1} parent=5 // pred_fallthru
        _
      %p1019 = scmp.le.s32.totalorder 2, %s23
      // Predicated region
      $region81: #{tpu_custom_call.1} parent=5 // pred_check
        %p1020 = pneg %p1019
      $region82: #{tpu_custom_call.1} parent=5 // pred_check_branch
        %1022 = sbr.rel (%p1020) target = $region84
      $region83: #{tpu_custom_call.1} parent=5 // pred_region
        %s1023 = ssub.s32 %s23, 2
        // Predicated region
        $region85: #{tpu_custom_call.1} parent=83 // pred_check
          %p1024 = pneg %p309
        $region86: #{tpu_custom_call.1} parent=83 // pred_check_branch
          %1026 = sbr.rel (%p1024) target = $region88
        $region87: #{tpu_custom_call.1} parent=83 // pred_region
          %s1027 = sand.u32 %s294, 1
          %s1028 = scalar_lea.sflag [#allocation4], %s1027
          %s1029 = sand.u32 %s294, 1
          %s1030 = smul.addr %s1029, 8
          %s1031 = scalar_lea.vmem [#allocation7], %s1030
          %1033 = dma.done %s1028, 128
        $region88: #{tpu_custom_call.1} parent=83 // pred_fallthru
          _
      $region84: #{tpu_custom_call.1} parent=5 // pred_fallthru
        _
    $region6: #{tpu_custom_call.1} parent=1 // loop_footer
      %s27 = sadd.s32 1, %s23
    $region7: #{tpu_custom_call.1} parent=1 // loop_footer_branch
      %22 = sbr.rel target = $region3
    $region8: #{tpu_custom_call.1} parent=1 // loop_exit
      _
    %1034 = vsyncpa [#allocation3], 1
    %s1035 = scalar_lea.sflag [#allocation3], 1
    %1036 = vsyncpa %s1035, 1
    %1037 = vsyncpa [#allocation6], 1
    %1038 = vsyncpa [#allocation4], 1
    %s1039 = scalar_lea.sflag [#allocation4], 1
    %1040 = vsyncpa %s1039, 1

</llo_original>
